<compile_context>
chip_gen: v7x
topology: tpu7x:2x2x1
jax: 0.10.0
libtpu: 0.0.40
codegen_flags: <defaults>
</compile_context>

<pallas_src>
import functools

import jax
import jax.numpy as jnp
from jax import lax
from jax.experimental import pallas as pl
from jax.experimental.pallas import tpu as pltpu


MATMUL_DTYPE = jnp.bfloat16   # MXU operand dtype; accumulation stays f32


def _gru_gates(gi, gh, h, H):
    """PyTorch GRU cell gating (gate order [r, z, n]); f32 elementwise path."""
    r = jax.nn.sigmoid(gi[:, 0 * H:1 * H] + gh[:, 0 * H:1 * H])
    zg = jax.nn.sigmoid(gi[:, 1 * H:2 * H] + gh[:, 1 * H:2 * H])
    n = jnp.tanh(gi[:, 2 * H:3 * H] + r * gh[:, 2 * H:3 * H])
    return (1.0 - zg) * n + zg * h


def _vae_kernel(
    # inputs
    x_ref, mask_ref, eps_ref,
    w_ih_fused_ref, enc_whh_ref, enc_bih_ref, enc_bhh_ref,
    muls_w_ref, muls_b_ref,
    dec_wih_z_ref, dec_whh_ref, dec_bih_ref, dec_bhh_ref,
    out_w_ref, out_b_ref,
    # outputs
    logits_ref, z_ref, mu_ref, sigma_ref,
    # scratch
    gi_enc_scr, gi_dec_scr, h_dec_scr,
    *, T, B, H,
):
    # ---------------- Fused input projections (one big MXU matmul) ----------------
    # [enc_w_ih | dec_w_ih_x] fused on the N dim: (T*B, E) x (E, 6H); the 3H=384
    # split point is lane-aligned so the two slices are free.
    x2d = x_ref[...]                                               # (T*B, E) bf16
    gi_all = jnp.dot(x2d, w_ih_fused_ref[...],
                     preferred_element_type=jnp.float32)           # (T*B, 6H) f32
    gi_enc_scr[...] = gi_all[:, :3 * H] + enc_bih_ref[...]
    gi_dec_scr[...] = gi_all[:, 3 * H:]

    b_hh_enc = jnp.broadcast_to(enc_bhh_ref[...], (B, 3 * H))      # hoisted broadcast

    # ---------------- Encoder recurrence ----------------
    def enc_step(t, h):
        row = pl.multiple_of(t * B, B)
        gi = gi_enc_scr[pl.ds(row, B), :]                          # (B, 3H)
        gh = jnp.dot(h.astype(MATMUL_DTYPE), enc_whh_ref[...],
                     preferred_element_type=jnp.float32) + b_hh_enc
        h_new = _gru_gates(gi, gh, h, H)
        m = mask_ref[pl.ds(row, B), :]                             # (B, H), pre-broadcast
        # pack_padded_sequence emulation: padded steps keep previous hidden.
        return h + m * (h_new - h)

    h_enc = lax.fori_loop(0, T, enc_step,
                          jnp.zeros((B, H), jnp.float32), unroll=True)

    # ---------------- Latent sample (fused, single matmul for mu & log_sigma) ----
    h_enc_mm = h_enc.astype(MATMUL_DTYPE)
    muls = jnp.dot(h_enc_mm, muls_w_ref[...],
                   preferred_element_type=jnp.float32) + muls_b_ref[...]   # (B, 2H)
    mu = muls[:, :H]                                   # lane-aligned slice (H=128)
    sigma = jnp.exp(muls[:, H:])
    z = mu + sigma * eps_ref[...]
    mu_ref[...] = mu
    sigma_ref[...] = sigma
    z_ref[...] = z

    # ---------------- Decoder recurrence ----------------
    # z contribution of the input projection computed once (concat(x, z) @ W ==
    # x @ W_x + z @ W_z); the x part is already in gi_dec_scr.
    gz = jnp.dot(z.astype(MATMUL_DTYPE), dec_wih_z_ref[...],
                 preferred_element_type=jnp.float32) + dec_bih_ref[...]    # (B, 3H)

    b_hh_dec = jnp.broadcast_to(dec_bhh_ref[...], (B, 3 * H))

    def dec_step(t, h):
        row = pl.multiple_of(t * B, B)
        gi = gi_dec_scr[pl.ds(row, B), :] + gz
        gh = jnp.dot(h.astype(MATMUL_DTYPE), dec_whh_ref[...],
                     preferred_element_type=jnp.float32) + b_hh_dec
        h_new = _gru_gates(gi, gh, h, H)
        h_dec_scr[pl.ds(row, B), :] = h_new
        return h_new

    lax.fori_loop(0, T, dec_step, z, unroll=True)      # initial hidden = z

    # ---------------- Output projection (hoisted, lane-dense, bf16 store) --------
    logits = jnp.dot(h_dec_scr[...].astype(MATMUL_DTYPE), out_w_ref[...],
                     preferred_element_type=jnp.float32) + out_b_ref[...]
    logits_ref[...] = logits.astype(logits_ref.dtype)   # (T*B, Vpad), Vpad % 128 == 0


# ----------------------------------------------------------------------------
# Parameters and the full forward (glue in plain JAX).
# ----------------------------------------------------------------------------
def make_params(key, vocab, emb_dim, hidden):
    """Parameters kept in f32 (matmul operands are cast to bf16 at call time)."""
    ks = jax.random.split(key, 12)
    s = 0.05

    def w(k, shape):
        return s * jax.random.normal(k, shape, jnp.float32)

    p = {
        "emb":        w(ks[0], (vocab, emb_dim)),
        "enc_w_ih":   w(ks[1], (emb_dim, 3 * hidden)),
        "enc_w_hh":   w(ks[2], (hidden, 3 * hidden)),
        "enc_b_ih":   jnp.zeros((1, 3 * hidden), jnp.float32),
        "enc_b_hh":   jnp.zeros((1, 3 * hidden), jnp.float32),
        "mu_w":       w(ks[3], (hidden, hidden)),
        "mu_b":       jnp.zeros((1, hidden), jnp.float32),
        "ls_w":       w(ks[4], (hidden, hidden)),
        "ls_b":       jnp.zeros((1, hidden), jnp.float32),
        # decoder input weight split into x part and z part (concat(x, z) @ W
        # is computed as x @ W_x + z @ W_z, hoisting z out of the recurrence)
        "dec_w_ih_x": w(ks[5], (emb_dim, 3 * hidden)),
        "dec_w_ih_z": w(ks[6], (hidden, 3 * hidden)),
        "dec_w_hh":   w(ks[7], (hidden, 3 * hidden)),
        "dec_b_ih":   jnp.zeros((1, 3 * hidden), jnp.float32),
        "dec_b_hh":   jnp.zeros((1, 3 * hidden), jnp.float32),
        "out_w":      w(ks[8], (hidden, vocab)),
        "out_b":      jnp.zeros((1, vocab), jnp.float32),
    }
    return p


def vae_forward(params, programs, program_masks, eps, teacher_enforcing=True,
                deterministic=True):
    """programs: (B, T) int32 token ids; program_masks: (B, T) float32."""
    B, T = programs.shape
    H = params["mu_w"].shape[0]
    E = params["emb"].shape[1]
    V = params["out_w"].shape[1]
    Vpad = ((V + 127) // 128) * 128
    Bp = ((B + 15) // 16) * 16          # pad batch to the bf16-native sublane tile

    # program_lens kept for parity with the reference; in-kernel masking replaces
    # pack_padded_sequence so lengths are not needed explicitly.
    program_lens = jnp.sum(program_masks, axis=-1)
    del program_lens

    # --- Glue: batch padding, embedding gather, time-major flatten, weight fusion.
    pad_b = Bp - B
    programs_p = jnp.pad(programs, ((0, pad_b), (0, 0)))
    masks_p = jnp.pad(program_masks, ((0, pad_b), (0, 0)))
    eps_p = jnp.pad(eps, ((0, pad_b), (0, 0)))

    x_emb = params["emb"][programs_p]                                   # (Bp, T, E)
    x2d = jnp.transpose(x_emb, (1, 0, 2)).reshape(T * Bp, E).astype(MATMUL_DTYPE)
    # Mask pre-broadcast to (T*Bp, H): keeps the lane broadcast off the recurrence.
    mask2d = jnp.transpose(masks_p, (1, 0)).reshape(T * Bp, 1).astype(jnp.float32)
    mask_h = jnp.broadcast_to(mask2d, (T * Bp, H))

    # Fused weights (cast to bf16 only here; params themselves stay f32).
    w_ih_fused = jnp.concatenate(
        [params["enc_w_ih"], params["dec_w_ih_x"]], axis=1).astype(MATMUL_DTYPE)  # (E, 6H)
    muls_w = jnp.concatenate([params["mu_w"], params["ls_w"]], axis=1).astype(MATMUL_DTYPE)
    muls_b = jnp.concatenate([params["mu_b"], params["ls_b"]], axis=1)            # (1, 2H)
    out_w_pad = jnp.pad(params["out_w"], ((0, 0), (0, Vpad - V))).astype(MATMUL_DTYPE)
    out_b_pad = jnp.pad(params["out_b"], ((0, 0), (0, Vpad - V)))

    kernel = functools.partial(_vae_kernel, T=T, B=Bp, H=H)
    vspec = pl.BlockSpec(memory_space=pltpu.MemorySpace.VMEM)
    n_in = 15

    logits_pad, z, z_mean, z_sigma = pl.pallas_call(
        kernel,
        out_shape=(
            jax.ShapeDtypeStruct((T * Bp, Vpad), jnp.bfloat16),
            jax.ShapeDtypeStruct((Bp, H), jnp.float32),
            jax.ShapeDtypeStruct((Bp, H), jnp.float32),
            jax.ShapeDtypeStruct((Bp, H), jnp.float32),
        ),
        in_specs=[vspec] * n_in,
        out_specs=(vspec, vspec, vspec, vspec),
        scratch_shapes=[
            pltpu.VMEM((T * Bp, 3 * H), jnp.float32),   # encoder input-gate precompute
            pltpu.VMEM((T * Bp, 3 * H), jnp.float32),   # decoder input-gate precompute
            pltpu.VMEM((T * Bp, H), jnp.float32),       # decoder hidden states
        ],
    )(
        x2d, mask_h, eps_p,
        w_ih_fused,
        params["enc_w_hh"].astype(MATMUL_DTYPE), params["enc_b_ih"], params["enc_b_hh"],
        muls_w, muls_b,
        params["dec_w_ih_z"].astype(MATMUL_DTYPE),
        params["dec_w_hh"].astype(MATMUL_DTYPE), params["dec_b_ih"], params["dec_b_hh"],
        out_w_pad, out_b_pad,
    )

    # Drop lane/batch padding; cast bf16 logits back to f32 for the caller.
    logits = logits_pad.astype(jnp.float32).reshape(T, Bp, Vpad)[:, :B, :V]
    z = z[:B]
    z_mean = z_mean[:B]
    z_sigma = z_sigma[:B]
    # NOTE: decoder hidden/logits for padded timesteps are produced (loss is
    # expected to mask them), matching a teacher-forced decoder over full T.
    return (logits, z), z_mean, z_sigma


def latent_loss(z_mean, z_stddev):
    mean_sq = z_mean * z_mean
    stddev_sq = z_stddev * z_stddev
    return 0.5 * jnp.mean(mean_sq + stddev_sq - jnp.log(stddev_sq) - 1.0)


if __name__ == "__main__":
    VOCAB = 32      # num_inputs == num_outputs
    EMB = 64
    HIDDEN = 128    # config.hidden_size
    B, T = 8, 8

    key = jax.random.PRNGKey(0)
    k_param, k_prog, k_len, k_eps = jax.random.split(key, 4)

    params = make_params(k_param, VOCAB, EMB, HIDDEN)

    programs = jax.random.randint(k_prog, (B, T), 0, VOCAB, dtype=jnp.int32)
    lens = jax.random.randint(k_len, (B,), 3, T + 1)
    program_masks = (jnp.arange(T)[None, :] < lens[:, None]).astype(jnp.float32)
    eps = jax.random.normal(k_eps, (B, HIDDEN), jnp.float32)   # std normal sample

    (logits, z), z_mean, z_sigma = vae_forward(
        params, programs, program_masks, eps,
        teacher_enforcing=True, deterministic=True)
    ll = latent_loss(z_mean, z_sigma)

    jax.block_until_ready((logits, z, ll))
    assert logits.shape == (T, B, VOCAB)
    assert z.shape == (B, HIDDEN)
    assert bool(jnp.all(jnp.isfinite(logits)))
    assert bool(jnp.isfinite(ll))
    print("KERNEL_OK")
</pallas_src>

<mosaic_0001>
module attributes {stable_mosaic.version = 11 : i64} {
  func.func @_vae_kernel(%arg0: memref<128x64xbf16, #tpu.memory_space<vmem>>, %arg1: memref<128x128xf32, #tpu.memory_space<vmem>>, %arg2: memref<16x128xf32, #tpu.memory_space<vmem>>, %arg3: memref<64x768xbf16, #tpu.memory_space<vmem>>, %arg4: memref<128x384xbf16, #tpu.memory_space<vmem>>, %arg5: memref<1x384xf32, #tpu.memory_space<vmem>>, %arg6: memref<1x384xf32, #tpu.memory_space<vmem>>, %arg7: memref<128x256xbf16, #tpu.memory_space<vmem>>, %arg8: memref<1x256xf32, #tpu.memory_space<vmem>>, %arg9: memref<128x384xbf16, #tpu.memory_space<vmem>>, %arg10: memref<128x384xbf16, #tpu.memory_space<vmem>>, %arg11: memref<1x384xf32, #tpu.memory_space<vmem>>, %arg12: memref<1x384xf32, #tpu.memory_space<vmem>>, %arg13: memref<128x128xbf16, #tpu.memory_space<vmem>>, %arg14: memref<1x128xf32, #tpu.memory_space<vmem>>, %arg15: memref<128x128xbf16, #tpu.memory_space<vmem>>, %arg16: memref<16x128xf32, #tpu.memory_space<vmem>>, %arg17: memref<16x128xf32, #tpu.memory_space<vmem>>, %arg18: memref<16x128xf32, #tpu.memory_space<vmem>>, %arg19: memref<128x384xf32, #tpu.memory_space<vmem>>, %arg20: memref<128x384xf32, #tpu.memory_space<vmem>>, %arg21: memref<128x128xf32, #tpu.memory_space<vmem>>) attributes {dimension_semantics = [], scalar_prefetch = 0 : i64, scratch_operands = 3 : i64, tpu.core_type = #tpu.core_type<tc>} {
    %c0 = arith.constant 0 : index
    %c0_0 = arith.constant 0 : index
    %0 = vector.load %arg0[%c0, %c0_0] : memref<128x64xbf16, #tpu.memory_space<vmem>>, vector<128x64xbf16>
    %c0_1 = arith.constant 0 : index
    %c0_2 = arith.constant 0 : index
    %1 = vector.load %arg3[%c0_1, %c0_2] : memref<64x768xbf16, #tpu.memory_space<vmem>>, vector<64x768xbf16>
    %cst = arith.constant dense<0.000000e+00> : vector<128x768xf32>
    %2 = tpu.matmul %0, %1, %cst {dimension_numbers = #tpu.dot_dimension_numbers<[1], [0], [0], [1], [0, 0, 1, 1], [], []>} : vector<128x64xbf16>, vector<64x768xbf16>, vector<128x768xf32> -> vector<128x768xf32>
    %3 = vector.extract_strided_slice %2 {offsets = [0, 0], sizes = [128, 384], strides = [1, 1]} : vector<128x768xf32> to vector<128x384xf32>
    %c0_3 = arith.constant 0 : index
    %c0_4 = arith.constant 0 : index
    %4 = vector.load %arg5[%c0_3, %c0_4] : memref<1x384xf32, #tpu.memory_space<vmem>>, vector<1x384xf32>
    %5 = vector.broadcast %4 : vector<1x384xf32> to vector<128x384xf32>
    %6 = arith.addf %3, %5 : vector<128x384xf32>
    %c0_5 = arith.constant 0 : index
    %c0_6 = arith.constant 0 : index
    %7 = vector.load %arg19[%c0_5, %c0_6] : memref<128x384xf32, #tpu.memory_space<vmem>>, vector<128x384xf32>
    tpu.vector_store %arg19[%c0_5, %c0_6], %6 {strides = array<i32>} : memref<128x384xf32, #tpu.memory_space<vmem>>, vector<128x384xf32>,
    %8 = vector.extract_strided_slice %2 {offsets = [0, 384], sizes = [128, 384], strides = [1, 1]} : vector<128x768xf32> to vector<128x384xf32>
    %c0_7 = arith.constant 0 : index
    %c0_8 = arith.constant 0 : index
    %9 = vector.load %arg20[%c0_7, %c0_8] : memref<128x384xf32, #tpu.memory_space<vmem>>, vector<128x384xf32>
    tpu.vector_store %arg20[%c0_7, %c0_8], %8 {strides = array<i32>} : memref<128x384xf32, #tpu.memory_space<vmem>>, vector<128x384xf32>,
    %c0_9 = arith.constant 0 : index
    %c0_10 = arith.constant 0 : index
    %10 = vector.load %arg6[%c0_9, %c0_10] : memref<1x384xf32, #tpu.memory_space<vmem>>, vector<1x384xf32>
    %11 = vector.shape_cast %10 : vector<1x384xf32> to vector<1x384xf32>
    %12 = vector.broadcast %11 : vector<1x384xf32> to vector<16x384xf32>
    %cst_11 = arith.constant 0.000000e+00 : f32
    %13 = vector.broadcast %cst_11 : f32 to vector<16x128xf32>
    %c0_i32 = arith.constant 0 : i32
    %c16_i32 = arith.constant 16 : i32
    %14 = arith.muli %c0_i32, %c16_i32 : i32
    %15 = tpu.assume_multiple %14, 16 : i32
    %16 = arith.index_cast %15 : i32 to index
    %c0_12 = arith.constant 0 : index
    %17 = vector.load %arg19[%16, %c0_12] : memref<128x384xf32, #tpu.memory_space<vmem>>, vector<16x384xf32>
    %18 = arith.truncf %13 : vector<16x128xf32> to vector<16x128xbf16>
    %c0_13 = arith.constant 0 : index
    %c0_14 = arith.constant 0 : index
    %19 = vector.load %arg4[%c0_13, %c0_14] : memref<128x384xbf16, #tpu.memory_space<vmem>>, vector<128x384xbf16>
    %cst_15 = arith.constant dense<0.000000e+00> : vector<16x384xf32>
    %20 = tpu.matmul %18, %19, %cst_15 {dimension_numbers = #tpu.dot_dimension_numbers<[1], [0], [0], [1], [0, 0, 1, 1], [], []>} : vector<16x128xbf16>, vector<128x384xbf16>, vector<16x384xf32> -> vector<16x384xf32>
    %21 = arith.addf %20, %12 : vector<16x384xf32>
    %22 = vector.extract_strided_slice %17 {offsets = [0, 0], sizes = [16, 128], strides = [1, 1]} : vector<16x384xf32> to vector<16x128xf32>
    %23 = vector.extract_strided_slice %21 {offsets = [0, 0], sizes = [16, 128], strides = [1, 1]} : vector<16x384xf32> to vector<16x128xf32>
    %24 = arith.addf %22, %23 : vector<16x128xf32>
    %25 = arith.negf %24 : vector<16x128xf32>
    %26 = math.exp %25 : vector<16x128xf32>
    %cst_16 = arith.constant 1.000000e+00 : f32
    %27 = vector.broadcast %cst_16 : f32 to vector<16x128xf32>
    %28 = arith.addf %27, %26 : vector<16x128xf32>
    %29 = arith.divf %27, %28 : vector<16x128xf32>
    %30 = vector.extract_strided_slice %17 {offsets = [0, 128], sizes = [16, 128], strides = [1, 1]} : vector<16x384xf32> to vector<16x128xf32>
    %31 = vector.extract_strided_slice %21 {offsets = [0, 128], sizes = [16, 128], strides = [1, 1]} : vector<16x384xf32> to vector<16x128xf32>
    %32 = arith.addf %30, %31 : vector<16x128xf32>
    %33 = arith.negf %32 : vector<16x128xf32>
    %34 = math.exp %33 : vector<16x128xf32>
    %cst_17 = arith.constant 1.000000e+00 : f32
    %35 = vector.broadcast %cst_17 : f32 to vector<16x128xf32>
    %36 = arith.addf %35, %34 : vector<16x128xf32>
    %37 = arith.divf %35, %36 : vector<16x128xf32>
    %38 = vector.extract_strided_slice %17 {offsets = [0, 256], sizes = [16, 128], strides = [1, 1]} : vector<16x384xf32> to vector<16x128xf32>
    %39 = vector.extract_strided_slice %21 {offsets = [0, 256], sizes = [16, 128], strides = [1, 1]} : vector<16x384xf32> to vector<16x128xf32>
    %40 = arith.mulf %29, %39 : vector<16x128xf32>
    %41 = arith.addf %38, %40 : vector<16x128xf32>
    %42 = math.tanh %41 : vector<16x128xf32>
    %cst_18 = arith.constant 1.000000e+00 : f32
    %43 = vector.broadcast %cst_18 : f32 to vector<16x128xf32>
    %44 = arith.subf %43, %37 : vector<16x128xf32>
    %45 = arith.mulf %44, %42 : vector<16x128xf32>
    %46 = arith.mulf %37, %13 : vector<16x128xf32>
    %47 = arith.addf %45, %46 : vector<16x128xf32>
    %48 = arith.index_cast %15 : i32 to index
    %c0_19 = arith.constant 0 : index
    %49 = vector.load %arg1[%48, %c0_19] : memref<128x128xf32, #tpu.memory_space<vmem>>, vector<16x128xf32>
    %50 = arith.subf %47, %13 : vector<16x128xf32>
    %51 = arith.mulf %49, %50 : vector<16x128xf32>
    %52 = arith.addf %13, %51 : vector<16x128xf32>
    %c1_i32 = arith.constant 1 : i32
    %c16_i32_20 = arith.constant 16 : i32
    %53 = arith.muli %c1_i32, %c16_i32_20 : i32
    %54 = tpu.assume_multiple %53, 16 : i32
    %55 = arith.index_cast %54 : i32 to index
    %c0_21 = arith.constant 0 : index
    %56 = vector.load %arg19[%55, %c0_21] : memref<128x384xf32, #tpu.memory_space<vmem>>, vector<16x384xf32>
    %57 = arith.truncf %52 : vector<16x128xf32> to vector<16x128xbf16>
    %c0_22 = arith.constant 0 : index
    %c0_23 = arith.constant 0 : index
    %58 = vector.load %arg4[%c0_22, %c0_23] : memref<128x384xbf16, #tpu.memory_space<vmem>>, vector<128x384xbf16>
    %cst_24 = arith.constant dense<0.000000e+00> : vector<16x384xf32>
    %59 = tpu.matmul %57, %58, %cst_24 {dimension_numbers = #tpu.dot_dimension_numbers<[1], [0], [0], [1], [0, 0, 1, 1], [], []>} : vector<16x128xbf16>, vector<128x384xbf16>, vector<16x384xf32> -> vector<16x384xf32>
    %60 = arith.addf %59, %12 : vector<16x384xf32>
    %61 = vector.extract_strided_slice %56 {offsets = [0, 0], sizes = [16, 128], strides = [1, 1]} : vector<16x384xf32> to vector<16x128xf32>
    %62 = vector.extract_strided_slice %60 {offsets = [0, 0], sizes = [16, 128], strides = [1, 1]} : vector<16x384xf32> to vector<16x128xf32>
    %63 = arith.addf %61, %62 : vector<16x128xf32>
    %64 = arith.negf %63 : vector<16x128xf32>
    %65 = math.exp %64 : vector<16x128xf32>
    %cst_25 = arith.constant 1.000000e+00 : f32
    %66 = vector.broadcast %cst_25 : f32 to vector<16x128xf32>
    %67 = arith.addf %66, %65 : vector<16x128xf32>
    %68 = arith.divf %66, %67 : vector<16x128xf32>
    %69 = vector.extract_strided_slice %56 {offsets = [0, 128], sizes = [16, 128], strides = [1, 1]} : vector<16x384xf32> to vector<16x128xf32>
    %70 = vector.extract_strided_slice %60 {offsets = [0, 128], sizes = [16, 128], strides = [1, 1]} : vector<16x384xf32> to vector<16x128xf32>
    %71 = arith.addf %69, %70 : vector<16x128xf32>
    %72 = arith.negf %71 : vector<16x128xf32>
    %73 = math.exp %72 : vector<16x128xf32>
    %cst_26 = arith.constant 1.000000e+00 : f32
    %74 = vector.broadcast %cst_26 : f32 to vector<16x128xf32>
    %75 = arith.addf %74, %73 : vector<16x128xf32>
    %76 = arith.divf %74, %75 : vector<16x128xf32>
    %77 = vector.extract_strided_slice %56 {offsets = [0, 256], sizes = [16, 128], strides = [1, 1]} : vector<16x384xf32> to vector<16x128xf32>
    %78 = vector.extract_strided_slice %60 {offsets = [0, 256], sizes = [16, 128], strides = [1, 1]} : vector<16x384xf32> to vector<16x128xf32>
    %79 = arith.mulf %68, %78 : vector<16x128xf32>
    %80 = arith.addf %77, %79 : vector<16x128xf32>
    %81 = math.tanh %80 : vector<16x128xf32>
    %cst_27 = arith.constant 1.000000e+00 : f32
    %82 = vector.broadcast %cst_27 : f32 to vector<16x128xf32>
    %83 = arith.subf %82, %76 : vector<16x128xf32>
    %84 = arith.mulf %83, %81 : vector<16x128xf32>
    %85 = arith.mulf %76, %52 : vector<16x128xf32>
    %86 = arith.addf %84, %85 : vector<16x128xf32>
    %87 = arith.index_cast %54 : i32 to index
    %c0_28 = arith.constant 0 : index
    %88 = vector.load %arg1[%87, %c0_28] : memref<128x128xf32, #tpu.memory_space<vmem>>, vector<16x128xf32>
    %89 = arith.subf %86, %52 : vector<16x128xf32>
    %90 = arith.mulf %88, %89 : vector<16x128xf32>
    %91 = arith.addf %52, %90 : vector<16x128xf32>
    %c2_i32 = arith.constant 2 : i32
    %c16_i32_29 = arith.constant 16 : i32
    %92 = arith.muli %c2_i32, %c16_i32_29 : i32
    %93 = tpu.assume_multiple %92, 16 : i32
    %94 = arith.index_cast %93 : i32 to index
    %c0_30 = arith.constant 0 : index
    %95 = vector.load %arg19[%94, %c0_30] : memref<128x384xf32, #tpu.memory_space<vmem>>, vector<16x384xf32>
    %96 = arith.truncf %91 : vector<16x128xf32> to vector<16x128xbf16>
    %c0_31 = arith.constant 0 : index
    %c0_32 = arith.constant 0 : index
    %97 = vector.load %arg4[%c0_31, %c0_32] : memref<128x384xbf16, #tpu.memory_space<vmem>>, vector<128x384xbf16>
    %cst_33 = arith.constant dense<0.000000e+00> : vector<16x384xf32>
    %98 = tpu.matmul %96, %97, %cst_33 {dimension_numbers = #tpu.dot_dimension_numbers<[1], [0], [0], [1], [0, 0, 1, 1], [], []>} : vector<16x128xbf16>, vector<128x384xbf16>, vector<16x384xf32> -> vector<16x384xf32>
    %99 = arith.addf %98, %12 : vector<16x384xf32>
    %100 = vector.extract_strided_slice %95 {offsets = [0, 0], sizes = [16, 128], strides = [1, 1]} : vector<16x384xf32> to vector<16x128xf32>
    %101 = vector.extract_strided_slice %99 {offsets = [0, 0], sizes = [16, 128], strides = [1, 1]} : vector<16x384xf32> to vector<16x128xf32>
    %102 = arith.addf %100, %101 : vector<16x128xf32>
    %103 = arith.negf %102 : vector<16x128xf32>
    %104 = math.exp %103 : vector<16x128xf32>
    %cst_34 = arith.constant 1.000000e+00 : f32
    %105 = vector.broadcast %cst_34 : f32 to vector<16x128xf32>
    %106 = arith.addf %105, %104 : vector<16x128xf32>
    %107 = arith.divf %105, %106 : vector<16x128xf32>
    %108 = vector.extract_strided_slice %95 {offsets = [0, 128], sizes = [16, 128], strides = [1, 1]} : vector<16x384xf32> to vector<16x128xf32>
    %109 = vector.extract_strided_slice %99 {offsets = [0, 128], sizes = [16, 128], strides = [1, 1]} : vector<16x384xf32> to vector<16x128xf32>
    %110 = arith.addf %108, %109 : vector<16x128xf32>
    %111 = arith.negf %110 : vector<16x128xf32>
    %112 = math.exp %111 : vector<16x128xf32>
    %cst_35 = arith.constant 1.000000e+00 : f32
    %113 = vector.broadcast %cst_35 : f32 to vector<16x128xf32>
    %114 = arith.addf %113, %112 : vector<16x128xf32>
    %115 = arith.divf %113, %114 : vector<16x128xf32>
    %116 = vector.extract_strided_slice %95 {offsets = [0, 256], sizes = [16, 128], strides = [1, 1]} : vector<16x384xf32> to vector<16x128xf32>
    %117 = vector.extract_strided_slice %99 {offsets = [0, 256], sizes = [16, 128], strides = [1, 1]} : vector<16x384xf32> to vector<16x128xf32>
    %118 = arith.mulf %107, %117 : vector<16x128xf32>
    %119 = arith.addf %116, %118 : vector<16x128xf32>
    %120 = math.tanh %119 : vector<16x128xf32>
    %cst_36 = arith.constant 1.000000e+00 : f32
    %121 = vector.broadcast %cst_36 : f32 to vector<16x128xf32>
    %122 = arith.subf %121, %115 : vector<16x128xf32>
    %123 = arith.mulf %122, %120 : vector<16x128xf32>
    %124 = arith.mulf %115, %91 : vector<16x128xf32>
    %125 = arith.addf %123, %124 : vector<16x128xf32>
    %126 = arith.index_cast %93 : i32 to index
    %c0_37 = arith.constant 0 : index
    %127 = vector.load %arg1[%126, %c0_37] : memref<128x128xf32, #tpu.memory_space<vmem>>, vector<16x128xf32>
    %128 = arith.subf %125, %91 : vector<16x128xf32>
    %129 = arith.mulf %127, %128 : vector<16x128xf32>
    %130 = arith.addf %91, %129 : vector<16x128xf32>
    %c3_i32 = arith.constant 3 : i32
    %c16_i32_38 = arith.constant 16 : i32
    %131 = arith.muli %c3_i32, %c16_i32_38 : i32
    %132 = tpu.assume_multiple %131, 16 : i32
    %133 = arith.index_cast %132 : i32 to index
    %c0_39 = arith.constant 0 : index
    %134 = vector.load %arg19[%133, %c0_39] : memref<128x384xf32, #tpu.memory_space<vmem>>, vector<16x384xf32>
    %135 = arith.truncf %130 : vector<16x128xf32> to vector<16x128xbf16>
    %c0_40 = arith.constant 0 : index
    %c0_41 = arith.constant 0 : index
    %136 = vector.load %arg4[%c0_40, %c0_41] : memref<128x384xbf16, #tpu.memory_space<vmem>>, vector<128x384xbf16>
    %cst_42 = arith.constant dense<0.000000e+00> : vector<16x384xf32>
    %137 = tpu.matmul %135, %136, %cst_42 {dimension_numbers = #tpu.dot_dimension_numbers<[1], [0], [0], [1], [0, 0, 1, 1], [], []>} : vector<16x128xbf16>, vector<128x384xbf16>, vector<16x384xf32> -> vector<16x384xf32>
    %138 = arith.addf %137, %12 : vector<16x384xf32>
    %139 = vector.extract_strided_slice %134 {offsets = [0, 0], sizes = [16, 128], strides = [1, 1]} : vector<16x384xf32> to vector<16x128xf32>
    %140 = vector.extract_strided_slice %138 {offsets = [0, 0], sizes = [16, 128], strides = [1, 1]} : vector<16x384xf32> to vector<16x128xf32>
    %141 = arith.addf %139, %140 : vector<16x128xf32>
    %142 = arith.negf %141 : vector<16x128xf32>
    %143 = math.exp %142 : vector<16x128xf32>
    %cst_43 = arith.constant 1.000000e+00 : f32
    %144 = vector.broadcast %cst_43 : f32 to vector<16x128xf32>
    %145 = arith.addf %144, %143 : vector<16x128xf32>
    %146 = arith.divf %144, %145 : vector<16x128xf32>
    %147 = vector.extract_strided_slice %134 {offsets = [0, 128], sizes = [16, 128], strides = [1, 1]} : vector<16x384xf32> to vector<16x128xf32>
    %148 = vector.extract_strided_slice %138 {offsets = [0, 128], sizes = [16, 128], strides = [1, 1]} : vector<16x384xf32> to vector<16x128xf32>
    %149 = arith.addf %147, %148 : vector<16x128xf32>
    %150 = arith.negf %149 : vector<16x128xf32>
    %151 = math.exp %150 : vector<16x128xf32>
    %cst_44 = arith.constant 1.000000e+00 : f32
    %152 = vector.broadcast %cst_44 : f32 to vector<16x128xf32>
    %153 = arith.addf %152, %151 : vector<16x128xf32>
    %154 = arith.divf %152, %153 : vector<16x128xf32>
    %155 = vector.extract_strided_slice %134 {offsets = [0, 256], sizes = [16, 128], strides = [1, 1]} : vector<16x384xf32> to vector<16x128xf32>
    %156 = vector.extract_strided_slice %138 {offsets = [0, 256], sizes = [16, 128], strides = [1, 1]} : vector<16x384xf32> to vector<16x128xf32>
    %157 = arith.mulf %146, %156 : vector<16x128xf32>
    %158 = arith.addf %155, %157 : vector<16x128xf32>
    %159 = math.tanh %158 : vector<16x128xf32>
    %cst_45 = arith.constant 1.000000e+00 : f32
    %160 = vector.broadcast %cst_45 : f32 to vector<16x128xf32>
    %161 = arith.subf %160, %154 : vector<16x128xf32>
    %162 = arith.mulf %161, %159 : vector<16x128xf32>
    %163 = arith.mulf %154, %130 : vector<16x128xf32>
    %164 = arith.addf %162, %163 : vector<16x128xf32>
    %165 = arith.index_cast %132 : i32 to index
    %c0_46 = arith.constant 0 : index
    %166 = vector.load %arg1[%165, %c0_46] : memref<128x128xf32, #tpu.memory_space<vmem>>, vector<16x128xf32>
    %167 = arith.subf %164, %130 : vector<16x128xf32>
    %168 = arith.mulf %166, %167 : vector<16x128xf32>
    %169 = arith.addf %130, %168 : vector<16x128xf32>
    %c4_i32 = arith.constant 4 : i32
    %c16_i32_47 = arith.constant 16 : i32
    %170 = arith.muli %c4_i32, %c16_i32_47 : i32
    %171 = tpu.assume_multiple %170, 16 : i32
    %172 = arith.index_cast %171 : i32 to index
    %c0_48 = arith.constant 0 : index
    %173 = vector.load %arg19[%172, %c0_48] : memref<128x384xf32, #tpu.memory_space<vmem>>, vector<16x384xf32>
    %174 = arith.truncf %169 : vector<16x128xf32> to vector<16x128xbf16>
    %c0_49 = arith.constant 0 : index
    %c0_50 = arith.constant 0 : index
    %175 = vector.load %arg4[%c0_49, %c0_50] : memref<128x384xbf16, #tpu.memory_space<vmem>>, vector<128x384xbf16>
    %cst_51 = arith.constant dense<0.000000e+00> : vector<16x384xf32>
    %176 = tpu.matmul %174, %175, %cst_51 {dimension_numbers = #tpu.dot_dimension_numbers<[1], [0], [0], [1], [0, 0, 1, 1], [], []>} : vector<16x128xbf16>, vector<128x384xbf16>, vector<16x384xf32> -> vector<16x384xf32>
    %177 = arith.addf %176, %12 : vector<16x384xf32>
    %178 = vector.extract_strided_slice %173 {offsets = [0, 0], sizes = [16, 128], strides = [1, 1]} : vector<16x384xf32> to vector<16x128xf32>
    %179 = vector.extract_strided_slice %177 {offsets = [0, 0], sizes = [16, 128], strides = [1, 1]} : vector<16x384xf32> to vector<16x128xf32>
    %180 = arith.addf %178, %179 : vector<16x128xf32>
    %181 = arith.negf %180 : vector<16x128xf32>
    %182 = math.exp %181 : vector<16x128xf32>
    %cst_52 = arith.constant 1.000000e+00 : f32
    %183 = vector.broadcast %cst_52 : f32 to vector<16x128xf32>
    %184 = arith.addf %183, %182 : vector<16x128xf32>
    %185 = arith.divf %183, %184 : vector<16x128xf32>
    %186 = vector.extract_strided_slice %173 {offsets = [0, 128], sizes = [16, 128], strides = [1, 1]} : vector<16x384xf32> to vector<16x128xf32>
    %187 = vector.extract_strided_slice %177 {offsets = [0, 128], sizes = [16, 128], strides = [1, 1]} : vector<16x384xf32> to vector<16x128xf32>
    %188 = arith.addf %186, %187 : vector<16x128xf32>
    %189 = arith.negf %188 : vector<16x128xf32>
    %190 = math.exp %189 : vector<16x128xf32>
    %cst_53 = arith.constant 1.000000e+00 : f32
    %191 = vector.broadcast %cst_53 : f32 to vector<16x128xf32>
    %192 = arith.addf %191, %190 : vector<16x128xf32>
    %193 = arith.divf %191, %192 : vector<16x128xf32>
    %194 = vector.extract_strided_slice %173 {offsets = [0, 256], sizes = [16, 128], strides = [1, 1]} : vector<16x384xf32> to vector<16x128xf32>
    %195 = vector.extract_strided_slice %177 {offsets = [0, 256], sizes = [16, 128], strides = [1, 1]} : vector<16x384xf32> to vector<16x128xf32>
    %196 = arith.mulf %185, %195 : vector<16x128xf32>
    %197 = arith.addf %194, %196 : vector<16x128xf32>
    %198 = math.tanh %197 : vector<16x128xf32>
    %cst_54 = arith.constant 1.000000e+00 : f32
    %199 = vector.broadcast %cst_54 : f32 to vector<16x128xf32>
    %200 = arith.subf %199, %193 : vector<16x128xf32>
    %201 = arith.mulf %200, %198 : vector<16x128xf32>
    %202 = arith.mulf %193, %169 : vector<16x128xf32>
    %203 = arith.addf %201, %202 : vector<16x128xf32>
    %204 = arith.index_cast %171 : i32 to index
    %c0_55 = arith.constant 0 : index
    %205 = vector.load %arg1[%204, %c0_55] : memref<128x128xf32, #tpu.memory_space<vmem>>, vector<16x128xf32>
    %206 = arith.subf %203, %169 : vector<16x128xf32>
    %207 = arith.mulf %205, %206 : vector<16x128xf32>
    %208 = arith.addf %169, %207 : vector<16x128xf32>
    %c5_i32 = arith.constant 5 : i32
    %c16_i32_56 = arith.constant 16 : i32
    %209 = arith.muli %c5_i32, %c16_i32_56 : i32
    %210 = tpu.assume_multiple %209, 16 : i32
    %211 = arith.index_cast %210 : i32 to index
    %c0_57 = arith.constant 0 : index
    %212 = vector.load %arg19[%211, %c0_57] : memref<128x384xf32, #tpu.memory_space<vmem>>, vector<16x384xf32>
    %213 = arith.truncf %208 : vector<16x128xf32> to vector<16x128xbf16>
    %c0_58 = arith.constant 0 : index
    %c0_59 = arith.constant 0 : index
    %214 = vector.load %arg4[%c0_58, %c0_59] : memref<128x384xbf16, #tpu.memory_space<vmem>>, vector<128x384xbf16>
    %cst_60 = arith.constant dense<0.000000e+00> : vector<16x384xf32>
    %215 = tpu.matmul %213, %214, %cst_60 {dimension_numbers = #tpu.dot_dimension_numbers<[1], [0], [0], [1], [0, 0, 1, 1], [], []>} : vector<16x128xbf16>, vector<128x384xbf16>, vector<16x384xf32> -> vector<16x384xf32>
    %216 = arith.addf %215, %12 : vector<16x384xf32>
    %217 = vector.extract_strided_slice %212 {offsets = [0, 0], sizes = [16, 128], strides = [1, 1]} : vector<16x384xf32> to vector<16x128xf32>
    %218 = vector.extract_strided_slice %216 {offsets = [0, 0], sizes = [16, 128], strides = [1, 1]} : vector<16x384xf32> to vector<16x128xf32>
    %219 = arith.addf %217, %218 : vector<16x128xf32>
    %220 = arith.negf %219 : vector<16x128xf32>
    %221 = math.exp %220 : vector<16x128xf32>
    %cst_61 = arith.constant 1.000000e+00 : f32
    %222 = vector.broadcast %cst_61 : f32 to vector<16x128xf32>
    %223 = arith.addf %222, %221 : vector<16x128xf32>
    %224 = arith.divf %222, %223 : vector<16x128xf32>
    %225 = vector.extract_strided_slice %212 {offsets = [0, 128], sizes = [16, 128], strides = [1, 1]} : vector<16x384xf32> to vector<16x128xf32>
    %226 = vector.extract_strided_slice %216 {offsets = [0, 128], sizes = [16, 128], strides = [1, 1]} : vector<16x384xf32> to vector<16x128xf32>
    %227 = arith.addf %225, %226 : vector<16x128xf32>
    %228 = arith.negf %227 : vector<16x128xf32>
    %229 = math.exp %228 : vector<16x128xf32>
    %cst_62 = arith.constant 1.000000e+00 : f32
    %230 = vector.broadcast %cst_62 : f32 to vector<16x128xf32>
    %231 = arith.addf %230, %229 : vector<16x128xf32>
    %232 = arith.divf %230, %231 : vector<16x128xf32>
    %233 = vector.extract_strided_slice %212 {offsets = [0, 256], sizes = [16, 128], strides = [1, 1]} : vector<16x384xf32> to vector<16x128xf32>
    %234 = vector.extract_strided_slice %216 {offsets = [0, 256], sizes = [16, 128], strides = [1, 1]} : vector<16x384xf32> to vector<16x128xf32>
    %235 = arith.mulf %224, %234 : vector<16x128xf32>
    %236 = arith.addf %233, %235 : vector<16x128xf32>
    %237 = math.tanh %236 : vector<16x128xf32>
    %cst_63 = arith.constant 1.000000e+00 : f32
    %238 = vector.broadcast %cst_63 : f32 to vector<16x128xf32>
    %239 = arith.subf %238, %232 : vector<16x128xf32>
    %240 = arith.mulf %239, %237 : vector<16x128xf32>
    %241 = arith.mulf %232, %208 : vector<16x128xf32>
    %242 = arith.addf %240, %241 : vector<16x128xf32>
    %243 = arith.index_cast %210 : i32 to index
    %c0_64 = arith.constant 0 : index
    %244 = vector.load %arg1[%243, %c0_64] : memref<128x128xf32, #tpu.memory_space<vmem>>, vector<16x128xf32>
    %245 = arith.subf %242, %208 : vector<16x128xf32>
    %246 = arith.mulf %244, %245 : vector<16x128xf32>
    %247 = arith.addf %208, %246 : vector<16x128xf32>
    %c6_i32 = arith.constant 6 : i32
    %c16_i32_65 = arith.constant 16 : i32
    %248 = arith.muli %c6_i32, %c16_i32_65 : i32
    %249 = tpu.assume_multiple %248, 16 : i32
    %250 = arith.index_cast %249 : i32 to index
    %c0_66 = arith.constant 0 : index
    %251 = vector.load %arg19[%250, %c0_66] : memref<128x384xf32, #tpu.memory_space<vmem>>, vector<16x384xf32>
    %252 = arith.truncf %247 : vector<16x128xf32> to vector<16x128xbf16>
    %c0_67 = arith.constant 0 : index
    %c0_68 = arith.constant 0 : index
    %253 = vector.load %arg4[%c0_67, %c0_68] : memref<128x384xbf16, #tpu.memory_space<vmem>>, vector<128x384xbf16>
    %cst_69 = arith.constant dense<0.000000e+00> : vector<16x384xf32>
    %254 = tpu.matmul %252, %253, %cst_69 {dimension_numbers = #tpu.dot_dimension_numbers<[1], [0], [0], [1], [0, 0, 1, 1], [], []>} : vector<16x128xbf16>, vector<128x384xbf16>, vector<16x384xf32> -> vector<16x384xf32>
    %255 = arith.addf %254, %12 : vector<16x384xf32>
    %256 = vector.extract_strided_slice %251 {offsets = [0, 0], sizes = [16, 128], strides = [1, 1]} : vector<16x384xf32> to vector<16x128xf32>
    %257 = vector.extract_strided_slice %255 {offsets = [0, 0], sizes = [16, 128], strides = [1, 1]} : vector<16x384xf32> to vector<16x128xf32>
    %258 = arith.addf %256, %257 : vector<16x128xf32>
    %259 = arith.negf %258 : vector<16x128xf32>
    %260 = math.exp %259 : vector<16x128xf32>
    %cst_70 = arith.constant 1.000000e+00 : f32
    %261 = vector.broadcast %cst_70 : f32 to vector<16x128xf32>
    %262 = arith.addf %261, %260 : vector<16x128xf32>
    %263 = arith.divf %261, %262 : vector<16x128xf32>
    %264 = vector.extract_strided_slice %251 {offsets = [0, 128], sizes = [16, 128], strides = [1, 1]} : vector<16x384xf32> to vector<16x128xf32>
    %265 = vector.extract_strided_slice %255 {offsets = [0, 128], sizes = [16, 128], strides = [1, 1]} : vector<16x384xf32> to vector<16x128xf32>
    %266 = arith.addf %264, %265 : vector<16x128xf32>
    %267 = arith.negf %266 : vector<16x128xf32>
    %268 = math.exp %267 : vector<16x128xf32>
    %cst_71 = arith.constant 1.000000e+00 : f32
    %269 = vector.broadcast %cst_71 : f32 to vector<16x128xf32>
    %270 = arith.addf %269, %268 : vector<16x128xf32>
    %271 = arith.divf %269, %270 : vector<16x128xf32>
    %272 = vector.extract_strided_slice %251 {offsets = [0, 256], sizes = [16, 128], strides = [1, 1]} : vector<16x384xf32> to vector<16x128xf32>
    %273 = vector.extract_strided_slice %255 {offsets = [0, 256], sizes = [16, 128], strides = [1, 1]} : vector<16x384xf32> to vector<16x128xf32>
    %274 = arith.mulf %263, %273 : vector<16x128xf32>
    %275 = arith.addf %272, %274 : vector<16x128xf32>
    %276 = math.tanh %275 : vector<16x128xf32>
    %cst_72 = arith.constant 1.000000e+00 : f32
    %277 = vector.broadcast %cst_72 : f32 to vector<16x128xf32>
    %278 = arith.subf %277, %271 : vector<16x128xf32>
    %279 = arith.mulf %278, %276 : vector<16x128xf32>
    %280 = arith.mulf %271, %247 : vector<16x128xf32>
    %281 = arith.addf %279, %280 : vector<16x128xf32>
    %282 = arith.index_cast %249 : i32 to index
    %c0_73 = arith.constant 0 : index
    %283 = vector.load %arg1[%282, %c0_73] : memref<128x128xf32, #tpu.memory_space<vmem>>, vector<16x128xf32>
    %284 = arith.subf %281, %247 : vector<16x128xf32>
    %285 = arith.mulf %283, %284 : vector<16x128xf32>
    %286 = arith.addf %247, %285 : vector<16x128xf32>
    %c7_i32 = arith.constant 7 : i32
    %c16_i32_74 = arith.constant 16 : i32
    %287 = arith.muli %c7_i32, %c16_i32_74 : i32
    %288 = tpu.assume_multiple %287, 16 : i32
    %289 = arith.index_cast %288 : i32 to index
    %c0_75 = arith.constant 0 : index
    %290 = vector.load %arg19[%289, %c0_75] : memref<128x384xf32, #tpu.memory_space<vmem>>, vector<16x384xf32>
    %291 = arith.truncf %286 : vector<16x128xf32> to vector<16x128xbf16>
    %c0_76 = arith.constant 0 : index
    %c0_77 = arith.constant 0 : index
    %292 = vector.load %arg4[%c0_76, %c0_77] : memref<128x384xbf16, #tpu.memory_space<vmem>>, vector<128x384xbf16>
    %cst_78 = arith.constant dense<0.000000e+00> : vector<16x384xf32>
    %293 = tpu.matmul %291, %292, %cst_78 {dimension_numbers = #tpu.dot_dimension_numbers<[1], [0], [0], [1], [0, 0, 1, 1], [], []>} : vector<16x128xbf16>, vector<128x384xbf16>, vector<16x384xf32> -> vector<16x384xf32>
    %294 = arith.addf %293, %12 : vector<16x384xf32>
    %295 = vector.extract_strided_slice %290 {offsets = [0, 0], sizes = [16, 128], strides = [1, 1]} : vector<16x384xf32> to vector<16x128xf32>
    %296 = vector.extract_strided_slice %294 {offsets = [0, 0], sizes = [16, 128], strides = [1, 1]} : vector<16x384xf32> to vector<16x128xf32>
    %297 = arith.addf %295, %296 : vector<16x128xf32>
    %298 = arith.negf %297 : vector<16x128xf32>
    %299 = math.exp %298 : vector<16x128xf32>
    %cst_79 = arith.constant 1.000000e+00 : f32
    %300 = vector.broadcast %cst_79 : f32 to vector<16x128xf32>
    %301 = arith.addf %300, %299 : vector<16x128xf32>
    %302 = arith.divf %300, %301 : vector<16x128xf32>
    %303 = vector.extract_strided_slice %290 {offsets = [0, 128], sizes = [16, 128], strides = [1, 1]} : vector<16x384xf32> to vector<16x128xf32>
    %304 = vector.extract_strided_slice %294 {offsets = [0, 128], sizes = [16, 128], strides = [1, 1]} : vector<16x384xf32> to vector<16x128xf32>
    %305 = arith.addf %303, %304 : vector<16x128xf32>
    %306 = arith.negf %305 : vector<16x128xf32>
    %307 = math.exp %306 : vector<16x128xf32>
    %cst_80 = arith.constant 1.000000e+00 : f32
    %308 = vector.broadcast %cst_80 : f32 to vector<16x128xf32>
    %309 = arith.addf %308, %307 : vector<16x128xf32>
    %310 = arith.divf %308, %309 : vector<16x128xf32>
    %311 = vector.extract_strided_slice %290 {offsets = [0, 256], sizes = [16, 128], strides = [1, 1]} : vector<16x384xf32> to vector<16x128xf32>
    %312 = vector.extract_strided_slice %294 {offsets = [0, 256], sizes = [16, 128], strides = [1, 1]} : vector<16x384xf32> to vector<16x128xf32>
    %313 = arith.mulf %302, %312 : vector<16x128xf32>
    %314 = arith.addf %311, %313 : vector<16x128xf32>
    %315 = math.tanh %314 : vector<16x128xf32>
    %cst_81 = arith.constant 1.000000e+00 : f32
    %316 = vector.broadcast %cst_81 : f32 to vector<16x128xf32>
    %317 = arith.subf %316, %310 : vector<16x128xf32>
    %318 = arith.mulf %317, %315 : vector<16x128xf32>
    %319 = arith.mulf %310, %286 : vector<16x128xf32>
    %320 = arith.addf %318, %319 : vector<16x128xf32>
    %321 = arith.index_cast %288 : i32 to index
    %c0_82 = arith.constant 0 : index
    %322 = vector.load %arg1[%321, %c0_82] : memref<128x128xf32, #tpu.memory_space<vmem>>, vector<16x128xf32>
    %323 = arith.subf %320, %286 : vector<16x128xf32>
    %324 = arith.mulf %322, %323 : vector<16x128xf32>
    %325 = arith.addf %286, %324 : vector<16x128xf32>
    %c8_i32 = arith.constant 8 : i32
    %326 = arith.truncf %325 : vector<16x128xf32> to vector<16x128xbf16>
    %c0_83 = arith.constant 0 : index
    %c0_84 = arith.constant 0 : index
    %327 = vector.load %arg7[%c0_83, %c0_84] : memref<128x256xbf16, #tpu.memory_space<vmem>>, vector<128x256xbf16>
    %cst_85 = arith.constant dense<0.000000e+00> : vector<16x256xf32>
    %328 = tpu.matmul %326, %327, %cst_85 {dimension_numbers = #tpu.dot_dimension_numbers<[1], [0], [0], [1], [0, 0, 1, 1], [], []>} : vector<16x128xbf16>, vector<128x256xbf16>, vector<16x256xf32> -> vector<16x256xf32>
    %c0_86 = arith.constant 0 : index
    %c0_87 = arith.constant 0 : index
    %329 = vector.load %arg8[%c0_86, %c0_87] : memref<1x256xf32, #tpu.memory_space<vmem>>, vector<1x256xf32>
    %330 = vector.broadcast %329 : vector<1x256xf32> to vector<16x256xf32>
    %331 = arith.addf %328, %330 : vector<16x256xf32>
    %332 = vector.extract_strided_slice %331 {offsets = [0, 0], sizes = [16, 128], strides = [1, 1]} : vector<16x256xf32> to vector<16x128xf32>
    %333 = vector.extract_strided_slice %331 {offsets = [0, 128], sizes = [16, 128], strides = [1, 1]} : vector<16x256xf32> to vector<16x128xf32>
    %334 = math.exp %333 : vector<16x128xf32>
    %c0_88 = arith.constant 0 : index
    %c0_89 = arith.constant 0 : index
    %335 = vector.load %arg2[%c0_88, %c0_89] : memref<16x128xf32, #tpu.memory_space<vmem>>, vector<16x128xf32>
    %336 = arith.mulf %334, %335 : vector<16x128xf32>
    %337 = arith.addf %332, %336 : vector<16x128xf32>
    %c0_90 = arith.constant 0 : index
    %c0_91 = arith.constant 0 : index
    %338 = vector.load %arg17[%c0_90, %c0_91] : memref<16x128xf32, #tpu.memory_space<vmem>>, vector<16x128xf32>
    tpu.vector_store %arg17[%c0_90, %c0_91], %332 {strides = array<i32>} : memref<16x128xf32, #tpu.memory_space<vmem>>, vector<16x128xf32>,
    %c0_92 = arith.constant 0 : index
    %c0_93 = arith.constant 0 : index
    %339 = vector.load %arg18[%c0_92, %c0_93] : memref<16x128xf32, #tpu.memory_space<vmem>>, vector<16x128xf32>
    tpu.vector_store %arg18[%c0_92, %c0_93], %334 {strides = array<i32>} : memref<16x128xf32, #tpu.memory_space<vmem>>, vector<16x128xf32>,
    %c0_94 = arith.constant 0 : index
    %c0_95 = arith.constant 0 : index
    %340 = vector.load %arg16[%c0_94, %c0_95] : memref<16x128xf32, #tpu.memory_space<vmem>>, vector<16x128xf32>
    tpu.vector_store %arg16[%c0_94, %c0_95], %337 {strides = array<i32>} : memref<16x128xf32, #tpu.memory_space<vmem>>, vector<16x128xf32>,
    %341 = arith.truncf %337 : vector<16x128xf32> to vector<16x128xbf16>
    %c0_96 = arith.constant 0 : index
    %c0_97 = arith.constant 0 : index
    %342 = vector.load %arg9[%c0_96, %c0_97] : memref<128x384xbf16, #tpu.memory_space<vmem>>, vector<128x384xbf16>
    %cst_98 = arith.constant dense<0.000000e+00> : vector<16x384xf32>
    %343 = tpu.matmul %341, %342, %cst_98 {dimension_numbers = #tpu.dot_dimension_numbers<[1], [0], [0], [1], [0, 0, 1, 1], [], []>} : vector<16x128xbf16>, vector<128x384xbf16>, vector<16x384xf32> -> vector<16x384xf32>
    %c0_99 = arith.constant 0 : index
    %c0_100 = arith.constant 0 : index
    %344 = vector.load %arg11[%c0_99, %c0_100] : memref<1x384xf32, #tpu.memory_space<vmem>>, vector<1x384xf32>
    %345 = vector.broadcast %344 : vector<1x384xf32> to vector<16x384xf32>
    %346 = arith.addf %343, %345 : vector<16x384xf32>
    %c0_101 = arith.constant 0 : index
    %c0_102 = arith.constant 0 : index
    %347 = vector.load %arg12[%c0_101, %c0_102] : memref<1x384xf32, #tpu.memory_space<vmem>>, vector<1x384xf32>
    %348 = vector.shape_cast %347 : vector<1x384xf32> to vector<1x384xf32>
    %349 = vector.broadcast %348 : vector<1x384xf32> to vector<16x384xf32>
    %c0_i32_103 = arith.constant 0 : i32
    %c16_i32_104 = arith.constant 16 : i32
    %350 = arith.muli %c0_i32_103, %c16_i32_104 : i32
    %351 = tpu.assume_multiple %350, 16 : i32
    %352 = arith.index_cast %351 : i32 to index
    %c0_105 = arith.constant 0 : index
    %353 = vector.load %arg20[%352, %c0_105] : memref<128x384xf32, #tpu.memory_space<vmem>>, vector<16x384xf32>
    %354 = arith.addf %353, %346 : vector<16x384xf32>
    %355 = arith.truncf %337 : vector<16x128xf32> to vector<16x128xbf16>
    %c0_106 = arith.constant 0 : index
    %c0_107 = arith.constant 0 : index
    %356 = vector.load %arg10[%c0_106, %c0_107] : memref<128x384xbf16, #tpu.memory_space<vmem>>, vector<128x384xbf16>
    %cst_108 = arith.constant dense<0.000000e+00> : vector<16x384xf32>
    %357 = tpu.matmul %355, %356, %cst_108 {dimension_numbers = #tpu.dot_dimension_numbers<[1], [0], [0], [1], [0, 0, 1, 1], [], []>} : vector<16x128xbf16>, vector<128x384xbf16>, vector<16x384xf32> -> vector<16x384xf32>
    %358 = arith.addf %357, %349 : vector<16x384xf32>
    %359 = vector.extract_strided_slice %354 {offsets = [0, 0], sizes = [16, 128], strides = [1, 1]} : vector<16x384xf32> to vector<16x128xf32>
    %360 = vector.extract_strided_slice %358 {offsets = [0, 0], sizes = [16, 128], strides = [1, 1]} : vector<16x384xf32> to vector<16x128xf32>
    %361 = arith.addf %359, %360 : vector<16x128xf32>
    %362 = arith.negf %361 : vector<16x128xf32>
    %363 = math.exp %362 : vector<16x128xf32>
    %cst_109 = arith.constant 1.000000e+00 : f32
    %364 = vector.broadcast %cst_109 : f32 to vector<16x128xf32>
    %365 = arith.addf %364, %363 : vector<16x128xf32>
    %366 = arith.divf %364, %365 : vector<16x128xf32>
    %367 = vector.extract_strided_slice %354 {offsets = [0, 128], sizes = [16, 128], strides = [1, 1]} : vector<16x384xf32> to vector<16x128xf32>
    %368 = vector.extract_strided_slice %358 {offsets = [0, 128], sizes = [16, 128], strides = [1, 1]} : vector<16x384xf32> to vector<16x128xf32>
    %369 = arith.addf %367, %368 : vector<16x128xf32>
    %370 = arith.negf %369 : vector<16x128xf32>
    %371 = math.exp %370 : vector<16x128xf32>
    %cst_110 = arith.constant 1.000000e+00 : f32
    %372 = vector.broadcast %cst_110 : f32 to vector<16x128xf32>
    %373 = arith.addf %372, %371 : vector<16x128xf32>
    %374 = arith.divf %372, %373 : vector<16x128xf32>
    %375 = vector.extract_strided_slice %354 {offsets = [0, 256], sizes = [16, 128], strides = [1, 1]} : vector<16x384xf32> to vector<16x128xf32>
    %376 = vector.extract_strided_slice %358 {offsets = [0, 256], sizes = [16, 128], strides = [1, 1]} : vector<16x384xf32> to vector<16x128xf32>
    %377 = arith.mulf %366, %376 : vector<16x128xf32>
    %378 = arith.addf %375, %377 : vector<16x128xf32>
    %379 = math.tanh %378 : vector<16x128xf32>
    %cst_111 = arith.constant 1.000000e+00 : f32
    %380 = vector.broadcast %cst_111 : f32 to vector<16x128xf32>
    %381 = arith.subf %380, %374 : vector<16x128xf32>
    %382 = arith.mulf %381, %379 : vector<16x128xf32>
    %383 = arith.mulf %374, %337 : vector<16x128xf32>
    %384 = arith.addf %382, %383 : vector<16x128xf32>
    %385 = arith.index_cast %351 : i32 to index
    %c0_112 = arith.constant 0 : index
    %386 = vector.load %arg21[%385, %c0_112] : memref<128x128xf32, #tpu.memory_space<vmem>>, vector<16x128xf32>
    tpu.vector_store %arg21[%385, %c0_112], %384 {strides = array<i32>} : memref<128x128xf32, #tpu.memory_space<vmem>>, vector<16x128xf32>,
    %c1_i32_113 = arith.constant 1 : i32
    %c16_i32_114 = arith.constant 16 : i32
    %387 = arith.muli %c1_i32_113, %c16_i32_114 : i32
    %388 = tpu.assume_multiple %387, 16 : i32
    %389 = arith.index_cast %388 : i32 to index
    %c0_115 = arith.constant 0 : index
    %390 = vector.load %arg20[%389, %c0_115] : memref<128x384xf32, #tpu.memory_space<vmem>>, vector<16x384xf32>
    %391 = arith.addf %390, %346 : vector<16x384xf32>
    %392 = arith.truncf %384 : vector<16x128xf32> to vector<16x128xbf16>
    %c0_116 = arith.constant 0 : index
    %c0_117 = arith.constant 0 : index
    %393 = vector.load %arg10[%c0_116, %c0_117] : memref<128x384xbf16, #tpu.memory_space<vmem>>, vector<128x384xbf16>
    %cst_118 = arith.constant dense<0.000000e+00> : vector<16x384xf32>
    %394 = tpu.matmul %392, %393, %cst_118 {dimension_numbers = #tpu.dot_dimension_numbers<[1], [0], [0], [1], [0, 0, 1, 1], [], []>} : vector<16x128xbf16>, vector<128x384xbf16>, vector<16x384xf32> -> vector<16x384xf32>
    %395 = arith.addf %394, %349 : vector<16x384xf32>
    %396 = vector.extract_strided_slice %391 {offsets = [0, 0], sizes = [16, 128], strides = [1, 1]} : vector<16x384xf32> to vector<16x128xf32>
    %397 = vector.extract_strided_slice %395 {offsets = [0, 0], sizes = [16, 128], strides = [1, 1]} : vector<16x384xf32> to vector<16x128xf32>
    %398 = arith.addf %396, %397 : vector<16x128xf32>
    %399 = arith.negf %398 : vector<16x128xf32>
    %400 = math.exp %399 : vector<16x128xf32>
    %cst_119 = arith.constant 1.000000e+00 : f32
    %401 = vector.broadcast %cst_119 : f32 to vector<16x128xf32>
    %402 = arith.addf %401, %400 : vector<16x128xf32>
    %403 = arith.divf %401, %402 : vector<16x128xf32>
    %404 = vector.extract_strided_slice %391 {offsets = [0, 128], sizes = [16, 128], strides = [1, 1]} : vector<16x384xf32> to vector<16x128xf32>
    %405 = vector.extract_strided_slice %395 {offsets = [0, 128], sizes = [16, 128], strides = [1, 1]} : vector<16x384xf32> to vector<16x128xf32>
    %406 = arith.addf %404, %405 : vector<16x128xf32>
    %407 = arith.negf %406 : vector<16x128xf32>
    %408 = math.exp %407 : vector<16x128xf32>
    %cst_120 = arith.constant 1.000000e+00 : f32
    %409 = vector.broadcast %cst_120 : f32 to vector<16x128xf32>
    %410 = arith.addf %409, %408 : vector<16x128xf32>
    %411 = arith.divf %409, %410 : vector<16x128xf32>
    %412 = vector.extract_strided_slice %391 {offsets = [0, 256], sizes = [16, 128], strides = [1, 1]} : vector<16x384xf32> to vector<16x128xf32>
    %413 = vector.extract_strided_slice %395 {offsets = [0, 256], sizes = [16, 128], strides = [1, 1]} : vector<16x384xf32> to vector<16x128xf32>
    %414 = arith.mulf %403, %413 : vector<16x128xf32>
    %415 = arith.addf %412, %414 : vector<16x128xf32>
    %416 = math.tanh %415 : vector<16x128xf32>
    %cst_121 = arith.constant 1.000000e+00 : f32
    %417 = vector.broadcast %cst_121 : f32 to vector<16x128xf32>
    %418 = arith.subf %417, %411 : vector<16x128xf32>
    %419 = arith.mulf %418, %416 : vector<16x128xf32>
    %420 = arith.mulf %411, %384 : vector<16x128xf32>
    %421 = arith.addf %419, %420 : vector<16x128xf32>
    %422 = arith.index_cast %388 : i32 to index
    %c0_122 = arith.constant 0 : index
    %423 = vector.load %arg21[%422, %c0_122] : memref<128x128xf32, #tpu.memory_space<vmem>>, vector<16x128xf32>
    tpu.vector_store %arg21[%422, %c0_122], %421 {strides = array<i32>} : memref<128x128xf32, #tpu.memory_space<vmem>>, vector<16x128xf32>,
    %c2_i32_123 = arith.constant 2 : i32
    %c16_i32_124 = arith.constant 16 : i32
    %424 = arith.muli %c2_i32_123, %c16_i32_124 : i32
    %425 = tpu.assume_multiple %424, 16 : i32
    %426 = arith.index_cast %425 : i32 to index
    %c0_125 = arith.constant 0 : index
    %427 = vector.load %arg20[%426, %c0_125] : memref<128x384xf32, #tpu.memory_space<vmem>>, vector<16x384xf32>
    %428 = arith.addf %427, %346 : vector<16x384xf32>
    %429 = arith.truncf %421 : vector<16x128xf32> to vector<16x128xbf16>
    %c0_126 = arith.constant 0 : index
    %c0_127 = arith.constant 0 : index
    %430 = vector.load %arg10[%c0_126, %c0_127] : memref<128x384xbf16, #tpu.memory_space<vmem>>, vector<128x384xbf16>
    %cst_128 = arith.constant dense<0.000000e+00> : vector<16x384xf32>
    %431 = tpu.matmul %429, %430, %cst_128 {dimension_numbers = #tpu.dot_dimension_numbers<[1], [0], [0], [1], [0, 0, 1, 1], [], []>} : vector<16x128xbf16>, vector<128x384xbf16>, vector<16x384xf32> -> vector<16x384xf32>
    %432 = arith.addf %431, %349 : vector<16x384xf32>
    %433 = vector.extract_strided_slice %428 {offsets = [0, 0], sizes = [16, 128], strides = [1, 1]} : vector<16x384xf32> to vector<16x128xf32>
    %434 = vector.extract_strided_slice %432 {offsets = [0, 0], sizes = [16, 128], strides = [1, 1]} : vector<16x384xf32> to vector<16x128xf32>
    %435 = arith.addf %433, %434 : vector<16x128xf32>
    %436 = arith.negf %435 : vector<16x128xf32>
    %437 = math.exp %436 : vector<16x128xf32>
    %cst_129 = arith.constant 1.000000e+00 : f32
    %438 = vector.broadcast %cst_129 : f32 to vector<16x128xf32>
    %439 = arith.addf %438, %437 : vector<16x128xf32>
    %440 = arith.divf %438, %439 : vector<16x128xf32>
    %441 = vector.extract_strided_slice %428 {offsets = [0, 128], sizes = [16, 128], strides = [1, 1]} : vector<16x384xf32> to vector<16x128xf32>
    %442 = vector.extract_strided_slice %432 {offsets = [0, 128], sizes = [16, 128], strides = [1, 1]} : vector<16x384xf32> to vector<16x128xf32>
    %443 = arith.addf %441, %442 : vector<16x128xf32>
    %444 = arith.negf %443 : vector<16x128xf32>
    %445 = math.exp %444 : vector<16x128xf32>
    %cst_130 = arith.constant 1.000000e+00 : f32
    %446 = vector.broadcast %cst_130 : f32 to vector<16x128xf32>
    %447 = arith.addf %446, %445 : vector<16x128xf32>
    %448 = arith.divf %446, %447 : vector<16x128xf32>
    %449 = vector.extract_strided_slice %428 {offsets = [0, 256], sizes = [16, 128], strides = [1, 1]} : vector<16x384xf32> to vector<16x128xf32>
    %450 = vector.extract_strided_slice %432 {offsets = [0, 256], sizes = [16, 128], strides = [1, 1]} : vector<16x384xf32> to vector<16x128xf32>
    %451 = arith.mulf %440, %450 : vector<16x128xf32>
    %452 = arith.addf %449, %451 : vector<16x128xf32>
    %453 = math.tanh %452 : vector<16x128xf32>
    %cst_131 = arith.constant 1.000000e+00 : f32
    %454 = vector.broadcast %cst_131 : f32 to vector<16x128xf32>
    %455 = arith.subf %454, %448 : vector<16x128xf32>
    %456 = arith.mulf %455, %453 : vector<16x128xf32>
    %457 = arith.mulf %448, %421 : vector<16x128xf32>
    %458 = arith.addf %456, %457 : vector<16x128xf32>
    %459 = arith.index_cast %425 : i32 to index
    %c0_132 = arith.constant 0 : index
    %460 = vector.load %arg21[%459, %c0_132] : memref<128x128xf32, #tpu.memory_space<vmem>>, vector<16x128xf32>
    tpu.vector_store %arg21[%459, %c0_132], %458 {strides = array<i32>} : memref<128x128xf32, #tpu.memory_space<vmem>>, vector<16x128xf32>,
    %c3_i32_133 = arith.constant 3 : i32
    %c16_i32_134 = arith.constant 16 : i32
    %461 = arith.muli %c3_i32_133, %c16_i32_134 : i32
    %462 = tpu.assume_multiple %461, 16 : i32
    %463 = arith.index_cast %462 : i32 to index
    %c0_135 = arith.constant 0 : index
    %464 = vector.load %arg20[%463, %c0_135] : memref<128x384xf32, #tpu.memory_space<vmem>>, vector<16x384xf32>
    %465 = arith.addf %464, %346 : vector<16x384xf32>
    %466 = arith.truncf %458 : vector<16x128xf32> to vector<16x128xbf16>
    %c0_136 = arith.constant 0 : index
    %c0_137 = arith.constant 0 : index
    %467 = vector.load %arg10[%c0_136, %c0_137] : memref<128x384xbf16, #tpu.memory_space<vmem>>, vector<128x384xbf16>
    %cst_138 = arith.constant dense<0.000000e+00> : vector<16x384xf32>
    %468 = tpu.matmul %466, %467, %cst_138 {dimension_numbers = #tpu.dot_dimension_numbers<[1], [0], [0], [1], [0, 0, 1, 1], [], []>} : vector<16x128xbf16>, vector<128x384xbf16>, vector<16x384xf32> -> vector<16x384xf32>
    %469 = arith.addf %468, %349 : vector<16x384xf32>
    %470 = vector.extract_strided_slice %465 {offsets = [0, 0], sizes = [16, 128], strides = [1, 1]} : vector<16x384xf32> to vector<16x128xf32>
    %471 = vector.extract_strided_slice %469 {offsets = [0, 0], sizes = [16, 128], strides = [1, 1]} : vector<16x384xf32> to vector<16x128xf32>
    %472 = arith.addf %470, %471 : vector<16x128xf32>
    %473 = arith.negf %472 : vector<16x128xf32>
    %474 = math.exp %473 : vector<16x128xf32>
    %cst_139 = arith.constant 1.000000e+00 : f32
    %475 = vector.broadcast %cst_139 : f32 to vector<16x128xf32>
    %476 = arith.addf %475, %474 : vector<16x128xf32>
    %477 = arith.divf %475, %476 : vector<16x128xf32>
    %478 = vector.extract_strided_slice %465 {offsets = [0, 128], sizes = [16, 128], strides = [1, 1]} : vector<16x384xf32> to vector<16x128xf32>
    %479 = vector.extract_strided_slice %469 {offsets = [0, 128], sizes = [16, 128], strides = [1, 1]} : vector<16x384xf32> to vector<16x128xf32>
    %480 = arith.addf %478, %479 : vector<16x128xf32>
    %481 = arith.negf %480 : vector<16x128xf32>
    %482 = math.exp %481 : vector<16x128xf32>
    %cst_140 = arith.constant 1.000000e+00 : f32
    %483 = vector.broadcast %cst_140 : f32 to vector<16x128xf32>
    %484 = arith.addf %483, %482 : vector<16x128xf32>
    %485 = arith.divf %483, %484 : vector<16x128xf32>
    %486 = vector.extract_strided_slice %465 {offsets = [0, 256], sizes = [16, 128], strides = [1, 1]} : vector<16x384xf32> to vector<16x128xf32>
    %487 = vector.extract_strided_slice %469 {offsets = [0, 256], sizes = [16, 128], strides = [1, 1]} : vector<16x384xf32> to vector<16x128xf32>
    %488 = arith.mulf %477, %487 : vector<16x128xf32>
    %489 = arith.addf %486, %488 : vector<16x128xf32>
    %490 = math.tanh %489 : vector<16x128xf32>
    %cst_141 = arith.constant 1.000000e+00 : f32
    %491 = vector.broadcast %cst_141 : f32 to vector<16x128xf32>
    %492 = arith.subf %491, %485 : vector<16x128xf32>
    %493 = arith.mulf %492, %490 : vector<16x128xf32>
    %494 = arith.mulf %485, %458 : vector<16x128xf32>
    %495 = arith.addf %493, %494 : vector<16x128xf32>
    %496 = arith.index_cast %462 : i32 to index
    %c0_142 = arith.constant 0 : index
    %497 = vector.load %arg21[%496, %c0_142] : memref<128x128xf32, #tpu.memory_space<vmem>>, vector<16x128xf32>
    tpu.vector_store %arg21[%496, %c0_142], %495 {strides = array<i32>} : memref<128x128xf32, #tpu.memory_space<vmem>>, vector<16x128xf32>,
    %c4_i32_143 = arith.constant 4 : i32
    %c16_i32_144 = arith.constant 16 : i32
    %498 = arith.muli %c4_i32_143, %c16_i32_144 : i32
    %499 = tpu.assume_multiple %498, 16 : i32
    %500 = arith.index_cast %499 : i32 to index
    %c0_145 = arith.constant 0 : index
    %501 = vector.load %arg20[%500, %c0_145] : memref<128x384xf32, #tpu.memory_space<vmem>>, vector<16x384xf32>
    %502 = arith.addf %501, %346 : vector<16x384xf32>
    %503 = arith.truncf %495 : vector<16x128xf32> to vector<16x128xbf16>
    %c0_146 = arith.constant 0 : index
    %c0_147 = arith.constant 0 : index
    %504 = vector.load %arg10[%c0_146, %c0_147] : memref<128x384xbf16, #tpu.memory_space<vmem>>, vector<128x384xbf16>
    %cst_148 = arith.constant dense<0.000000e+00> : vector<16x384xf32>
    %505 = tpu.matmul %503, %504, %cst_148 {dimension_numbers = #tpu.dot_dimension_numbers<[1], [0], [0], [1], [0, 0, 1, 1], [], []>} : vector<16x128xbf16>, vector<128x384xbf16>, vector<16x384xf32> -> vector<16x384xf32>
    %506 = arith.addf %505, %349 : vector<16x384xf32>
    %507 = vector.extract_strided_slice %502 {offsets = [0, 0], sizes = [16, 128], strides = [1, 1]} : vector<16x384xf32> to vector<16x128xf32>
    %508 = vector.extract_strided_slice %506 {offsets = [0, 0], sizes = [16, 128], strides = [1, 1]} : vector<16x384xf32> to vector<16x128xf32>
    %509 = arith.addf %507, %508 : vector<16x128xf32>
    %510 = arith.negf %509 : vector<16x128xf32>
    %511 = math.exp %510 : vector<16x128xf32>
    %cst_149 = arith.constant 1.000000e+00 : f32
    %512 = vector.broadcast %cst_149 : f32 to vector<16x128xf32>
    %513 = arith.addf %512, %511 : vector<16x128xf32>
    %514 = arith.divf %512, %513 : vector<16x128xf32>
    %515 = vector.extract_strided_slice %502 {offsets = [0, 128], sizes = [16, 128], strides = [1, 1]} : vector<16x384xf32> to vector<16x128xf32>
    %516 = vector.extract_strided_slice %506 {offsets = [0, 128], sizes = [16, 128], strides = [1, 1]} : vector<16x384xf32> to vector<16x128xf32>
    %517 = arith.addf %515, %516 : vector<16x128xf32>
    %518 = arith.negf %517 : vector<16x128xf32>
    %519 = math.exp %518 : vector<16x128xf32>
    %cst_150 = arith.constant 1.000000e+00 : f32
    %520 = vector.broadcast %cst_150 : f32 to vector<16x128xf32>
    %521 = arith.addf %520, %519 : vector<16x128xf32>
    %522 = arith.divf %520, %521 : vector<16x128xf32>
    %523 = vector.extract_strided_slice %502 {offsets = [0, 256], sizes = [16, 128], strides = [1, 1]} : vector<16x384xf32> to vector<16x128xf32>
    %524 = vector.extract_strided_slice %506 {offsets = [0, 256], sizes = [16, 128], strides = [1, 1]} : vector<16x384xf32> to vector<16x128xf32>
    %525 = arith.mulf %514, %524 : vector<16x128xf32>
    %526 = arith.addf %523, %525 : vector<16x128xf32>
    %527 = math.tanh %526 : vector<16x128xf32>
    %cst_151 = arith.constant 1.000000e+00 : f32
    %528 = vector.broadcast %cst_151 : f32 to vector<16x128xf32>
    %529 = arith.subf %528, %522 : vector<16x128xf32>
    %530 = arith.mulf %529, %527 : vector<16x128xf32>
    %531 = arith.mulf %522, %495 : vector<16x128xf32>
    %532 = arith.addf %530, %531 : vector<16x128xf32>
    %533 = arith.index_cast %499 : i32 to index
    %c0_152 = arith.constant 0 : index
    %534 = vector.load %arg21[%533, %c0_152] : memref<128x128xf32, #tpu.memory_space<vmem>>, vector<16x128xf32>
    tpu.vector_store %arg21[%533, %c0_152], %532 {strides = array<i32>} : memref<128x128xf32, #tpu.memory_space<vmem>>, vector<16x128xf32>,
    %c5_i32_153 = arith.constant 5 : i32
    %c16_i32_154 = arith.constant 16 : i32
    %535 = arith.muli %c5_i32_153, %c16_i32_154 : i32
    %536 = tpu.assume_multiple %535, 16 : i32
    %537 = arith.index_cast %536 : i32 to index
    %c0_155 = arith.constant 0 : index
    %538 = vector.load %arg20[%537, %c0_155] : memref<128x384xf32, #tpu.memory_space<vmem>>, vector<16x384xf32>
    %539 = arith.addf %538, %346 : vector<16x384xf32>
    %540 = arith.truncf %532 : vector<16x128xf32> to vector<16x128xbf16>
    %c0_156 = arith.constant 0 : index
    %c0_157 = arith.constant 0 : index
    %541 = vector.load %arg10[%c0_156, %c0_157] : memref<128x384xbf16, #tpu.memory_space<vmem>>, vector<128x384xbf16>
    %cst_158 = arith.constant dense<0.000000e+00> : vector<16x384xf32>
    %542 = tpu.matmul %540, %541, %cst_158 {dimension_numbers = #tpu.dot_dimension_numbers<[1], [0], [0], [1], [0, 0, 1, 1], [], []>} : vector<16x128xbf16>, vector<128x384xbf16>, vector<16x384xf32> -> vector<16x384xf32>
    %543 = arith.addf %542, %349 : vector<16x384xf32>
    %544 = vector.extract_strided_slice %539 {offsets = [0, 0], sizes = [16, 128], strides = [1, 1]} : vector<16x384xf32> to vector<16x128xf32>
    %545 = vector.extract_strided_slice %543 {offsets = [0, 0], sizes = [16, 128], strides = [1, 1]} : vector<16x384xf32> to vector<16x128xf32>
    %546 = arith.addf %544, %545 : vector<16x128xf32>
    %547 = arith.negf %546 : vector<16x128xf32>
    %548 = math.exp %547 : vector<16x128xf32>
    %cst_159 = arith.constant 1.000000e+00 : f32
    %549 = vector.broadcast %cst_159 : f32 to vector<16x128xf32>
    %550 = arith.addf %549, %548 : vector<16x128xf32>
    %551 = arith.divf %549, %550 : vector<16x128xf32>
    %552 = vector.extract_strided_slice %539 {offsets = [0, 128], sizes = [16, 128], strides = [1, 1]} : vector<16x384xf32> to vector<16x128xf32>
    %553 = vector.extract_strided_slice %543 {offsets = [0, 128], sizes = [16, 128], strides = [1, 1]} : vector<16x384xf32> to vector<16x128xf32>
    %554 = arith.addf %552, %553 : vector<16x128xf32>
    %555 = arith.negf %554 : vector<16x128xf32>
    %556 = math.exp %555 : vector<16x128xf32>
    %cst_160 = arith.constant 1.000000e+00 : f32
    %557 = vector.broadcast %cst_160 : f32 to vector<16x128xf32>
    %558 = arith.addf %557, %556 : vector<16x128xf32>
    %559 = arith.divf %557, %558 : vector<16x128xf32>
    %560 = vector.extract_strided_slice %539 {offsets = [0, 256], sizes = [16, 128], strides = [1, 1]} : vector<16x384xf32> to vector<16x128xf32>
    %561 = vector.extract_strided_slice %543 {offsets = [0, 256], sizes = [16, 128], strides = [1, 1]} : vector<16x384xf32> to vector<16x128xf32>
    %562 = arith.mulf %551, %561 : vector<16x128xf32>
    %563 = arith.addf %560, %562 : vector<16x128xf32>
    %564 = math.tanh %563 : vector<16x128xf32>
    %cst_161 = arith.constant 1.000000e+00 : f32
    %565 = vector.broadcast %cst_161 : f32 to vector<16x128xf32>
    %566 = arith.subf %565, %559 : vector<16x128xf32>
    %567 = arith.mulf %566, %564 : vector<16x128xf32>
    %568 = arith.mulf %559, %532 : vector<16x128xf32>
    %569 = arith.addf %567, %568 : vector<16x128xf32>
    %570 = arith.index_cast %536 : i32 to index
    %c0_162 = arith.constant 0 : index
    %571 = vector.load %arg21[%570, %c0_162] : memref<128x128xf32, #tpu.memory_space<vmem>>, vector<16x128xf32>
    tpu.vector_store %arg21[%570, %c0_162], %569 {strides = array<i32>} : memref<128x128xf32, #tpu.memory_space<vmem>>, vector<16x128xf32>,
    %c6_i32_163 = arith.constant 6 : i32
    %c16_i32_164 = arith.constant 16 : i32
    %572 = arith.muli %c6_i32_163, %c16_i32_164 : i32
    %573 = tpu.assume_multiple %572, 16 : i32
    %574 = arith.index_cast %573 : i32 to index
    %c0_165 = arith.constant 0 : index
    %575 = vector.load %arg20[%574, %c0_165] : memref<128x384xf32, #tpu.memory_space<vmem>>, vector<16x384xf32>
    %576 = arith.addf %575, %346 : vector<16x384xf32>
    %577 = arith.truncf %569 : vector<16x128xf32> to vector<16x128xbf16>
    %c0_166 = arith.constant 0 : index
    %c0_167 = arith.constant 0 : index
    %578 = vector.load %arg10[%c0_166, %c0_167] : memref<128x384xbf16, #tpu.memory_space<vmem>>, vector<128x384xbf16>
    %cst_168 = arith.constant dense<0.000000e+00> : vector<16x384xf32>
    %579 = tpu.matmul %577, %578, %cst_168 {dimension_numbers = #tpu.dot_dimension_numbers<[1], [0], [0], [1], [0, 0, 1, 1], [], []>} : vector<16x128xbf16>, vector<128x384xbf16>, vector<16x384xf32> -> vector<16x384xf32>
    %580 = arith.addf %579, %349 : vector<16x384xf32>
    %581 = vector.extract_strided_slice %576 {offsets = [0, 0], sizes = [16, 128], strides = [1, 1]} : vector<16x384xf32> to vector<16x128xf32>
    %582 = vector.extract_strided_slice %580 {offsets = [0, 0], sizes = [16, 128], strides = [1, 1]} : vector<16x384xf32> to vector<16x128xf32>
    %583 = arith.addf %581, %582 : vector<16x128xf32>
    %584 = arith.negf %583 : vector<16x128xf32>
    %585 = math.exp %584 : vector<16x128xf32>
    %cst_169 = arith.constant 1.000000e+00 : f32
    %586 = vector.broadcast %cst_169 : f32 to vector<16x128xf32>
    %587 = arith.addf %586, %585 : vector<16x128xf32>
    %588 = arith.divf %586, %587 : vector<16x128xf32>
    %589 = vector.extract_strided_slice %576 {offsets = [0, 128], sizes = [16, 128], strides = [1, 1]} : vector<16x384xf32> to vector<16x128xf32>
    %590 = vector.extract_strided_slice %580 {offsets = [0, 128], sizes = [16, 128], strides = [1, 1]} : vector<16x384xf32> to vector<16x128xf32>
    %591 = arith.addf %589, %590 : vector<16x128xf32>
    %592 = arith.negf %591 : vector<16x128xf32>
    %593 = math.exp %592 : vector<16x128xf32>
    %cst_170 = arith.constant 1.000000e+00 : f32
    %594 = vector.broadcast %cst_170 : f32 to vector<16x128xf32>
    %595 = arith.addf %594, %593 : vector<16x128xf32>
    %596 = arith.divf %594, %595 : vector<16x128xf32>
    %597 = vector.extract_strided_slice %576 {offsets = [0, 256], sizes = [16, 128], strides = [1, 1]} : vector<16x384xf32> to vector<16x128xf32>
    %598 = vector.extract_strided_slice %580 {offsets = [0, 256], sizes = [16, 128], strides = [1, 1]} : vector<16x384xf32> to vector<16x128xf32>
    %599 = arith.mulf %588, %598 : vector<16x128xf32>
    %600 = arith.addf %597, %599 : vector<16x128xf32>
    %601 = math.tanh %600 : vector<16x128xf32>
    %cst_171 = arith.constant 1.000000e+00 : f32
    %602 = vector.broadcast %cst_171 : f32 to vector<16x128xf32>
    %603 = arith.subf %602, %596 : vector<16x128xf32>
    %604 = arith.mulf %603, %601 : vector<16x128xf32>
    %605 = arith.mulf %596, %569 : vector<16x128xf32>
    %606 = arith.addf %604, %605 : vector<16x128xf32>
    %607 = arith.index_cast %573 : i32 to index
    %c0_172 = arith.constant 0 : index
    %608 = vector.load %arg21[%607, %c0_172] : memref<128x128xf32, #tpu.memory_space<vmem>>, vector<16x128xf32>
    tpu.vector_store %arg21[%607, %c0_172], %606 {strides = array<i32>} : memref<128x128xf32, #tpu.memory_space<vmem>>, vector<16x128xf32>,
    %c7_i32_173 = arith.constant 7 : i32
    %c16_i32_174 = arith.constant 16 : i32
    %609 = arith.muli %c7_i32_173, %c16_i32_174 : i32
    %610 = tpu.assume_multiple %609, 16 : i32
    %611 = arith.index_cast %610 : i32 to index
    %c0_175 = arith.constant 0 : index
    %612 = vector.load %arg20[%611, %c0_175] : memref<128x384xf32, #tpu.memory_space<vmem>>, vector<16x384xf32>
    %613 = arith.addf %612, %346 : vector<16x384xf32>
    %614 = arith.truncf %606 : vector<16x128xf32> to vector<16x128xbf16>
    %c0_176 = arith.constant 0 : index
    %c0_177 = arith.constant 0 : index
    %615 = vector.load %arg10[%c0_176, %c0_177] : memref<128x384xbf16, #tpu.memory_space<vmem>>, vector<128x384xbf16>
    %cst_178 = arith.constant dense<0.000000e+00> : vector<16x384xf32>
    %616 = tpu.matmul %614, %615, %cst_178 {dimension_numbers = #tpu.dot_dimension_numbers<[1], [0], [0], [1], [0, 0, 1, 1], [], []>} : vector<16x128xbf16>, vector<128x384xbf16>, vector<16x384xf32> -> vector<16x384xf32>
    %617 = arith.addf %616, %349 : vector<16x384xf32>
    %618 = vector.extract_strided_slice %613 {offsets = [0, 0], sizes = [16, 128], strides = [1, 1]} : vector<16x384xf32> to vector<16x128xf32>
    %619 = vector.extract_strided_slice %617 {offsets = [0, 0], sizes = [16, 128], strides = [1, 1]} : vector<16x384xf32> to vector<16x128xf32>
    %620 = arith.addf %618, %619 : vector<16x128xf32>
    %621 = arith.negf %620 : vector<16x128xf32>
    %622 = math.exp %621 : vector<16x128xf32>
    %cst_179 = arith.constant 1.000000e+00 : f32
    %623 = vector.broadcast %cst_179 : f32 to vector<16x128xf32>
    %624 = arith.addf %623, %622 : vector<16x128xf32>
    %625 = arith.divf %623, %624 : vector<16x128xf32>
    %626 = vector.extract_strided_slice %613 {offsets = [0, 128], sizes = [16, 128], strides = [1, 1]} : vector<16x384xf32> to vector<16x128xf32>
    %627 = vector.extract_strided_slice %617 {offsets = [0, 128], sizes = [16, 128], strides = [1, 1]} : vector<16x384xf32> to vector<16x128xf32>
    %628 = arith.addf %626, %627 : vector<16x128xf32>
    %629 = arith.negf %628 : vector<16x128xf32>
    %630 = math.exp %629 : vector<16x128xf32>
    %cst_180 = arith.constant 1.000000e+00 : f32
    %631 = vector.broadcast %cst_180 : f32 to vector<16x128xf32>
    %632 = arith.addf %631, %630 : vector<16x128xf32>
    %633 = arith.divf %631, %632 : vector<16x128xf32>
    %634 = vector.extract_strided_slice %613 {offsets = [0, 256], sizes = [16, 128], strides = [1, 1]} : vector<16x384xf32> to vector<16x128xf32>
    %635 = vector.extract_strided_slice %617 {offsets = [0, 256], sizes = [16, 128], strides = [1, 1]} : vector<16x384xf32> to vector<16x128xf32>
    %636 = arith.mulf %625, %635 : vector<16x128xf32>
    %637 = arith.addf %634, %636 : vector<16x128xf32>
    %638 = math.tanh %637 : vector<16x128xf32>
    %cst_181 = arith.constant 1.000000e+00 : f32
    %639 = vector.broadcast %cst_181 : f32 to vector<16x128xf32>
    %640 = arith.subf %639, %633 : vector<16x128xf32>
    %641 = arith.mulf %640, %638 : vector<16x128xf32>
    %642 = arith.mulf %633, %606 : vector<16x128xf32>
    %643 = arith.addf %641, %642 : vector<16x128xf32>
    %644 = arith.index_cast %610 : i32 to index
    %c0_182 = arith.constant 0 : index
    %645 = vector.load %arg21[%644, %c0_182] : memref<128x128xf32, #tpu.memory_space<vmem>>, vector<16x128xf32>
    tpu.vector_store %arg21[%644, %c0_182], %643 {strides = array<i32>} : memref<128x128xf32, #tpu.memory_space<vmem>>, vector<16x128xf32>,
    %c8_i32_183 = arith.constant 8 : i32
    %c0_184 = arith.constant 0 : index
    %c0_185 = arith.constant 0 : index
    %646 = vector.load %arg21[%c0_184, %c0_185] : memref<128x128xf32, #tpu.memory_space<vmem>>, vector<128x128xf32>
    %647 = arith.truncf %646 : vector<128x128xf32> to vector<128x128xbf16>
    %c0_186 = arith.constant 0 : index
    %c0_187 = arith.constant 0 : index
    %648 = vector.load %arg13[%c0_186, %c0_187] : memref<128x128xbf16, #tpu.memory_space<vmem>>, vector<128x128xbf16>
    %cst_188 = arith.constant dense<0.000000e+00> : vector<128x128xf32>
    %649 = tpu.matmul %647, %648, %cst_188 {dimension_numbers = #tpu.dot_dimension_numbers<[1], [0], [0], [1], [0, 0, 1, 1], [], []>} : vector<128x128xbf16>, vector<128x128xbf16>, vector<128x128xf32> -> vector<128x128xf32>
    %c0_189 = arith.constant 0 : index
    %c0_190 = arith.constant 0 : index
    %650 = vector.load %arg14[%c0_189, %c0_190] : memref<1x128xf32, #tpu.memory_space<vmem>>, vector<1x128xf32>
    %651 = vector.broadcast %650 : vector<1x128xf32> to vector<128x128xf32>
    %652 = arith.addf %649, %651 : vector<128x128xf32>
    %653 = arith.truncf %652 : vector<128x128xf32> to vector<128x128xbf16>
    %c0_191 = arith.constant 0 : index
    %c0_192 = arith.constant 0 : index
    %654 = vector.load %arg15[%c0_191, %c0_192] : memref<128x128xbf16, #tpu.memory_space<vmem>>, vector<128x128xbf16>
    tpu.vector_store %arg15[%c0_191, %c0_192], %653 {strides = array<i32>} : memref<128x128xbf16, #tpu.memory_space<vmem>>, vector<128x128xbf16>,
    return
  }
}

</mosaic_0001>

<llo_original>
// kernel: tpu_custom_call.1
$region0: #{tpu_custom_call.1}
  #allocation0 [shape = 'u32[]', space=smem, size = 0x4, offset = 0x4, fixed_abs, tag = 'smem constant byte address 0x4 - core index']
  #allocation1 [shape = 'u32[144,128]{1,0:T(1,128)}', space=vmem, size = 0x12000, scoped, tag = 'internal scratch']
  #allocation2 [shape = 'f32[128,384]{1,0:T(8,128)}', space=vmem, size = 0x30000, scoped, tag = 'scratch operand']
  #allocation3 [shape = 'f32[128,384]{1,0:T(8,128)}', space=vmem, size = 0x30000, scoped, tag = 'scratch operand']
  #allocation4 [shape = 'f32[128,128]{1,0:T(8,128)}', space=vmem, size = 0x10000, scoped, tag = 'scratch operand']
  %s0 = inlined_call_operand.vmem [shape: bf16[128,64], index: 0, kind: input, shape index: {}]
  %s1 = inlined_call_operand.hbm [shape: f32[128,128], index: 1, kind: input, shape index: {}]
  %s2 = inlined_call_operand.vmem [shape: f32[16,128], index: 2, kind: input, shape index: {}]
  %s3 = inlined_call_operand.hbm [shape: bf16[64,768], index: 3, kind: input, shape index: {}]
  %s4 = inlined_call_operand.hbm [shape: bf16[128,384], index: 4, kind: input, shape index: {}]
  %s5 = inlined_call_operand.vmem [shape: f32[1,384], index: 5, kind: input, shape index: {}]
  %s6 = inlined_call_operand.vmem [shape: f32[1,384], index: 6, kind: input, shape index: {}]
  %s7 = inlined_call_operand.hbm [shape: bf16[128,256], index: 7, kind: input, shape index: {}]
  %s8 = inlined_call_operand.vmem [shape: f32[1,256], index: 8, kind: input, shape index: {}]
  %s9 = inlined_call_operand.hbm [shape: bf16[128,384], index: 9, kind: input, shape index: {}]
  %s10 = inlined_call_operand.hbm [shape: bf16[128,384], index: 10, kind: input, shape index: {}]
  %s11 = inlined_call_operand.vmem [shape: f32[1,384], index: 11, kind: input, shape index: {}]
  %s12 = inlined_call_operand.vmem [shape: f32[1,384], index: 12, kind: input, shape index: {}]
  %s13 = inlined_call_operand.vmem [shape: bf16[128,128], index: 13, kind: input, shape index: {}]
  %s14 = inlined_call_operand.vmem [shape: f32[1,128], index: 14, kind: input, shape index: {}]
  %s15 = inlined_call_operand.hbm [shape: bf16[128,128], index: 15, kind: output, shape index: {0}]
  %s16 = inlined_call_operand.hbm [shape: f32[16,128], index: 16, kind: output, shape index: {1}]
  %s17 = inlined_call_operand.hbm [shape: f32[16,128], index: 17, kind: output, shape index: {2}]
  %s18 = inlined_call_operand.hbm [shape: f32[16,128], index: 18, kind: output, shape index: {3}]
  %19 = xla_tuple %s15, %s16, %s17, %s18
  %s20 = sld [smem:[#allocation0]]
  $region118: #{tpu_custom_call.1} parent=0
    _
  %s22 = ssub.s32 1, %s20
  %s23 = scalar_select 0, %s22, %s20
  $region1: #{tpu_custom_call.1} parent=0
    #allocation5 [shape = 'u8[65536]{0}', space=vmem, size = 0x10000, scoped, tag = 'input window, operand 1, single buffered']
    #allocation6 [shape = 's32[1]{0}', space=sflag, size = 0x4, scoped, tag = 'scoped memory for tpu_custom_call.1']
    #allocation7 [shape = 's32[1]{0}', space=sflag, size = 0x4, scoped, tag = 'scoped memory for tpu_custom_call.1']
    #allocation8 [shape = 'u8[98304]{0}', space=vmem, size = 0x18000, scoped, tag = 'input window, operand 3, single buffered']
    #allocation9 [shape = 's32[1]{0}', space=sflag, size = 0x4, scoped, tag = 'scoped memory for tpu_custom_call.1']
    #allocation10 [shape = 'u8[98304]{0}', space=vmem, size = 0x18000, scoped, tag = 'input window, operand 4, single buffered']
    #allocation11 [shape = 'u8[65536]{0}', space=vmem, size = 0x10000, scoped, tag = 'input window, operand 7, single buffered']
    #allocation12 [shape = 's32[1]{0}', space=sflag, size = 0x4, scoped, tag = 'scoped memory for tpu_custom_call.1']
    #allocation13 [shape = 'u8[98304]{0}', space=vmem, size = 0x18000, scoped, tag = 'input window, operand 9, single buffered']
    #allocation14 [shape = 'u8[98304]{0}', space=vmem, size = 0x18000, scoped, tag = 'input window, operand 10, single buffered']
    #allocation15 [shape = 's32[1]{0}', space=sflag, size = 0x4, scoped, tag = 'scoped memory for tpu_custom_call.1']
    #allocation16 [shape = 'u8[32768]{0}', space=vmem, size = 0x8000, scoped, tag = 'output window, operand 0, single buffered']
    #allocation17 [shape = 'u8[8192]{0}', space=vmem, size = 0x2000, scoped, tag = 'output window, operand 1, single buffered']
    #allocation18 [shape = 's32[1]{0}', space=sflag, size = 0x4, scoped, tag = 'scoped memory for tpu_custom_call.1']
    #allocation19 [shape = 'u8[8192]{0}', space=vmem, size = 0x2000, scoped, tag = 'output window, operand 2, single buffered']
    #allocation20 [shape = 'u8[8192]{0}', space=vmem, size = 0x2000, scoped, tag = 'output window, operand 3, single buffered']
    #allocation21 [shape = 's32[1]{0}', space=sflag, size = 0x4, scoped, tag = 'scoped memory for tpu_custom_call.1']
    %24 = vsyncpa [#allocation6], 0
    %25 = vsyncpa [#allocation9], 0
    %26 = vsyncpa [#allocation12], 0
    %27 = vsyncpa [#allocation15], 0
    %28 = vsyncpa [#allocation7], 0
    %29 = vsyncpa [#allocation18], 0
    %30 = vsyncpa [#allocation21], 0
    // Predicated region
    $region2: #{tpu_custom_call.1} parent=1 // pred_check
      _
    $region3: #{tpu_custom_call.1} parent=1 // pred_check_branch
      %32 = sbr.rel (0) target = $region5
    $region4: #{tpu_custom_call.1} parent=1 // pred_region
      _
    $region5: #{tpu_custom_call.1} parent=1 // pred_fallthru
      _
    // Predicated region
    $region6: #{tpu_custom_call.1} parent=1 // pred_check
      _
    $region7: #{tpu_custom_call.1} parent=1 // pred_check_branch
      %34 = sbr.rel (0) target = $region9
    $region8: #{tpu_custom_call.1} parent=1 // pred_region
      %s36 = ssub.s32 2048, 2048
      %37 = vsyncadd [#allocation6], %s36
      %s38 = sshll.u32 [#allocation5], 4
      %s39 = int_to_ptr.vmem [resolvable:$true] %s38
      %44 = dma.hbm_to_vmem [thread:$0]  %s1, 2048, %s39, [#allocation6], 128, 128, 8
    $region9: #{tpu_custom_call.1} parent=1 // pred_fallthru
      _
    // Predicated region
    $region10: #{tpu_custom_call.1} parent=1 // pred_check
      _
    $region11: #{tpu_custom_call.1} parent=1 // pred_check_branch
      %46 = sbr.rel (0) target = $region13
    $region12: #{tpu_custom_call.1} parent=1 // pred_region
      _
    $region13: #{tpu_custom_call.1} parent=1 // pred_fallthru
      _
    // Predicated region
    $region14: #{tpu_custom_call.1} parent=1 // pred_check
      _
    $region15: #{tpu_custom_call.1} parent=1 // pred_check_branch
      %48 = sbr.rel (0) target = $region17
    $region16: #{tpu_custom_call.1} parent=1 // pred_region
      %s50 = ssub.s32 3072, 3072
      %51 = vsyncadd [#allocation9], %s50
      %s52 = sshll.u32 [#allocation8], 4
      %s53 = int_to_ptr.vmem [resolvable:$true] %s52
      %58 = dma.hbm_to_vmem [thread:$0]  %s3, 3072, %s53, [#allocation9], 384, 384, 24
    $region17: #{tpu_custom_call.1} parent=1 // pred_fallthru
      _
    // Predicated region
    $region18: #{tpu_custom_call.1} parent=1 // pred_check
      _
    $region19: #{tpu_custom_call.1} parent=1 // pred_check_branch
      %60 = sbr.rel (0) target = $region21
    $region20: #{tpu_custom_call.1} parent=1 // pred_region
      %s62 = ssub.s32 3072, 3072
      %63 = vsyncadd [#allocation9], %s62
      %s64 = sshll.u32 [#allocation10], 4
      %s65 = int_to_ptr.vmem [resolvable:$true] %s64
      %70 = dma.hbm_to_vmem [thread:$0]  %s4, 3072, %s65, [#allocation9], 192, 192, 12
    $region21: #{tpu_custom_call.1} parent=1 // pred_fallthru
      _
    // Predicated region
    $region22: #{tpu_custom_call.1} parent=1 // pred_check
      _
    $region23: #{tpu_custom_call.1} parent=1 // pred_check_branch
      %72 = sbr.rel (0) target = $region25
    $region24: #{tpu_custom_call.1} parent=1 // pred_region
      _
    $region25: #{tpu_custom_call.1} parent=1 // pred_fallthru
      _
    // Predicated region
    $region26: #{tpu_custom_call.1} parent=1 // pred_check
      _
    $region27: #{tpu_custom_call.1} parent=1 // pred_check_branch
      %74 = sbr.rel (0) target = $region29
    $region28: #{tpu_custom_call.1} parent=1 // pred_region
      _
    $region29: #{tpu_custom_call.1} parent=1 // pred_fallthru
      _
    // Predicated region
    $region30: #{tpu_custom_call.1} parent=1 // pred_check
      _
    $region31: #{tpu_custom_call.1} parent=1 // pred_check_branch
      %76 = sbr.rel (0) target = $region33
    $region32: #{tpu_custom_call.1} parent=1 // pred_region
      %s78 = ssub.s32 2048, 2048
      %79 = vsyncadd [#allocation12], %s78
      %s80 = sshll.u32 [#allocation11], 4
      %s81 = int_to_ptr.vmem [resolvable:$true] %s80
      %86 = dma.hbm_to_vmem [thread:$0]  %s7, 2048, %s81, [#allocation12], 128, 128, 8
    $region33: #{tpu_custom_call.1} parent=1 // pred_fallthru
      _
    // Predicated region
    $region34: #{tpu_custom_call.1} parent=1 // pred_check
      _
    $region35: #{tpu_custom_call.1} parent=1 // pred_check_branch
      %88 = sbr.rel (0) target = $region37
    $region36: #{tpu_custom_call.1} parent=1 // pred_region
      _
    $region37: #{tpu_custom_call.1} parent=1 // pred_fallthru
      _
    // Predicated region
    $region38: #{tpu_custom_call.1} parent=1 // pred_check
      _
    $region39: #{tpu_custom_call.1} parent=1 // pred_check_branch
      %90 = sbr.rel (0) target = $region41
    $region40: #{tpu_custom_call.1} parent=1 // pred_region
      %s92 = ssub.s32 3072, 3072
      %93 = vsyncadd [#allocation12], %s92
      %s94 = sshll.u32 [#allocation13], 4
      %s95 = int_to_ptr.vmem [resolvable:$true] %s94
      %100 = dma.hbm_to_vmem [thread:$0]  %s9, 3072, %s95, [#allocation12], 192, 192, 12
    $region41: #{tpu_custom_call.1} parent=1 // pred_fallthru
      _
    // Predicated region
    $region42: #{tpu_custom_call.1} parent=1 // pred_check
      _
    $region43: #{tpu_custom_call.1} parent=1 // pred_check_branch
      %102 = sbr.rel (0) target = $region45
    $region44: #{tpu_custom_call.1} parent=1 // pred_region
      %s104 = ssub.s32 3072, 3072
      %105 = vsyncadd [#allocation15], %s104
      %s106 = sshll.u32 [#allocation14], 4
      %s107 = int_to_ptr.vmem [resolvable:$true] %s106
      %112 = dma.hbm_to_vmem [thread:$0]  %s10, 3072, %s107, [#allocation15], 192, 192, 12
    $region45: #{tpu_custom_call.1} parent=1 // pred_fallthru
      _
    // Predicated region
    $region46: #{tpu_custom_call.1} parent=1 // pred_check
      _
    $region47: #{tpu_custom_call.1} parent=1 // pred_check_branch
      %114 = sbr.rel (0) target = $region49
    $region48: #{tpu_custom_call.1} parent=1 // pred_region
      _
    $region49: #{tpu_custom_call.1} parent=1 // pred_fallthru
      _
    // Predicated region
    $region50: #{tpu_custom_call.1} parent=1 // pred_check
      _
    $region51: #{tpu_custom_call.1} parent=1 // pred_check_branch
      %116 = sbr.rel (0) target = $region53
    $region52: #{tpu_custom_call.1} parent=1 // pred_region
      _
    $region53: #{tpu_custom_call.1} parent=1 // pred_fallthru
      _
    // Predicated region
    $region54: #{tpu_custom_call.1} parent=1 // pred_check
      _
    $region55: #{tpu_custom_call.1} parent=1 // pred_check_branch
      %118 = sbr.rel (0) target = $region57
    $region56: #{tpu_custom_call.1} parent=1 // pred_region
      _
    $region57: #{tpu_custom_call.1} parent=1 // pred_fallthru
      _
    // Predicated region
    $region58: #{tpu_custom_call.1} parent=1 // pred_check
      _
    $region59: #{tpu_custom_call.1} parent=1 // pred_check_branch
      %120 = sbr.rel (0) target = $region61
    $region60: #{tpu_custom_call.1} parent=1 // pred_region
      _
    $region61: #{tpu_custom_call.1} parent=1 // pred_fallthru
      _
    // Predicated region
    $region62: #{tpu_custom_call.1} parent=1 // pred_check
      _
    $region63: #{tpu_custom_call.1} parent=1 // pred_check_branch
      %122 = sbr.rel (0) target = $region65
    $region64: #{tpu_custom_call.1} parent=1 // pred_region
      %123 = dma.done [#allocation6], 2048
    $region65: #{tpu_custom_call.1} parent=1 // pred_fallthru
      _
    // Predicated region
    $region66: #{tpu_custom_call.1} parent=1 // pred_check
      _
    $region67: #{tpu_custom_call.1} parent=1 // pred_check_branch
      %125 = sbr.rel (0) target = $region69
    $region68: #{tpu_custom_call.1} parent=1 // pred_region
      %126 = dma.done [#allocation9], 3072
    $region69: #{tpu_custom_call.1} parent=1 // pred_fallthru
      _
    // Predicated region
    $region70: #{tpu_custom_call.1} parent=1 // pred_check
      _
    $region71: #{tpu_custom_call.1} parent=1 // pred_check_branch
      %128 = sbr.rel (0) target = $region73
    $region72: #{tpu_custom_call.1} parent=1 // pred_region
      %129 = dma.done [#allocation9], 3072
    $region73: #{tpu_custom_call.1} parent=1 // pred_fallthru
      _
    // Predicated region
    $region74: #{tpu_custom_call.1} parent=1 // pred_check
      _
    $region75: #{tpu_custom_call.1} parent=1 // pred_check_branch
      %131 = sbr.rel (0) target = $region77
    $region76: #{tpu_custom_call.1} parent=1 // pred_region
      %132 = dma.done [#allocation12], 2048
    $region77: #{tpu_custom_call.1} parent=1 // pred_fallthru
      _
    // Predicated region
    $region78: #{tpu_custom_call.1} parent=1 // pred_check
      _
    $region79: #{tpu_custom_call.1} parent=1 // pred_check_branch
      %134 = sbr.rel (0) target = $region81
    $region80: #{tpu_custom_call.1} parent=1 // pred_region
      %135 = dma.done [#allocation12], 3072
    $region81: #{tpu_custom_call.1} parent=1 // pred_fallthru
      _
    // Predicated region
    $region82: #{tpu_custom_call.1} parent=1 // pred_check
      _
    $region83: #{tpu_custom_call.1} parent=1 // pred_check_branch
      %137 = sbr.rel (0) target = $region85
    $region84: #{tpu_custom_call.1} parent=1 // pred_region
      %138 = dma.done [#allocation15], 3072
    $region85: #{tpu_custom_call.1} parent=1 // pred_fallthru
      _
    %v140 = vld [vmem:[%s0] sm:$0xf]
    %v141 = vld [vmem:[%s0 + $0x4] sm:$0xf]
    %v142 = vld [vmem:[%s0 + $0x8] sm:$0xf]
    %v143 = vld [vmem:[%s0 + $0xc] sm:$0xf]
    %v144 = vld [vmem:[%s0 + $0x10] sm:$0xf]
    %v145 = vld [vmem:[%s0 + $0x14] sm:$0xf]
    %v146 = vld [vmem:[%s0 + $0x18] sm:$0xf]
    %v147 = vld [vmem:[%s0 + $0x1c] sm:$0xf]
    %v148 = vld [vmem:[%s0 + $0x20] sm:$0xf]
    %v149 = vld [vmem:[%s0 + $0x24] sm:$0xf]
    %v150 = vld [vmem:[%s0 + $0x28] sm:$0xf]
    %v151 = vld [vmem:[%s0 + $0x2c] sm:$0xf]
    %v152 = vld [vmem:[%s0 + $0x30] sm:$0xf]
    %v153 = vld [vmem:[%s0 + $0x34] sm:$0xf]
    %v154 = vld [vmem:[%s0 + $0x38] sm:$0xf]
    %v155 = vld [vmem:[%s0 + $0x3c] sm:$0xf]
    %v156 = vld [vmem:[#allocation8] sm:$0xff]
    %v157 = vld [vmem:[#allocation8 + $0x8] sm:$0xff]
    %v158 = vld [vmem:[#allocation8 + $0x10] sm:$0xff]
    %v159 = vld [vmem:[#allocation8 + $0x18] sm:$0xff]
    %v160 = vld [vmem:[#allocation8 + $0x20] sm:$0xff]
    %v161 = vld [vmem:[#allocation8 + $0x28] sm:$0xff]
    %v162 = vld [vmem:[#allocation8 + $0x30] sm:$0xff]
    %v163 = vld [vmem:[#allocation8 + $0x38] sm:$0xff]
    %v164 = vld [vmem:[#allocation8 + $0x40] sm:$0xff]
    %v165 = vld [vmem:[#allocation8 + $0x48] sm:$0xff]
    %v166 = vld [vmem:[#allocation8 + $0x50] sm:$0xff]
    %v167 = vld [vmem:[#allocation8 + $0x58] sm:$0xff]
    %v168 = vld [vmem:[#allocation8 + $0x60] sm:$0xff]
    %v169 = vld [vmem:[#allocation8 + $0x68] sm:$0xff]
    %v170 = vld [vmem:[#allocation8 + $0x70] sm:$0xff]
    %v171 = vld [vmem:[#allocation8 + $0x78] sm:$0xff]
    %v172 = vld [vmem:[#allocation8 + $0x80] sm:$0xff]
    %v173 = vld [vmem:[#allocation8 + $0x88] sm:$0xff]
    %v174 = vld [vmem:[#allocation8 + $0x90] sm:$0xff]
    %v175 = vld [vmem:[#allocation8 + $0x98] sm:$0xff]
    %v176 = vld [vmem:[#allocation8 + $0xa0] sm:$0xff]
    %v177 = vld [vmem:[#allocation8 + $0xa8] sm:$0xff]
    %v178 = vld [vmem:[#allocation8 + $0xb0] sm:$0xff]
    %v179 = vld [vmem:[#allocation8 + $0xb8] sm:$0xff]
    %v196 = vunpack.c.l.b16 %v140
    %v197 = vunpack.c.l.b16 %v141
    %v198 = vunpack.c.l.b16 %v142
    %v199 = vunpack.c.l.b16 %v143
    %v200 = vunpack.c.l.b16 %v144
    %v201 = vunpack.c.l.b16 %v145
    %v202 = vunpack.c.l.b16 %v146
    %v203 = vunpack.c.l.b16 %v147
    %v204 = vunpack.c.l.b16 %v148
    %v205 = vunpack.c.l.b16 %v149
    %v206 = vunpack.c.l.b16 %v150
    %v207 = vunpack.c.l.b16 %v151
    %v208 = vunpack.c.l.b16 %v152
    %v209 = vunpack.c.l.b16 %v153
    %v210 = vunpack.c.l.b16 %v154
    %v211 = vunpack.c.l.b16 %v155
    %v212 = vpack.c.b16 %v197, %v196
    %v213 = vpack.c.b16 %v199, %v198
    %v214 = vpack.c.b16 %v201, %v200
    %v215 = vpack.c.b16 %v203, %v202
    %v216 = vpack.c.b16 %v205, %v204
    %v217 = vpack.c.b16 %v207, %v206
    %v218 = vpack.c.b16 %v209, %v208
    %v219 = vpack.c.b16 %v211, %v210
    %v244 = vunpack.c.l.b16 %v156
    %v245 = vunpack.c.h.b16 %v156
    %v246 = vunpack.c.l.b16 %v157
    %v247 = vunpack.c.h.b16 %v157
    %v248 = vunpack.c.l.b16 %v158
    %v249 = vunpack.c.h.b16 %v158
    %v250 = vunpack.c.l.b16 %v159
    %v251 = vunpack.c.h.b16 %v159
    %v252 = vunpack.c.l.b16 %v160
    %v253 = vunpack.c.h.b16 %v160
    %v254 = vunpack.c.l.b16 %v161
    %v255 = vunpack.c.h.b16 %v161
    %v256 = vunpack.c.l.b16 %v162
    %v257 = vunpack.c.h.b16 %v162
    %v258 = vunpack.c.l.b16 %v163
    %v259 = vunpack.c.h.b16 %v163
    %v260 = vunpack.c.l.b16 %v164
    %v261 = vunpack.c.h.b16 %v164
    %v262 = vunpack.c.l.b16 %v165
    %v263 = vunpack.c.h.b16 %v165
    %v264 = vunpack.c.l.b16 %v166
    %v265 = vunpack.c.h.b16 %v166
    %v266 = vunpack.c.l.b16 %v167
    %v267 = vunpack.c.h.b16 %v167
    %v268 = vunpack.c.l.b16 %v168
    %v269 = vunpack.c.h.b16 %v168
    %v270 = vunpack.c.l.b16 %v169
    %v271 = vunpack.c.h.b16 %v169
    %v272 = vunpack.c.l.b16 %v170
    %v273 = vunpack.c.h.b16 %v170
    %v274 = vunpack.c.l.b16 %v171
    %v275 = vunpack.c.h.b16 %v171
    %v276 = vunpack.c.l.b16 %v172
    %v277 = vunpack.c.h.b16 %v172
    %v278 = vunpack.c.l.b16 %v173
    %v279 = vunpack.c.h.b16 %v173
    %v280 = vunpack.c.l.b16 %v174
    %v281 = vunpack.c.h.b16 %v174
    %v282 = vunpack.c.l.b16 %v175
    %v283 = vunpack.c.h.b16 %v175
    %v284 = vunpack.c.l.b16 %v176
    %v285 = vunpack.c.h.b16 %v176
    %v286 = vunpack.c.l.b16 %v177
    %v287 = vunpack.c.h.b16 %v177
    %v288 = vunpack.c.l.b16 %v178
    %v289 = vunpack.c.h.b16 %v178
    %v290 = vunpack.c.l.b16 %v179
    %v291 = vunpack.c.h.b16 %v179
    %v292 = vpack.c.b16 %v250, %v244
    %v293 = vpack.c.b16 %v251, %v245
    %v294 = vpack.c.b16 %v252, %v246
    %v295 = vpack.c.b16 %v253, %v247
    %v296 = vpack.c.b16 %v254, %v248
    %v297 = vpack.c.b16 %v255, %v249
    %v298 = vpack.c.b16 %v262, %v256
    %v299 = vpack.c.b16 %v263, %v257
    %v300 = vpack.c.b16 %v264, %v258
    %v301 = vpack.c.b16 %v265, %v259
    %v302 = vpack.c.b16 %v266, %v260
    %v303 = vpack.c.b16 %v267, %v261
    %v304 = vpack.c.b16 %v274, %v268
    %v305 = vpack.c.b16 %v275, %v269
    %v306 = vpack.c.b16 %v276, %v270
    %v307 = vpack.c.b16 %v277, %v271
    %v308 = vpack.c.b16 %v278, %v272
    %v309 = vpack.c.b16 %v279, %v273
    %v310 = vpack.c.b16 %v286, %v280
    %v311 = vpack.c.b16 %v287, %v281
    %v312 = vpack.c.b16 %v288, %v282
    %v313 = vpack.c.b16 %v289, %v283
    %v314 = vpack.c.b16 %v290, %v284
    %v315 = vpack.c.b16 %v291, %v285
    %vm340 = vcmask 523264
    %v342 = vsel %vm340, %v212, 0
    %v345 = vsel %vm340, %v213, 0
    %v348 = vsel %vm340, %v214, 0
    %v351 = vsel %vm340, %v215, 0
    %v354 = vsel %vm340, %v216, 0
    %v357 = vsel %vm340, %v217, 0
    %v360 = vsel %vm340, %v218, 0
    %v363 = vsel %vm340, %v219, 0
    %365 = vmatprep.subr.bf16.mxu0 %v293
    %366 = vmatpush1.bf16.msra.mxu0 %v292
    %367 = vmatprep.subr.bf16.mxu0 %v299
    %368 = vmatpush1.bf16.msra.mxu0 %v298
    %369 = vmatprep.subr.bf16.mxu0 %v305
    %370 = vmatpush1.bf16.msra.mxu0 %v304
    %371 = vmatprep.subr.bf16.mxu0 %v311
    %372 = vmatpush1.bf16.msra.mxu0 %v310
    %373 = vmatprep.subr.bf16.mxu0 0
    %374 = vmatpush1.bf16.msra.mxu0 0
    %375 = vmatprep.subr.bf16.mxu0 0
    %376 = vmatpush1.bf16.msra.mxu0 0
    %377 = vmatprep.subr.bf16.mxu0 0
    %378 = vmatpush1.bf16.msra.mxu0 0
    %379 = vmatprep.subr.bf16.mxu0 0
    %380 = vmatpush1.bf16.msra.mxu0 0
    %381 = vmatprep.subr.bf16.mxu0 0
    %382 = vmatpush1.bf16.msra.mxu0 0
    %383 = vmatprep.subr.bf16.mxu0 0
    %384 = vmatpush1.bf16.msra.mxu0 0
    %385 = vmatprep.subr.bf16.mxu0 0
    %386 = vmatpush1.bf16.msra.mxu0 0
    %387 = vmatprep.subr.bf16.mxu0 0
    %388 = vmatpush1.bf16.msra.mxu0 0
    %389 = vmatprep.subr.bf16.mxu0 0
    %390 = vmatpush1.bf16.msra.mxu0 0
    %391 = vmatprep.subr.bf16.mxu0 0
    %392 = vmatpush1.bf16.msra.mxu0 0
    %393 = vmatprep.subr.bf16.mxu0 0
    %394 = vmatpush1.bf16.msra.mxu0 0
    %395 = vmatprep.subr.bf16.mxu0 0
    %396 = vmatpush1.bf16.msra.mxu0 0
    %397 = vmatprep.mubr.bf16.mxu0 0
    %398 = vmatmul.mubr.bf16.gmra.mrb[0].mxu0 %v342
    %v399 = vpop.f32.mrb[0].mxu0
    %v400 = vadd.f32 0.0, %v399
    %v401 = vpop.f32.mrb[0].mxu0
    %v402 = vadd.f32 0.0, %v401
    %v403 = vpop.f32.mrb[0].mxu0
    %v404 = vadd.f32 0.0, %v403
    %v405 = vpop.f32.mrb[0].mxu0
    %v406 = vadd.f32 0.0, %v405
    %407 = vmatprep.mubr.bf16.mxu0 0
    %408 = vmatmul.mubr.bf16.gmra.mrb[0].mxu0 %v345
    %v409 = vpop.f32.mrb[0].mxu0
    %v410 = vadd.f32 0.0, %v409
    %v411 = vpop.f32.mrb[0].mxu0
    %v412 = vadd.f32 0.0, %v411
    %v413 = vpop.f32.mrb[0].mxu0
    %v414 = vadd.f32 0.0, %v413
    %v415 = vpop.f32.mrb[0].mxu0
    %v416 = vadd.f32 0.0, %v415
    %417 = vmatprep.mubr.bf16.mxu0 0
    %418 = vmatmul.mubr.bf16.gmra.mrb[0].mxu0 %v348
    %v419 = vpop.f32.mrb[0].mxu0
    %v420 = vadd.f32 0.0, %v419
    %v421 = vpop.f32.mrb[0].mxu0
    %v422 = vadd.f32 0.0, %v421
    %v423 = vpop.f32.mrb[0].mxu0
    %v424 = vadd.f32 0.0, %v423
    %v425 = vpop.f32.mrb[0].mxu0
    %v426 = vadd.f32 0.0, %v425
    %427 = vmatprep.mubr.bf16.mxu0 0
    %428 = vmatmul.mubr.bf16.gmra.mrb[0].mxu0 %v351
    %v429 = vpop.f32.mrb[0].mxu0
    %v430 = vadd.f32 0.0, %v429
    %v431 = vpop.f32.mrb[0].mxu0
    %v432 = vadd.f32 0.0, %v431
    %v433 = vpop.f32.mrb[0].mxu0
    %v434 = vadd.f32 0.0, %v433
    %v435 = vpop.f32.mrb[0].mxu0
    %v436 = vadd.f32 0.0, %v435
    %437 = vmatprep.mubr.bf16.mxu0 0
    %438 = vmatmul.mubr.bf16.gmra.mrb[0].mxu0 %v354
    %v439 = vpop.f32.mrb[0].mxu0
    %v440 = vadd.f32 0.0, %v439
    %v441 = vpop.f32.mrb[0].mxu0
    %v442 = vadd.f32 0.0, %v441
    %v443 = vpop.f32.mrb[0].mxu0
    %v444 = vadd.f32 0.0, %v443
    %v445 = vpop.f32.mrb[0].mxu0
    %v446 = vadd.f32 0.0, %v445
    %447 = vmatprep.mubr.bf16.mxu0 0
    %448 = vmatmul.mubr.bf16.gmra.mrb[0].mxu0 %v357
    %v449 = vpop.f32.mrb[0].mxu0
    %v450 = vadd.f32 0.0, %v449
    %v451 = vpop.f32.mrb[0].mxu0
    %v452 = vadd.f32 0.0, %v451
    %v453 = vpop.f32.mrb[0].mxu0
    %v454 = vadd.f32 0.0, %v453
    %v455 = vpop.f32.mrb[0].mxu0
    %v456 = vadd.f32 0.0, %v455
    %457 = vmatprep.mubr.bf16.mxu0 0
    %458 = vmatmul.mubr.bf16.gmra.mrb[0].mxu0 %v360
    %v459 = vpop.f32.mrb[0].mxu0
    %v460 = vadd.f32 0.0, %v459
    %v461 = vpop.f32.mrb[0].mxu0
    %v462 = vadd.f32 0.0, %v461
    %v463 = vpop.f32.mrb[0].mxu0
    %v464 = vadd.f32 0.0, %v463
    %v465 = vpop.f32.mrb[0].mxu0
    %v466 = vadd.f32 0.0, %v465
    %467 = vmatprep.mubr.bf16.mxu0 0
    %468 = vmatmul.mubr.bf16.gmra.mrb[0].mxu0 %v363
    %v469 = vpop.f32.mrb[0].mxu0
    %v470 = vadd.f32 0.0, %v469
    %v471 = vpop.f32.mrb[0].mxu0
    %v472 = vadd.f32 0.0, %v471
    %v473 = vpop.f32.mrb[0].mxu0
    %v474 = vadd.f32 0.0, %v473
    %v475 = vpop.f32.mrb[0].mxu0
    %v476 = vadd.f32 0.0, %v475
    %477 = vdwg.mxu0
    %478 = vmatprep.subr.bf16.mxu0 %v295
    %479 = vmatpush1.bf16.msra.mxu0 %v294
    %480 = vmatprep.subr.bf16.mxu0 %v301
    %481 = vmatpush1.bf16.msra.mxu0 %v300
    %482 = vmatprep.subr.bf16.mxu0 %v307
    %483 = vmatpush1.bf16.msra.mxu0 %v306
    %484 = vmatprep.subr.bf16.mxu0 %v313
    %485 = vmatpush1.bf16.msra.mxu0 %v312
    %486 = vmatprep.subr.bf16.mxu0 0
    %487 = vmatpush1.bf16.msra.mxu0 0
    %488 = vmatprep.subr.bf16.mxu0 0
    %489 = vmatpush1.bf16.msra.mxu0 0
    %490 = vmatprep.subr.bf16.mxu0 0
    %491 = vmatpush1.bf16.msra.mxu0 0
    %492 = vmatprep.subr.bf16.mxu0 0
    %493 = vmatpush1.bf16.msra.mxu0 0
    %494 = vmatprep.subr.bf16.mxu0 0
    %495 = vmatpush1.bf16.msra.mxu0 0
    %496 = vmatprep.subr.bf16.mxu0 0
    %497 = vmatpush1.bf16.msra.mxu0 0
    %498 = vmatprep.subr.bf16.mxu0 0
    %499 = vmatpush1.bf16.msra.mxu0 0
    %500 = vmatprep.subr.bf16.mxu0 0
    %501 = vmatpush1.bf16.msra.mxu0 0
    %502 = vmatprep.subr.bf16.mxu0 0
    %503 = vmatpush1.bf16.msra.mxu0 0
    %504 = vmatprep.subr.bf16.mxu0 0
    %505 = vmatpush1.bf16.msra.mxu0 0
    %506 = vmatprep.subr.bf16.mxu0 0
    %507 = vmatpush1.bf16.msra.mxu0 0
    %508 = vmatprep.subr.bf16.mxu0 0
    %509 = vmatpush1.bf16.msra.mxu0 0
    %510 = vmatprep.mubr.bf16.mxu0 0
    %511 = vmatmul.mubr.bf16.gmra.mrb[0].mxu0 %v342
    %v512 = vpop.f32.mrb[0].mxu0
    %v513 = vadd.f32 0.0, %v512
    %v514 = vpop.f32.mrb[0].mxu0
    %v515 = vadd.f32 0.0, %v514
    %v516 = vpop.f32.mrb[0].mxu0
    %v517 = vadd.f32 0.0, %v516
    %v518 = vpop.f32.mrb[0].mxu0
    %v519 = vadd.f32 0.0, %v518
    %520 = vmatprep.mubr.bf16.mxu0 0
    %521 = vmatmul.mubr.bf16.gmra.mrb[0].mxu0 %v345
    %v522 = vpop.f32.mrb[0].mxu0
    %v523 = vadd.f32 0.0, %v522
    %v524 = vpop.f32.mrb[0].mxu0
    %v525 = vadd.f32 0.0, %v524
    %v526 = vpop.f32.mrb[0].mxu0
    %v527 = vadd.f32 0.0, %v526
    %v528 = vpop.f32.mrb[0].mxu0
    %v529 = vadd.f32 0.0, %v528
    %530 = vmatprep.mubr.bf16.mxu0 0
    %531 = vmatmul.mubr.bf16.gmra.mrb[0].mxu0 %v348
    %v532 = vpop.f32.mrb[0].mxu0
    %v533 = vadd.f32 0.0, %v532
    %v534 = vpop.f32.mrb[0].mxu0
    %v535 = vadd.f32 0.0, %v534
    %v536 = vpop.f32.mrb[0].mxu0
    %v537 = vadd.f32 0.0, %v536
    %v538 = vpop.f32.mrb[0].mxu0
    %v539 = vadd.f32 0.0, %v538
    %540 = vmatprep.mubr.bf16.mxu0 0
    %541 = vmatmul.mubr.bf16.gmra.mrb[0].mxu0 %v351
    %v542 = vpop.f32.mrb[0].mxu0
    %v543 = vadd.f32 0.0, %v542
    %v544 = vpop.f32.mrb[0].mxu0
    %v545 = vadd.f32 0.0, %v544
    %v546 = vpop.f32.mrb[0].mxu0
    %v547 = vadd.f32 0.0, %v546
    %v548 = vpop.f32.mrb[0].mxu0
    %v549 = vadd.f32 0.0, %v548
    %550 = vmatprep.mubr.bf16.mxu0 0
    %551 = vmatmul.mubr.bf16.gmra.mrb[0].mxu0 %v354
    %v552 = vpop.f32.mrb[0].mxu0
    %v553 = vadd.f32 0.0, %v552
    %v554 = vpop.f32.mrb[0].mxu0
    %v555 = vadd.f32 0.0, %v554
    %v556 = vpop.f32.mrb[0].mxu0
    %v557 = vadd.f32 0.0, %v556
    %v558 = vpop.f32.mrb[0].mxu0
    %v559 = vadd.f32 0.0, %v558
    %560 = vmatprep.mubr.bf16.mxu0 0
    %561 = vmatmul.mubr.bf16.gmra.mrb[0].mxu0 %v357
    %v562 = vpop.f32.mrb[0].mxu0
    %v563 = vadd.f32 0.0, %v562
    %v564 = vpop.f32.mrb[0].mxu0
    %v565 = vadd.f32 0.0, %v564
    %v566 = vpop.f32.mrb[0].mxu0
    %v567 = vadd.f32 0.0, %v566
    %v568 = vpop.f32.mrb[0].mxu0
    %v569 = vadd.f32 0.0, %v568
    %570 = vmatprep.mubr.bf16.mxu0 0
    %571 = vmatmul.mubr.bf16.gmra.mrb[0].mxu0 %v360
    %v572 = vpop.f32.mrb[0].mxu0
    %v573 = vadd.f32 0.0, %v572
    %v574 = vpop.f32.mrb[0].mxu0
    %v575 = vadd.f32 0.0, %v574
    %v576 = vpop.f32.mrb[0].mxu0
    %v577 = vadd.f32 0.0, %v576
    %v578 = vpop.f32.mrb[0].mxu0
    %v579 = vadd.f32 0.0, %v578
    %580 = vmatprep.mubr.bf16.mxu0 0
    %581 = vmatmul.mubr.bf16.gmra.mrb[0].mxu0 %v363
    %v582 = vpop.f32.mrb[0].mxu0
    %v583 = vadd.f32 0.0, %v582
    %v584 = vpop.f32.mrb[0].mxu0
    %v585 = vadd.f32 0.0, %v584
    %v586 = vpop.f32.mrb[0].mxu0
    %v587 = vadd.f32 0.0, %v586
    %v588 = vpop.f32.mrb[0].mxu0
    %v589 = vadd.f32 0.0, %v588
    %590 = vdwg.mxu0
    %591 = vmatprep.subr.bf16.mxu0 %v297
    %592 = vmatpush1.bf16.msra.mxu0 %v296
    %593 = vmatprep.subr.bf16.mxu0 %v303
    %594 = vmatpush1.bf16.msra.mxu0 %v302
    %595 = vmatprep.subr.bf16.mxu0 %v309
    %596 = vmatpush1.bf16.msra.mxu0 %v308
    %597 = vmatprep.subr.bf16.mxu0 %v315
    %598 = vmatpush1.bf16.msra.mxu0 %v314
    %599 = vmatprep.subr.bf16.mxu0 0
    %600 = vmatpush1.bf16.msra.mxu0 0
    %601 = vmatprep.subr.bf16.mxu0 0
    %602 = vmatpush1.bf16.msra.mxu0 0
    %603 = vmatprep.subr.bf16.mxu0 0
    %604 = vmatpush1.bf16.msra.mxu0 0
    %605 = vmatprep.subr.bf16.mxu0 0
    %606 = vmatpush1.bf16.msra.mxu0 0
    %607 = vmatprep.subr.bf16.mxu0 0
    %608 = vmatpush1.bf16.msra.mxu0 0
    %609 = vmatprep.subr.bf16.mxu0 0
    %610 = vmatpush1.bf16.msra.mxu0 0
    %611 = vmatprep.subr.bf16.mxu0 0
    %612 = vmatpush1.bf16.msra.mxu0 0
    %613 = vmatprep.subr.bf16.mxu0 0
    %614 = vmatpush1.bf16.msra.mxu0 0
    %615 = vmatprep.subr.bf16.mxu0 0
    %616 = vmatpush1.bf16.msra.mxu0 0
    %617 = vmatprep.subr.bf16.mxu0 0
    %618 = vmatpush1.bf16.msra.mxu0 0
    %619 = vmatprep.subr.bf16.mxu0 0
    %620 = vmatpush1.bf16.msra.mxu0 0
    %621 = vmatprep.subr.bf16.mxu0 0
    %622 = vmatpush1.bf16.msra.mxu0 0
    %623 = vmatprep.mubr.bf16.mxu0 0
    %624 = vmatmul.mubr.bf16.gmra.mrb[0].mxu0 %v342
    %v625 = vpop.f32.mrb[0].mxu0
    %v626 = vadd.f32 0.0, %v625
    %v627 = vpop.f32.mrb[0].mxu0
    %v628 = vadd.f32 0.0, %v627
    %v629 = vpop.f32.mrb[0].mxu0
    %v630 = vadd.f32 0.0, %v629
    %v631 = vpop.f32.mrb[0].mxu0
    %v632 = vadd.f32 0.0, %v631
    %633 = vmatprep.mubr.bf16.mxu0 0
    %634 = vmatmul.mubr.bf16.gmra.mrb[0].mxu0 %v345
    %v635 = vpop.f32.mrb[0].mxu0
    %v636 = vadd.f32 0.0, %v635
    %v637 = vpop.f32.mrb[0].mxu0
    %v638 = vadd.f32 0.0, %v637
    %v639 = vpop.f32.mrb[0].mxu0
    %v640 = vadd.f32 0.0, %v639
    %v641 = vpop.f32.mrb[0].mxu0
    %v642 = vadd.f32 0.0, %v641
    %643 = vmatprep.mubr.bf16.mxu0 0
    %644 = vmatmul.mubr.bf16.gmra.mrb[0].mxu0 %v348
    %v645 = vpop.f32.mrb[0].mxu0
    %v646 = vadd.f32 0.0, %v645
    %v647 = vpop.f32.mrb[0].mxu0
    %v648 = vadd.f32 0.0, %v647
    %v649 = vpop.f32.mrb[0].mxu0
    %v650 = vadd.f32 0.0, %v649
    %v651 = vpop.f32.mrb[0].mxu0
    %v652 = vadd.f32 0.0, %v651
    %653 = vmatprep.mubr.bf16.mxu0 0
    %654 = vmatmul.mubr.bf16.gmra.mrb[0].mxu0 %v351
    %v655 = vpop.f32.mrb[0].mxu0
    %v656 = vadd.f32 0.0, %v655
    %v657 = vpop.f32.mrb[0].mxu0
    %v658 = vadd.f32 0.0, %v657
    %v659 = vpop.f32.mrb[0].mxu0
    %v660 = vadd.f32 0.0, %v659
    %v661 = vpop.f32.mrb[0].mxu0
    %v662 = vadd.f32 0.0, %v661
    %663 = vmatprep.mubr.bf16.mxu0 0
    %664 = vmatmul.mubr.bf16.gmra.mrb[0].mxu0 %v354
    %v665 = vpop.f32.mrb[0].mxu0
    %v666 = vadd.f32 0.0, %v665
    %v667 = vpop.f32.mrb[0].mxu0
    %v668 = vadd.f32 0.0, %v667
    %v669 = vpop.f32.mrb[0].mxu0
    %v670 = vadd.f32 0.0, %v669
    %v671 = vpop.f32.mrb[0].mxu0
    %v672 = vadd.f32 0.0, %v671
    %673 = vmatprep.mubr.bf16.mxu0 0
    %674 = vmatmul.mubr.bf16.gmra.mrb[0].mxu0 %v357
    %v675 = vpop.f32.mrb[0].mxu0
    %v676 = vadd.f32 0.0, %v675
    %v677 = vpop.f32.mrb[0].mxu0
    %v678 = vadd.f32 0.0, %v677
    %v679 = vpop.f32.mrb[0].mxu0
    %v680 = vadd.f32 0.0, %v679
    %v681 = vpop.f32.mrb[0].mxu0
    %v682 = vadd.f32 0.0, %v681
    %683 = vmatprep.mubr.bf16.mxu0 0
    %684 = vmatmul.mubr.bf16.gmra.mrb[0].mxu0 %v360
    %v685 = vpop.f32.mrb[0].mxu0
    %v686 = vadd.f32 0.0, %v685
    %v687 = vpop.f32.mrb[0].mxu0
    %v688 = vadd.f32 0.0, %v687
    %v689 = vpop.f32.mrb[0].mxu0
    %v690 = vadd.f32 0.0, %v689
    %v691 = vpop.f32.mrb[0].mxu0
    %v692 = vadd.f32 0.0, %v691
    %693 = vmatprep.mubr.bf16.mxu0 0
    %694 = vmatmul.mubr.bf16.gmra.mrb[0].mxu0 %v363
    %v695 = vpop.f32.mrb[0].mxu0
    %v696 = vadd.f32 0.0, %v695
    %v697 = vpop.f32.mrb[0].mxu0
    %v698 = vadd.f32 0.0, %v697
    %v699 = vpop.f32.mrb[0].mxu0
    %v700 = vadd.f32 0.0, %v699
    %v701 = vpop.f32.mrb[0].mxu0
    %v702 = vadd.f32 0.0, %v701
    %703 = vdwg.mxu0
    %v704 = vld [vmem:[%s5] sm:$0x7]
    %v706 = vlaneseq
    %v707 = vshrl.u32 %v706, 7
    %v708 = vsub.s32 0, %v707
    %v709 = vrot.slane %v704, %v708
    %v710 = vlaneseq
    %v711 = vshrl.u32 %v710, 7
    %v712 = vsub.s32 1, %v711
    %v713 = vrot.slane %v704, %v712
    %v714 = vlaneseq
    %v715 = vshrl.u32 %v714, 7
    %v716 = vsub.s32 2, %v715
    %v717 = vrot.slane %v704, %v716
    %v721 = vadd.f32 %v400, %v709
    %v722 = vadd.f32 %v402, %v713
    %v723 = vadd.f32 %v513, %v717
    %v724 = vadd.f32 %v404, %v709
    %v725 = vadd.f32 %v406, %v713
    %v726 = vadd.f32 %v517, %v717
    %v727 = vadd.f32 %v410, %v709
    %v728 = vadd.f32 %v412, %v713
    %v729 = vadd.f32 %v523, %v717
    %v730 = vadd.f32 %v414, %v709
    %v731 = vadd.f32 %v416, %v713
    %v732 = vadd.f32 %v527, %v717
    %v733 = vadd.f32 %v420, %v709
    %v734 = vadd.f32 %v422, %v713
    %v735 = vadd.f32 %v533, %v717
    %v736 = vadd.f32 %v424, %v709
    %v737 = vadd.f32 %v426, %v713
    %v738 = vadd.f32 %v537, %v717
    %v739 = vadd.f32 %v430, %v709
    %v740 = vadd.f32 %v432, %v713
    %v741 = vadd.f32 %v543, %v717
    %v742 = vadd.f32 %v434, %v709
    %v743 = vadd.f32 %v436, %v713
    %v744 = vadd.f32 %v547, %v717
    %v745 = vadd.f32 %v440, %v709
    %v746 = vadd.f32 %v442, %v713
    %v747 = vadd.f32 %v553, %v717
    %v748 = vadd.f32 %v444, %v709
    %v749 = vadd.f32 %v446, %v713
    %v750 = vadd.f32 %v557, %v717
    %v751 = vadd.f32 %v450, %v709
    %v752 = vadd.f32 %v452, %v713
    %v753 = vadd.f32 %v563, %v717
    %v754 = vadd.f32 %v454, %v709
    %v755 = vadd.f32 %v456, %v713
    %v756 = vadd.f32 %v567, %v717
    %v757 = vadd.f32 %v460, %v709
    %v758 = vadd.f32 %v462, %v713
    %v759 = vadd.f32 %v573, %v717
    %v760 = vadd.f32 %v464, %v709
    %v761 = vadd.f32 %v466, %v713
    %v762 = vadd.f32 %v577, %v717
    %v763 = vadd.f32 %v470, %v709
    %v764 = vadd.f32 %v472, %v713
    %v765 = vadd.f32 %v583, %v717
    %v766 = vadd.f32 %v474, %v709
    %v767 = vadd.f32 %v476, %v713
    %v768 = vadd.f32 %v587, %v717
    %769 = vst [vmem:[#allocation2] sm:$0xff] %v721
    %770 = vst [vmem:[#allocation2 + $0x8] sm:$0xff] %v722
    %771 = vst [vmem:[#allocation2 + $0x10] sm:$0xff] %v723
    %772 = vst [vmem:[#allocation2 + $0x18] sm:$0xff] %v724
    %773 = vst [vmem:[#allocation2 + $0x20] sm:$0xff] %v725
    %774 = vst [vmem:[#allocation2 + $0x28] sm:$0xff] %v726
    %775 = vst [vmem:[#allocation2 + $0x30] sm:$0xff] %v727
    %776 = vst [vmem:[#allocation2 + $0x38] sm:$0xff] %v728
    %777 = vst [vmem:[#allocation2 + $0x40] sm:$0xff] %v729
    %778 = vst [vmem:[#allocation2 + $0x48] sm:$0xff] %v730
    %779 = vst [vmem:[#allocation2 + $0x50] sm:$0xff] %v731
    %780 = vst [vmem:[#allocation2 + $0x58] sm:$0xff] %v732
    %781 = vst [vmem:[#allocation2 + $0x60] sm:$0xff] %v733
    %782 = vst [vmem:[#allocation2 + $0x68] sm:$0xff] %v734
    %783 = vst [vmem:[#allocation2 + $0x70] sm:$0xff] %v735
    %784 = vst [vmem:[#allocation2 + $0x78] sm:$0xff] %v736
    %785 = vst [vmem:[#allocation2 + $0x80] sm:$0xff] %v737
    %786 = vst [vmem:[#allocation2 + $0x88] sm:$0xff] %v738
    %787 = vst [vmem:[#allocation2 + $0x90] sm:$0xff] %v739
    %788 = vst [vmem:[#allocation2 + $0x98] sm:$0xff] %v740
    %789 = vst [vmem:[#allocation2 + $0xa0] sm:$0xff] %v741
    %790 = vst [vmem:[#allocation2 + $0xa8] sm:$0xff] %v742
    %791 = vst [vmem:[#allocation2 + $0xb0] sm:$0xff] %v743
    %792 = vst [vmem:[#allocation2 + $0xb8] sm:$0xff] %v744
    %793 = vst [vmem:[#allocation2 + $0xc0] sm:$0xff] %v745
    %794 = vst [vmem:[#allocation2 + $0xc8] sm:$0xff] %v746
    %795 = vst [vmem:[#allocation2 + $0xd0] sm:$0xff] %v747
    %796 = vst [vmem:[#allocation2 + $0xd8] sm:$0xff] %v748
    %797 = vst [vmem:[#allocation2 + $0xe0] sm:$0xff] %v749
    %798 = vst [vmem:[#allocation2 + $0xe8] sm:$0xff] %v750
    %799 = vst [vmem:[#allocation2 + $0xf0] sm:$0xff] %v751
    %800 = vst [vmem:[#allocation2 + $0xf8] sm:$0xff] %v752
    %801 = vst [vmem:[#allocation2 + $0x100] sm:$0xff] %v753
    %802 = vst [vmem:[#allocation2 + $0x108] sm:$0xff] %v754
    %803 = vst [vmem:[#allocation2 + $0x110] sm:$0xff] %v755
    %804 = vst [vmem:[#allocation2 + $0x118] sm:$0xff] %v756
    %805 = vst [vmem:[#allocation2 + $0x120] sm:$0xff] %v757
    %806 = vst [vmem:[#allocation2 + $0x128] sm:$0xff] %v758
    %807 = vst [vmem:[#allocation2 + $0x130] sm:$0xff] %v759
    %808 = vst [vmem:[#allocation2 + $0x138] sm:$0xff] %v760
    %809 = vst [vmem:[#allocation2 + $0x140] sm:$0xff] %v761
    %810 = vst [vmem:[#allocation2 + $0x148] sm:$0xff] %v762
    %811 = vst [vmem:[#allocation2 + $0x150] sm:$0xff] %v763
    %812 = vst [vmem:[#allocation2 + $0x158] sm:$0xff] %v764
    %813 = vst [vmem:[#allocation2 + $0x160] sm:$0xff] %v765
    %814 = vst [vmem:[#allocation2 + $0x168] sm:$0xff] %v766
    %815 = vst [vmem:[#allocation2 + $0x170] sm:$0xff] %v767
    %816 = vst [vmem:[#allocation2 + $0x178] sm:$0xff] %v768
    %817 = vst [vmem:[#allocation3] sm:$0xff] %v515
    %818 = vst [vmem:[#allocation3 + $0x8] sm:$0xff] %v626
    %819 = vst [vmem:[#allocation3 + $0x10] sm:$0xff] %v628
    %820 = vst [vmem:[#allocation3 + $0x18] sm:$0xff] %v519
    %821 = vst [vmem:[#allocation3 + $0x20] sm:$0xff] %v630
    %822 = vst [vmem:[#allocation3 + $0x28] sm:$0xff] %v632
    %823 = vst [vmem:[#allocation3 + $0x30] sm:$0xff] %v525
    %824 = vst [vmem:[#allocation3 + $0x38] sm:$0xff] %v636
    %825 = vst [vmem:[#allocation3 + $0x40] sm:$0xff] %v638
    %826 = vst [vmem:[#allocation3 + $0x48] sm:$0xff] %v529
    %827 = vst [vmem:[#allocation3 + $0x50] sm:$0xff] %v640
    %828 = vst [vmem:[#allocation3 + $0x58] sm:$0xff] %v642
    %829 = vst [vmem:[#allocation3 + $0x60] sm:$0xff] %v535
    %830 = vst [vmem:[#allocation3 + $0x68] sm:$0xff] %v646
    %831 = vst [vmem:[#allocation3 + $0x70] sm:$0xff] %v648
    %832 = vst [vmem:[#allocation3 + $0x78] sm:$0xff] %v539
    %833 = vst [vmem:[#allocation3 + $0x80] sm:$0xff] %v650
    %834 = vst [vmem:[#allocation3 + $0x88] sm:$0xff] %v652
    %835 = vst [vmem:[#allocation3 + $0x90] sm:$0xff] %v545
    %836 = vst [vmem:[#allocation3 + $0x98] sm:$0xff] %v656
    %837 = vst [vmem:[#allocation3 + $0xa0] sm:$0xff] %v658
    %838 = vst [vmem:[#allocation3 + $0xa8] sm:$0xff] %v549
    %839 = vst [vmem:[#allocation3 + $0xb0] sm:$0xff] %v660
    %840 = vst [vmem:[#allocation3 + $0xb8] sm:$0xff] %v662
    %841 = vst [vmem:[#allocation3 + $0xc0] sm:$0xff] %v555
    %842 = vst [vmem:[#allocation3 + $0xc8] sm:$0xff] %v666
    %843 = vst [vmem:[#allocation3 + $0xd0] sm:$0xff] %v668
    %844 = vst [vmem:[#allocation3 + $0xd8] sm:$0xff] %v559
    %845 = vst [vmem:[#allocation3 + $0xe0] sm:$0xff] %v670
    %846 = vst [vmem:[#allocation3 + $0xe8] sm:$0xff] %v672
    %847 = vst [vmem:[#allocation3 + $0xf0] sm:$0xff] %v565
    %848 = vst [vmem:[#allocation3 + $0xf8] sm:$0xff] %v676
    %849 = vst [vmem:[#allocation3 + $0x100] sm:$0xff] %v678
    %850 = vst [vmem:[#allocation3 + $0x108] sm:$0xff] %v569
    %851 = vst [vmem:[#allocation3 + $0x110] sm:$0xff] %v680
    %852 = vst [vmem:[#allocation3 + $0x118] sm:$0xff] %v682
    %853 = vst [vmem:[#allocation3 + $0x120] sm:$0xff] %v575
    %854 = vst [vmem:[#allocation3 + $0x128] sm:$0xff] %v686
    %855 = vst [vmem:[#allocation3 + $0x130] sm:$0xff] %v688
    %856 = vst [vmem:[#allocation3 + $0x138] sm:$0xff] %v579
    %857 = vst [vmem:[#allocation3 + $0x140] sm:$0xff] %v690
    %858 = vst [vmem:[#allocation3 + $0x148] sm:$0xff] %v692
    %859 = vst [vmem:[#allocation3 + $0x150] sm:$0xff] %v585
    %860 = vst [vmem:[#allocation3 + $0x158] sm:$0xff] %v696
    %861 = vst [vmem:[#allocation3 + $0x160] sm:$0xff] %v698
    %862 = vst [vmem:[#allocation3 + $0x168] sm:$0xff] %v589
    %863 = vst [vmem:[#allocation3 + $0x170] sm:$0xff] %v700
    %864 = vst [vmem:[#allocation3 + $0x178] sm:$0xff] %v702
    %v865 = vld [vmem:[%s6] sm:$0x7]
    %v867 = vlaneseq
    %v868 = vshrl.u32 %v867, 7
    %v869 = vsub.s32 0, %v868
    %v870 = vrot.slane %v865, %v869
    %v871 = vlaneseq
    %v872 = vshrl.u32 %v871, 7
    %v873 = vsub.s32 1, %v872
    %v874 = vrot.slane %v865, %v873
    %v875 = vlaneseq
    %v876 = vshrl.u32 %v875, 7
    %v877 = vsub.s32 2, %v876
    %v878 = vrot.slane %v865, %v877
    %s882 = smul.u32 0, 3
    %s883 = smul.addr %s882, 8
    %s884 = scalar_lea.vmem [#allocation2], %s883
    %v885 = vld [vmem:[%s884] sm:$0xff]
    %v886 = vld [vmem:[%s884 + $0x8] sm:$0xff]
    %v887 = vld [vmem:[%s884 + $0x10] sm:$0xff]
    %v888 = vld [vmem:[%s884 + $0x18] sm:$0xff]
    %v889 = vld [vmem:[%s884 + $0x20] sm:$0xff]
    %v890 = vld [vmem:[%s884 + $0x28] sm:$0xff]
    %v891 = vld [vmem:[#allocation10] sm:$0xff]
    %v892 = vld [vmem:[#allocation10 + $0x8] sm:$0xf]
    %v893 = vld [vmem:[#allocation10 + $0xc] sm:$0xff]
    %v894 = vld [vmem:[#allocation10 + $0x14] sm:$0xf]
    %v895 = vld [vmem:[#allocation10 + $0x18] sm:$0xff]
    %v896 = vld [vmem:[#allocation10 + $0x20] sm:$0xf]
    %v897 = vld [vmem:[#allocation10 + $0x24] sm:$0xff]
    %v898 = vld [vmem:[#allocation10 + $0x2c] sm:$0xf]
    %v899 = vld [vmem:[#allocation10 + $0x30] sm:$0xff]
    %v900 = vld [vmem:[#allocation10 + $0x38] sm:$0xf]
    %v901 = vld [vmem:[#allocation10 + $0x3c] sm:$0xff]
    %v902 = vld [vmem:[#allocation10 + $0x44] sm:$0xf]
    %v903 = vld [vmem:[#allocation10 + $0x48] sm:$0xff]
    %v904 = vld [vmem:[#allocation10 + $0x50] sm:$0xf]
    %v905 = vld [vmem:[#allocation10 + $0x54] sm:$0xff]
    %v906 = vld [vmem:[#allocation10 + $0x5c] sm:$0xf]
    %v907 = vld [vmem:[#allocation10 + $0x60] sm:$0xff]
    %v908 = vld [vmem:[#allocation10 + $0x68] sm:$0xf]
    %v909 = vld [vmem:[#allocation10 + $0x6c] sm:$0xff]
    %v910 = vld [vmem:[#allocation10 + $0x74] sm:$0xf]
    %v911 = vld [vmem:[#allocation10 + $0x78] sm:$0xff]
    %v912 = vld [vmem:[#allocation10 + $0x80] sm:$0xf]
    %v913 = vld [vmem:[#allocation10 + $0x84] sm:$0xff]
    %v914 = vld [vmem:[#allocation10 + $0x8c] sm:$0xf]
    %v915 = vld [vmem:[#allocation10 + $0x90] sm:$0xff]
    %v916 = vld [vmem:[#allocation10 + $0x98] sm:$0xf]
    %v917 = vld [vmem:[#allocation10 + $0x9c] sm:$0xff]
    %v918 = vld [vmem:[#allocation10 + $0xa4] sm:$0xf]
    %v919 = vld [vmem:[#allocation10 + $0xa8] sm:$0xff]
    %v920 = vld [vmem:[#allocation10 + $0xb0] sm:$0xf]
    %v921 = vld [vmem:[#allocation10 + $0xb4] sm:$0xff]
    %v922 = vld [vmem:[#allocation10 + $0xbc] sm:$0xf]
    %v955 = vunpack.c.l.b16 %v891
    %v956 = vunpack.c.h.b16 %v891
    %v957 = vunpack.c.l.b16 %v892
    %v958 = vunpack.c.l.b16 %v893
    %v959 = vunpack.c.h.b16 %v893
    %v960 = vunpack.c.l.b16 %v894
    %v961 = vunpack.c.l.b16 %v895
    %v962 = vunpack.c.h.b16 %v895
    %v963 = vunpack.c.l.b16 %v896
    %v964 = vunpack.c.l.b16 %v897
    %v965 = vunpack.c.h.b16 %v897
    %v966 = vunpack.c.l.b16 %v898
    %v967 = vunpack.c.l.b16 %v899
    %v968 = vunpack.c.h.b16 %v899
    %v969 = vunpack.c.l.b16 %v900
    %v970 = vunpack.c.l.b16 %v901
    %v971 = vunpack.c.h.b16 %v901
    %v972 = vunpack.c.l.b16 %v902
    %v973 = vunpack.c.l.b16 %v903
    %v974 = vunpack.c.h.b16 %v903
    %v975 = vunpack.c.l.b16 %v904
    %v976 = vunpack.c.l.b16 %v905
    %v977 = vunpack.c.h.b16 %v905
    %v978 = vunpack.c.l.b16 %v906
    %v979 = vunpack.c.l.b16 %v907
    %v980 = vunpack.c.h.b16 %v907
    %v981 = vunpack.c.l.b16 %v908
    %v982 = vunpack.c.l.b16 %v909
    %v983 = vunpack.c.h.b16 %v909
    %v984 = vunpack.c.l.b16 %v910
    %v985 = vunpack.c.l.b16 %v911
    %v986 = vunpack.c.h.b16 %v911
    %v987 = vunpack.c.l.b16 %v912
    %v988 = vunpack.c.l.b16 %v913
    %v989 = vunpack.c.h.b16 %v913
    %v990 = vunpack.c.l.b16 %v914
    %v991 = vunpack.c.l.b16 %v915
    %v992 = vunpack.c.h.b16 %v915
    %v993 = vunpack.c.l.b16 %v916
    %v994 = vunpack.c.l.b16 %v917
    %v995 = vunpack.c.h.b16 %v917
    %v996 = vunpack.c.l.b16 %v918
    %v997 = vunpack.c.l.b16 %v919
    %v998 = vunpack.c.h.b16 %v919
    %v999 = vunpack.c.l.b16 %v920
    %v1000 = vunpack.c.l.b16 %v921
    %v1001 = vunpack.c.h.b16 %v921
    %v1002 = vunpack.c.l.b16 %v922
    %v1003 = vpack.c.b16 %v958, %v955
    %v1004 = vpack.c.b16 %v959, %v956
    %v1005 = vpack.c.b16 %v960, %v957
    %v1006 = vpack.c.b16 %v964, %v961
    %v1007 = vpack.c.b16 %v965, %v962
    %v1008 = vpack.c.b16 %v966, %v963
    %v1009 = vpack.c.b16 %v970, %v967
    %v1010 = vpack.c.b16 %v971, %v968
    %v1011 = vpack.c.b16 %v972, %v969
    %v1012 = vpack.c.b16 %v976, %v973
    %v1013 = vpack.c.b16 %v977, %v974
    %v1014 = vpack.c.b16 %v978, %v975
    %v1015 = vpack.c.b16 %v982, %v979
    %v1016 = vpack.c.b16 %v983, %v980
    %v1017 = vpack.c.b16 %v984, %v981
    %v1018 = vpack.c.b16 %v988, %v985
    %v1019 = vpack.c.b16 %v989, %v986
    %v1020 = vpack.c.b16 %v990, %v987
    %v1021 = vpack.c.b16 %v994, %v991
    %v1022 = vpack.c.b16 %v995, %v992
    %v1023 = vpack.c.b16 %v996, %v993
    %v1024 = vpack.c.b16 %v1000, %v997
    %v1025 = vpack.c.b16 %v1001, %v998
    %v1026 = vpack.c.b16 %v1002, %v999
    %1051 = vmatprep.subr.bf16.mxu0 %v1004
    %1052 = vmatpush1.bf16.msra.mxu0 %v1003
    %1053 = vmatprep.subr.bf16.mxu0 %v1007
    %1054 = vmatpush1.bf16.msra.mxu0 %v1006
    %1055 = vmatprep.subr.bf16.mxu0 %v1010
    %1056 = vmatpush1.bf16.msra.mxu0 %v1009
    %1057 = vmatprep.subr.bf16.mxu0 %v1013
    %1058 = vmatpush1.bf16.msra.mxu0 %v1012
    %1059 = vmatprep.subr.bf16.mxu0 %v1016
    %1060 = vmatpush1.bf16.msra.mxu0 %v1015
    %1061 = vmatprep.subr.bf16.mxu0 %v1019
    %1062 = vmatpush1.bf16.msra.mxu0 %v1018
    %1063 = vmatprep.subr.bf16.mxu0 %v1022
    %1064 = vmatpush1.bf16.msra.mxu0 %v1021
    %1065 = vmatprep.subr.bf16.mxu0 %v1025
    %1066 = vmatpush1.bf16.msra.mxu0 %v1024
    %1067 = vmatprep.subr.bf16.mxu0 0
    %1068 = vmatpush1.bf16.msra.mxu0 0
    %1069 = vmatprep.subr.bf16.mxu0 0
    %1070 = vmatpush1.bf16.msra.mxu0 0
    %1071 = vmatprep.subr.bf16.mxu0 0
    %1072 = vmatpush1.bf16.msra.mxu0 0
    %1073 = vmatprep.subr.bf16.mxu0 0
    %1074 = vmatpush1.bf16.msra.mxu0 0
    %1075 = vmatprep.subr.bf16.mxu0 0
    %1076 = vmatpush1.bf16.msra.mxu0 0
    %1077 = vmatprep.subr.bf16.mxu0 0
    %1078 = vmatpush1.bf16.msra.mxu0 0
    %1079 = vmatprep.subr.bf16.mxu0 0
    %1080 = vmatpush1.bf16.msra.mxu0 0
    %1081 = vmatprep.subr.bf16.mxu0 0
    %1082 = vmatpush1.bf16.msra.mxu0 0
    %1083 = vmatprep.mubr.bf16.mxu0 0
    %1084 = vmatmul.mubr.bf16.gmra.mrb[0].mxu0 0
    %v1085 = vpop.f32.mrb[0].mxu0
    %v1086 = vadd.f32 %v870, %v1085
    %v1087 = vpop.f32.mrb[0].mxu0
    %v1088 = vadd.f32 %v874, %v1087
    %v1089 = vpop.f32.mrb[0].mxu0
    %v1090 = vadd.f32 %v870, %v1089
    %v1091 = vpop.f32.mrb[0].mxu0
    %v1092 = vadd.f32 %v874, %v1091
    %1093 = vdwg.mxu0
    %1094 = vmatprep.subr.bf16.mxu0 0
    %1095 = vmatpush1.bf16.msra.mxu0 %v1005
    %1096 = vmatprep.subr.bf16.mxu0 0
    %1097 = vmatpush1.bf16.msra.mxu0 %v1008
    %1098 = vmatprep.subr.bf16.mxu0 0
    %1099 = vmatpush1.bf16.msra.mxu0 %v1011
    %1100 = vmatprep.subr.bf16.mxu0 0
    %1101 = vmatpush1.bf16.msra.mxu0 %v1014
    %1102 = vmatprep.subr.bf16.mxu0 0
    %1103 = vmatpush1.bf16.msra.mxu0 %v1017
    %1104 = vmatprep.subr.bf16.mxu0 0
    %1105 = vmatpush1.bf16.msra.mxu0 %v1020
    %1106 = vmatprep.subr.bf16.mxu0 0
    %1107 = vmatpush1.bf16.msra.mxu0 %v1023
    %1108 = vmatprep.subr.bf16.mxu0 0
    %1109 = vmatpush1.bf16.msra.mxu0 %v1026
    %1110 = vmatprep.subr.bf16.mxu0 0
    %1111 = vmatpush1.bf16.msra.mxu0 0
    %1112 = vmatprep.subr.bf16.mxu0 0
    %1113 = vmatpush1.bf16.msra.mxu0 0
    %1114 = vmatprep.subr.bf16.mxu0 0
    %1115 = vmatpush1.bf16.msra.mxu0 0
    %1116 = vmatprep.subr.bf16.mxu0 0
    %1117 = vmatpush1.bf16.msra.mxu0 0
    %1118 = vmatprep.subr.bf16.mxu0 0
    %1119 = vmatpush1.bf16.msra.mxu0 0
    %1120 = vmatprep.subr.bf16.mxu0 0
    %1121 = vmatpush1.bf16.msra.mxu0 0
    %1122 = vmatprep.subr.bf16.mxu0 0
    %1123 = vmatpush1.bf16.msra.mxu0 0
    %1124 = vmatprep.subr.bf16.mxu0 0
    %1125 = vmatpush1.bf16.msra.mxu0 0
    %1126 = vmatprep.mubr.bf16.mxu0 0
    %1127 = vmatmul.mubr.bf16.gmra.mrb[0].mxu0 0
    %v1128 = vpop.f32.mrb[0].mxu0
    %v1129 = vadd.f32 %v878, %v1128
    %v1130 = vpop.f32.mrb[0].mxu0
    %v1131 = vpop.f32.mrb[0].mxu0
    %v1132 = vadd.f32 %v878, %v1131
    %v1133 = vpop.f32.mrb[0].mxu0
    %1134 = vdwg.mxu0
    %v1135 = vadd.f32 %v885, %v1086
    %v1136 = vadd.f32 %v888, %v1090
    %v1137 = vxor.u32 %v1135, 2147483648
    %v1138 = vxor.u32 %v1136, 2147483648
    %v1139 = vmul.f32 %v1137, 1.442695
    %v1140 = vpow.pop %v1139
    %v1141 = vmul.f32 %v1138, 1.442695
    %v1142 = vpow.pop %v1141
    %v1143 = vadd.f32 %v1140, 1.0
    %v1144 = vadd.f32 %v1142, 1.0
    %v1145 = vrcp.pop %v1143
    %v1146 = vmul.f32 1.0, %v1145
    %v1147 = vrcp.pop %v1144
    %v1148 = vmul.f32 1.0, %v1147
    %v1149 = vadd.f32 %v886, %v1088
    %v1150 = vadd.f32 %v889, %v1092
    %v1151 = vxor.u32 %v1149, 2147483648
    %v1152 = vxor.u32 %v1150, 2147483648
    %v1153 = vmul.f32 %v1151, 1.442695
    %v1154 = vpow.pop %v1153
    %v1155 = vmul.f32 %v1152, 1.442695
    %v1156 = vpow.pop %v1155
    %v1157 = vadd.f32 %v1154, 1.0
    %v1158 = vadd.f32 %v1156, 1.0
    %v1159 = vrcp.pop %v1157
    %v1160 = vmul.f32 1.0, %v1159
    %v1161 = vrcp.pop %v1158
    %v1162 = vmul.f32 1.0, %v1161
    %v1163 = vmul.f32 %v1146, %v1129
    %v1164 = vmul.f32 %v1148, %v1132
    %v1165 = vadd.f32 %v887, %v1163
    %v1166 = vadd.f32 %v890, %v1164
    %v1167 = vtanh.pop %v1165
    %v1168 = vtanh.pop %v1166
    %v1169 = vsub.f32 1.0, %v1160
    %v1170 = vsub.f32 1.0, %v1162
    %v1171 = vmul.f32 %v1169, %v1167
    %v1172 = vmul.f32 %v1170, %v1168
    %v1173 = vmul.f32 %v1160, 0.0
    %v1174 = vmul.f32 %v1162, 0.0
    %v1175 = vadd.f32 %v1171, %v1173
    %v1176 = vadd.f32 %v1172, %v1174
    %v1177 = vld [vmem:[#allocation5] sm:$0xff]
    %v1178 = vld [vmem:[#allocation5 + $0x8] sm:$0xff]
    %v1179 = vmul.f32 %v1177, %v1175
    %v1180 = vmul.f32 %v1178, %v1176
    %v1181 = vadd.f32 %v1179, 0.0
    %v1182 = vadd.f32 %v1180, 0.0
    %s1183 = smul.u32 2, 3
    %s1184 = smul.addr %s1183, 8
    %s1185 = scalar_lea.vmem [#allocation2], %s1184
    %v1186 = vld [vmem:[%s1185] sm:$0xff]
    %v1187 = vld [vmem:[%s1185 + $0x8] sm:$0xff]
    %v1188 = vld [vmem:[%s1185 + $0x10] sm:$0xff]
    %v1189 = vld [vmem:[%s1185 + $0x18] sm:$0xff]
    %v1190 = vld [vmem:[%s1185 + $0x20] sm:$0xff]
    %v1191 = vld [vmem:[%s1185 + $0x28] sm:$0xff]
    %v1192 = vpack.c.bf16 %v1182, %v1181
    %1193 = vmatprep.subr.bf16.mxu0 %v1004
    %1194 = vmatpush1.bf16.msra.mxu0 %v1003
    %1195 = vmatprep.subr.bf16.mxu0 %v1007
    %1196 = vmatpush1.bf16.msra.mxu0 %v1006
    %1197 = vmatprep.subr.bf16.mxu0 %v1010
    %1198 = vmatpush1.bf16.msra.mxu0 %v1009
    %1199 = vmatprep.subr.bf16.mxu0 %v1013
    %1200 = vmatpush1.bf16.msra.mxu0 %v1012
    %1201 = vmatprep.subr.bf16.mxu0 %v1016
    %1202 = vmatpush1.bf16.msra.mxu0 %v1015
    %1203 = vmatprep.subr.bf16.mxu0 %v1019
    %1204 = vmatpush1.bf16.msra.mxu0 %v1018
    %1205 = vmatprep.subr.bf16.mxu0 %v1022
    %1206 = vmatpush1.bf16.msra.mxu0 %v1021
    %1207 = vmatprep.subr.bf16.mxu0 %v1025
    %1208 = vmatpush1.bf16.msra.mxu0 %v1024
    %1209 = vmatprep.subr.bf16.mxu0 0
    %1210 = vmatpush1.bf16.msra.mxu0 0
    %1211 = vmatprep.subr.bf16.mxu0 0
    %1212 = vmatpush1.bf16.msra.mxu0 0
    %1213 = vmatprep.subr.bf16.mxu0 0
    %1214 = vmatpush1.bf16.msra.mxu0 0
    %1215 = vmatprep.subr.bf16.mxu0 0
    %1216 = vmatpush1.bf16.msra.mxu0 0
    %1217 = vmatprep.subr.bf16.mxu0 0
    %1218 = vmatpush1.bf16.msra.mxu0 0
    %1219 = vmatprep.subr.bf16.mxu0 0
    %1220 = vmatpush1.bf16.msra.mxu0 0
    %1221 = vmatprep.subr.bf16.mxu0 0
    %1222 = vmatpush1.bf16.msra.mxu0 0
    %1223 = vmatprep.subr.bf16.mxu0 0
    %1224 = vmatpush1.bf16.msra.mxu0 0
    %1225 = vmatprep.mubr.bf16.mxu0 0
    %1226 = vmatmul.mubr.bf16.gmra.mrb[0].mxu0 %v1192
    %v1227 = vpop.f32.mrb[0].mxu0
    %v1228 = vadd.f32 %v870, %v1227
    %v1229 = vpop.f32.mrb[0].mxu0
    %v1230 = vadd.f32 %v874, %v1229
    %v1231 = vpop.f32.mrb[0].mxu0
    %v1232 = vadd.f32 %v870, %v1231
    %v1233 = vpop.f32.mrb[0].mxu0
    %v1234 = vadd.f32 %v874, %v1233
    %1235 = vdwg.mxu0
    %1236 = vmatprep.subr.bf16.mxu0 0
    %1237 = vmatpush1.bf16.msra.mxu0 %v1005
    %1238 = vmatprep.subr.bf16.mxu0 0
    %1239 = vmatpush1.bf16.msra.mxu0 %v1008
    %1240 = vmatprep.subr.bf16.mxu0 0
    %1241 = vmatpush1.bf16.msra.mxu0 %v1011
    %1242 = vmatprep.subr.bf16.mxu0 0
    %1243 = vmatpush1.bf16.msra.mxu0 %v1014
    %1244 = vmatprep.subr.bf16.mxu0 0
    %1245 = vmatpush1.bf16.msra.mxu0 %v1017
    %1246 = vmatprep.subr.bf16.mxu0 0
    %1247 = vmatpush1.bf16.msra.mxu0 %v1020
    %1248 = vmatprep.subr.bf16.mxu0 0
    %1249 = vmatpush1.bf16.msra.mxu0 %v1023
    %1250 = vmatprep.subr.bf16.mxu0 0
    %1251 = vmatpush1.bf16.msra.mxu0 %v1026
    %1252 = vmatprep.subr.bf16.mxu0 0
    %1253 = vmatpush1.bf16.msra.mxu0 0
    %1254 = vmatprep.subr.bf16.mxu0 0
    %1255 = vmatpush1.bf16.msra.mxu0 0
    %1256 = vmatprep.subr.bf16.mxu0 0
    %1257 = vmatpush1.bf16.msra.mxu0 0
    %1258 = vmatprep.subr.bf16.mxu0 0
    %1259 = vmatpush1.bf16.msra.mxu0 0
    %1260 = vmatprep.subr.bf16.mxu0 0
    %1261 = vmatpush1.bf16.msra.mxu0 0
    %1262 = vmatprep.subr.bf16.mxu0 0
    %1263 = vmatpush1.bf16.msra.mxu0 0
    %1264 = vmatprep.subr.bf16.mxu0 0
    %1265 = vmatpush1.bf16.msra.mxu0 0
    %1266 = vmatprep.subr.bf16.mxu0 0
    %1267 = vmatpush1.bf16.msra.mxu0 0
    %1268 = vmatprep.mubr.bf16.mxu0 0
    %1269 = vmatmul.mubr.bf16.gmra.mrb[0].mxu0 %v1192
    %v1270 = vpop.f32.mrb[0].mxu0
    %v1271 = vadd.f32 %v878, %v1270
    %v1272 = vpop.f32.mrb[0].mxu0
    %v1273 = vpop.f32.mrb[0].mxu0
    %v1274 = vadd.f32 %v878, %v1273
    %v1275 = vpop.f32.mrb[0].mxu0
    %1276 = vdwg.mxu0
    %v1277 = vadd.f32 %v1186, %v1228
    %v1278 = vadd.f32 %v1189, %v1232
    %v1279 = vxor.u32 %v1277, 2147483648
    %v1280 = vxor.u32 %v1278, 2147483648
    %v1281 = vmul.f32 %v1279, 1.442695
    %v1282 = vpow.pop %v1281
    %v1283 = vmul.f32 %v1280, 1.442695
    %v1284 = vpow.pop %v1283
    %v1285 = vadd.f32 %v1282, 1.0
    %v1286 = vadd.f32 %v1284, 1.0
    %v1287 = vrcp.pop %v1285
    %v1288 = vmul.f32 1.0, %v1287
    %v1289 = vrcp.pop %v1286
    %v1290 = vmul.f32 1.0, %v1289
    %v1291 = vadd.f32 %v1187, %v1230
    %v1292 = vadd.f32 %v1190, %v1234
    %v1293 = vxor.u32 %v1291, 2147483648
    %v1294 = vxor.u32 %v1292, 2147483648
    %v1295 = vmul.f32 %v1293, 1.442695
    %v1296 = vpow.pop %v1295
    %v1297 = vmul.f32 %v1294, 1.442695
    %v1298 = vpow.pop %v1297
    %v1299 = vadd.f32 %v1296, 1.0
    %v1300 = vadd.f32 %v1298, 1.0
    %v1301 = vrcp.pop %v1299
    %v1302 = vmul.f32 1.0, %v1301
    %v1303 = vrcp.pop %v1300
    %v1304 = vmul.f32 1.0, %v1303
    %v1305 = vmul.f32 %v1288, %v1271
    %v1306 = vmul.f32 %v1290, %v1274
    %v1307 = vadd.f32 %v1188, %v1305
    %v1308 = vadd.f32 %v1191, %v1306
    %v1309 = vtanh.pop %v1307
    %v1310 = vtanh.pop %v1308
    %v1311 = vsub.f32 1.0, %v1302
    %v1312 = vsub.f32 1.0, %v1304
    %v1313 = vmul.f32 %v1311, %v1309
    %v1314 = vmul.f32 %v1312, %v1310
    %v1315 = vmul.f32 %v1302, %v1181
    %v1316 = vmul.f32 %v1304, %v1182
    %v1317 = vadd.f32 %v1313, %v1315
    %v1318 = vadd.f32 %v1314, %v1316
    %s1319 = scalar_lea.vmem [#allocation5], 16
    %v1320 = vld [vmem:[%s1319] sm:$0xff]
    %v1321 = vld [vmem:[%s1319 + $0x8] sm:$0xff]
    %v1322 = vsub.f32 %v1317, %v1181
    %v1323 = vsub.f32 %v1318, %v1182
    %v1324 = vmul.f32 %v1320, %v1322
    %v1325 = vmul.f32 %v1321, %v1323
    %v1326 = vadd.f32 %v1181, %v1324
    %v1327 = vadd.f32 %v1182, %v1325
    %s1328 = smul.u32 4, 3
    %s1329 = smul.addr %s1328, 8
    %s1330 = scalar_lea.vmem [#allocation2], %s1329
    %v1331 = vld [vmem:[%s1330] sm:$0xff]
    %v1332 = vld [vmem:[%s1330 + $0x8] sm:$0xff]
    %v1333 = vld [vmem:[%s1330 + $0x10] sm:$0xff]
    %v1334 = vld [vmem:[%s1330 + $0x18] sm:$0xff]
    %v1335 = vld [vmem:[%s1330 + $0x20] sm:$0xff]
    %v1336 = vld [vmem:[%s1330 + $0x28] sm:$0xff]
    %v1337 = vpack.c.bf16 %v1327, %v1326
    %1338 = vmatprep.subr.bf16.mxu0 %v1004
    %1339 = vmatpush1.bf16.msra.mxu0 %v1003
    %1340 = vmatprep.subr.bf16.mxu0 %v1007
    %1341 = vmatpush1.bf16.msra.mxu0 %v1006
    %1342 = vmatprep.subr.bf16.mxu0 %v1010
    %1343 = vmatpush1.bf16.msra.mxu0 %v1009
    %1344 = vmatprep.subr.bf16.mxu0 %v1013
    %1345 = vmatpush1.bf16.msra.mxu0 %v1012
    %1346 = vmatprep.subr.bf16.mxu0 %v1016
    %1347 = vmatpush1.bf16.msra.mxu0 %v1015
    %1348 = vmatprep.subr.bf16.mxu0 %v1019
    %1349 = vmatpush1.bf16.msra.mxu0 %v1018
    %1350 = vmatprep.subr.bf16.mxu0 %v1022
    %1351 = vmatpush1.bf16.msra.mxu0 %v1021
    %1352 = vmatprep.subr.bf16.mxu0 %v1025
    %1353 = vmatpush1.bf16.msra.mxu0 %v1024
    %1354 = vmatprep.subr.bf16.mxu0 0
    %1355 = vmatpush1.bf16.msra.mxu0 0
    %1356 = vmatprep.subr.bf16.mxu0 0
    %1357 = vmatpush1.bf16.msra.mxu0 0
    %1358 = vmatprep.subr.bf16.mxu0 0
    %1359 = vmatpush1.bf16.msra.mxu0 0
    %1360 = vmatprep.subr.bf16.mxu0 0
    %1361 = vmatpush1.bf16.msra.mxu0 0
    %1362 = vmatprep.subr.bf16.mxu0 0
    %1363 = vmatpush1.bf16.msra.mxu0 0
    %1364 = vmatprep.subr.bf16.mxu0 0
    %1365 = vmatpush1.bf16.msra.mxu0 0
    %1366 = vmatprep.subr.bf16.mxu0 0
    %1367 = vmatpush1.bf16.msra.mxu0 0
    %1368 = vmatprep.subr.bf16.mxu0 0
    %1369 = vmatpush1.bf16.msra.mxu0 0
    %1370 = vmatprep.mubr.bf16.mxu0 0
    %1371 = vmatmul.mubr.bf16.gmra.mrb[0].mxu0 %v1337
    %v1372 = vpop.f32.mrb[0].mxu0
    %v1373 = vadd.f32 %v870, %v1372
    %v1374 = vpop.f32.mrb[0].mxu0
    %v1375 = vadd.f32 %v874, %v1374
    %v1376 = vpop.f32.mrb[0].mxu0
    %v1377 = vadd.f32 %v870, %v1376
    %v1378 = vpop.f32.mrb[0].mxu0
    %v1379 = vadd.f32 %v874, %v1378
    %1380 = vdwg.mxu0
    %1381 = vmatprep.subr.bf16.mxu0 0
    %1382 = vmatpush1.bf16.msra.mxu0 %v1005
    %1383 = vmatprep.subr.bf16.mxu0 0
    %1384 = vmatpush1.bf16.msra.mxu0 %v1008
    %1385 = vmatprep.subr.bf16.mxu0 0
    %1386 = vmatpush1.bf16.msra.mxu0 %v1011
    %1387 = vmatprep.subr.bf16.mxu0 0
    %1388 = vmatpush1.bf16.msra.mxu0 %v1014
    %1389 = vmatprep.subr.bf16.mxu0 0
    %1390 = vmatpush1.bf16.msra.mxu0 %v1017
    %1391 = vmatprep.subr.bf16.mxu0 0
    %1392 = vmatpush1.bf16.msra.mxu0 %v1020
    %1393 = vmatprep.subr.bf16.mxu0 0
    %1394 = vmatpush1.bf16.msra.mxu0 %v1023
    %1395 = vmatprep.subr.bf16.mxu0 0
    %1396 = vmatpush1.bf16.msra.mxu0 %v1026
    %1397 = vmatprep.subr.bf16.mxu0 0
    %1398 = vmatpush1.bf16.msra.mxu0 0
    %1399 = vmatprep.subr.bf16.mxu0 0
    %1400 = vmatpush1.bf16.msra.mxu0 0
    %1401 = vmatprep.subr.bf16.mxu0 0
    %1402 = vmatpush1.bf16.msra.mxu0 0
    %1403 = vmatprep.subr.bf16.mxu0 0
    %1404 = vmatpush1.bf16.msra.mxu0 0
    %1405 = vmatprep.subr.bf16.mxu0 0
    %1406 = vmatpush1.bf16.msra.mxu0 0
    %1407 = vmatprep.subr.bf16.mxu0 0
    %1408 = vmatpush1.bf16.msra.mxu0 0
    %1409 = vmatprep.subr.bf16.mxu0 0
    %1410 = vmatpush1.bf16.msra.mxu0 0
    %1411 = vmatprep.subr.bf16.mxu0 0
    %1412 = vmatpush1.bf16.msra.mxu0 0
    %1413 = vmatprep.mubr.bf16.mxu0 0
    %1414 = vmatmul.mubr.bf16.gmra.mrb[0].mxu0 %v1337
    %v1415 = vpop.f32.mrb[0].mxu0
    %v1416 = vadd.f32 %v878, %v1415
    %v1417 = vpop.f32.mrb[0].mxu0
    %v1418 = vpop.f32.mrb[0].mxu0
    %v1419 = vadd.f32 %v878, %v1418
    %v1420 = vpop.f32.mrb[0].mxu0
    %1421 = vdwg.mxu0
    %v1422 = vadd.f32 %v1331, %v1373
    %v1423 = vadd.f32 %v1334, %v1377
    %v1424 = vxor.u32 %v1422, 2147483648
    %v1425 = vxor.u32 %v1423, 2147483648
    %v1426 = vmul.f32 %v1424, 1.442695
    %v1427 = vpow.pop %v1426
    %v1428 = vmul.f32 %v1425, 1.442695
    %v1429 = vpow.pop %v1428
    %v1430 = vadd.f32 %v1427, 1.0
    %v1431 = vadd.f32 %v1429, 1.0
    %v1432 = vrcp.pop %v1430
    %v1433 = vmul.f32 1.0, %v1432
    %v1434 = vrcp.pop %v1431
    %v1435 = vmul.f32 1.0, %v1434
    %v1436 = vadd.f32 %v1332, %v1375
    %v1437 = vadd.f32 %v1335, %v1379
    %v1438 = vxor.u32 %v1436, 2147483648
    %v1439 = vxor.u32 %v1437, 2147483648
    %v1440 = vmul.f32 %v1438, 1.442695
    %v1441 = vpow.pop %v1440
    %v1442 = vmul.f32 %v1439, 1.442695
    %v1443 = vpow.pop %v1442
    %v1444 = vadd.f32 %v1441, 1.0
    %v1445 = vadd.f32 %v1443, 1.0
    %v1446 = vrcp.pop %v1444
    %v1447 = vmul.f32 1.0, %v1446
    %v1448 = vrcp.pop %v1445
    %v1449 = vmul.f32 1.0, %v1448
    %v1450 = vmul.f32 %v1433, %v1416
    %v1451 = vmul.f32 %v1435, %v1419
    %v1452 = vadd.f32 %v1333, %v1450
    %v1453 = vadd.f32 %v1336, %v1451
    %v1454 = vtanh.pop %v1452
    %v1455 = vtanh.pop %v1453
    %v1456 = vsub.f32 1.0, %v1447
    %v1457 = vsub.f32 1.0, %v1449
    %v1458 = vmul.f32 %v1456, %v1454
    %v1459 = vmul.f32 %v1457, %v1455
    %v1460 = vmul.f32 %v1447, %v1326
    %v1461 = vmul.f32 %v1449, %v1327
    %v1462 = vadd.f32 %v1458, %v1460
    %v1463 = vadd.f32 %v1459, %v1461
    %s1464 = scalar_lea.vmem [#allocation5], 32
    %v1465 = vld [vmem:[%s1464] sm:$0xff]
    %v1466 = vld [vmem:[%s1464 + $0x8] sm:$0xff]
    %v1467 = vsub.f32 %v1462, %v1326
    %v1468 = vsub.f32 %v1463, %v1327
    %v1469 = vmul.f32 %v1465, %v1467
    %v1470 = vmul.f32 %v1466, %v1468
    %v1471 = vadd.f32 %v1326, %v1469
    %v1472 = vadd.f32 %v1327, %v1470
    %s1473 = smul.u32 6, 3
    %s1474 = smul.addr %s1473, 8
    %s1475 = scalar_lea.vmem [#allocation2], %s1474
    %v1476 = vld [vmem:[%s1475] sm:$0xff]
    %v1477 = vld [vmem:[%s1475 + $0x8] sm:$0xff]
    %v1478 = vld [vmem:[%s1475 + $0x10] sm:$0xff]
    %v1479 = vld [vmem:[%s1475 + $0x18] sm:$0xff]
    %v1480 = vld [vmem:[%s1475 + $0x20] sm:$0xff]
    %v1481 = vld [vmem:[%s1475 + $0x28] sm:$0xff]
    %v1482 = vpack.c.bf16 %v1472, %v1471
    %1483 = vmatprep.subr.bf16.mxu0 %v1004
    %1484 = vmatpush1.bf16.msra.mxu0 %v1003
    %1485 = vmatprep.subr.bf16.mxu0 %v1007
    %1486 = vmatpush1.bf16.msra.mxu0 %v1006
    %1487 = vmatprep.subr.bf16.mxu0 %v1010
    %1488 = vmatpush1.bf16.msra.mxu0 %v1009
    %1489 = vmatprep.subr.bf16.mxu0 %v1013
    %1490 = vmatpush1.bf16.msra.mxu0 %v1012
    %1491 = vmatprep.subr.bf16.mxu0 %v1016
    %1492 = vmatpush1.bf16.msra.mxu0 %v1015
    %1493 = vmatprep.subr.bf16.mxu0 %v1019
    %1494 = vmatpush1.bf16.msra.mxu0 %v1018
    %1495 = vmatprep.subr.bf16.mxu0 %v1022
    %1496 = vmatpush1.bf16.msra.mxu0 %v1021
    %1497 = vmatprep.subr.bf16.mxu0 %v1025
    %1498 = vmatpush1.bf16.msra.mxu0 %v1024
    %1499 = vmatprep.subr.bf16.mxu0 0
    %1500 = vmatpush1.bf16.msra.mxu0 0
    %1501 = vmatprep.subr.bf16.mxu0 0
    %1502 = vmatpush1.bf16.msra.mxu0 0
    %1503 = vmatprep.subr.bf16.mxu0 0
    %1504 = vmatpush1.bf16.msra.mxu0 0
    %1505 = vmatprep.subr.bf16.mxu0 0
    %1506 = vmatpush1.bf16.msra.mxu0 0
    %1507 = vmatprep.subr.bf16.mxu0 0
    %1508 = vmatpush1.bf16.msra.mxu0 0
    %1509 = vmatprep.subr.bf16.mxu0 0
    %1510 = vmatpush1.bf16.msra.mxu0 0
    %1511 = vmatprep.subr.bf16.mxu0 0
    %1512 = vmatpush1.bf16.msra.mxu0 0
    %1513 = vmatprep.subr.bf16.mxu0 0
    %1514 = vmatpush1.bf16.msra.mxu0 0
    %1515 = vmatprep.mubr.bf16.mxu0 0
    %1516 = vmatmul.mubr.bf16.gmra.mrb[0].mxu0 %v1482
    %v1517 = vpop.f32.mrb[0].mxu0
    %v1518 = vadd.f32 %v870, %v1517
    %v1519 = vpop.f32.mrb[0].mxu0
    %v1520 = vadd.f32 %v874, %v1519
    %v1521 = vpop.f32.mrb[0].mxu0
    %v1522 = vadd.f32 %v870, %v1521
    %v1523 = vpop.f32.mrb[0].mxu0
    %v1524 = vadd.f32 %v874, %v1523
    %1525 = vdwg.mxu0
    %1526 = vmatprep.subr.bf16.mxu0 0
    %1527 = vmatpush1.bf16.msra.mxu0 %v1005
    %1528 = vmatprep.subr.bf16.mxu0 0
    %1529 = vmatpush1.bf16.msra.mxu0 %v1008
    %1530 = vmatprep.subr.bf16.mxu0 0
    %1531 = vmatpush1.bf16.msra.mxu0 %v1011
    %1532 = vmatprep.subr.bf16.mxu0 0
    %1533 = vmatpush1.bf16.msra.mxu0 %v1014
    %1534 = vmatprep.subr.bf16.mxu0 0
    %1535 = vmatpush1.bf16.msra.mxu0 %v1017
    %1536 = vmatprep.subr.bf16.mxu0 0
    %1537 = vmatpush1.bf16.msra.mxu0 %v1020
    %1538 = vmatprep.subr.bf16.mxu0 0
    %1539 = vmatpush1.bf16.msra.mxu0 %v1023
    %1540 = vmatprep.subr.bf16.mxu0 0
    %1541 = vmatpush1.bf16.msra.mxu0 %v1026
    %1542 = vmatprep.subr.bf16.mxu0 0
    %1543 = vmatpush1.bf16.msra.mxu0 0
    %1544 = vmatprep.subr.bf16.mxu0 0
    %1545 = vmatpush1.bf16.msra.mxu0 0
    %1546 = vmatprep.subr.bf16.mxu0 0
    %1547 = vmatpush1.bf16.msra.mxu0 0
    %1548 = vmatprep.subr.bf16.mxu0 0
    %1549 = vmatpush1.bf16.msra.mxu0 0
    %1550 = vmatprep.subr.bf16.mxu0 0
    %1551 = vmatpush1.bf16.msra.mxu0 0
    %1552 = vmatprep.subr.bf16.mxu0 0
    %1553 = vmatpush1.bf16.msra.mxu0 0
    %1554 = vmatprep.subr.bf16.mxu0 0
    %1555 = vmatpush1.bf16.msra.mxu0 0
    %1556 = vmatprep.subr.bf16.mxu0 0
    %1557 = vmatpush1.bf16.msra.mxu0 0
    %1558 = vmatprep.mubr.bf16.mxu0 0
    %1559 = vmatmul.mubr.bf16.gmra.mrb[0].mxu0 %v1482
    %v1560 = vpop.f32.mrb[0].mxu0
    %v1561 = vadd.f32 %v878, %v1560
    %v1562 = vpop.f32.mrb[0].mxu0
    %v1563 = vpop.f32.mrb[0].mxu0
    %v1564 = vadd.f32 %v878, %v1563
    %v1565 = vpop.f32.mrb[0].mxu0
    %1566 = vdwg.mxu0
    %v1567 = vadd.f32 %v1476, %v1518
    %v1568 = vadd.f32 %v1479, %v1522
    %v1569 = vxor.u32 %v1567, 2147483648
    %v1570 = vxor.u32 %v1568, 2147483648
    %v1571 = vmul.f32 %v1569, 1.442695
    %v1572 = vpow.pop %v1571
    %v1573 = vmul.f32 %v1570, 1.442695
    %v1574 = vpow.pop %v1573
    %v1575 = vadd.f32 %v1572, 1.0
    %v1576 = vadd.f32 %v1574, 1.0
    %v1577 = vrcp.pop %v1575
    %v1578 = vmul.f32 1.0, %v1577
    %v1579 = vrcp.pop %v1576
    %v1580 = vmul.f32 1.0, %v1579
    %v1581 = vadd.f32 %v1477, %v1520
    %v1582 = vadd.f32 %v1480, %v1524
    %v1583 = vxor.u32 %v1581, 2147483648
    %v1584 = vxor.u32 %v1582, 2147483648
    %v1585 = vmul.f32 %v1583, 1.442695
    %v1586 = vpow.pop %v1585
    %v1587 = vmul.f32 %v1584, 1.442695
    %v1588 = vpow.pop %v1587
    %v1589 = vadd.f32 %v1586, 1.0
    %v1590 = vadd.f32 %v1588, 1.0
    %v1591 = vrcp.pop %v1589
    %v1592 = vmul.f32 1.0, %v1591
    %v1593 = vrcp.pop %v1590
    %v1594 = vmul.f32 1.0, %v1593
    %v1595 = vmul.f32 %v1578, %v1561
    %v1596 = vmul.f32 %v1580, %v1564
    %v1597 = vadd.f32 %v1478, %v1595
    %v1598 = vadd.f32 %v1481, %v1596
    %v1599 = vtanh.pop %v1597
    %v1600 = vtanh.pop %v1598
    %v1601 = vsub.f32 1.0, %v1592
    %v1602 = vsub.f32 1.0, %v1594
    %v1603 = vmul.f32 %v1601, %v1599
    %v1604 = vmul.f32 %v1602, %v1600
    %v1605 = vmul.f32 %v1592, %v1471
    %v1606 = vmul.f32 %v1594, %v1472
    %v1607 = vadd.f32 %v1603, %v1605
    %v1608 = vadd.f32 %v1604, %v1606
    %s1609 = scalar_lea.vmem [#allocation5], 48
    %v1610 = vld [vmem:[%s1609] sm:$0xff]
    %v1611 = vld [vmem:[%s1609 + $0x8] sm:$0xff]
    %v1612 = vsub.f32 %v1607, %v1471
    %v1613 = vsub.f32 %v1608, %v1472
    %v1614 = vmul.f32 %v1610, %v1612
    %v1615 = vmul.f32 %v1611, %v1613
    %v1616 = vadd.f32 %v1471, %v1614
    %v1617 = vadd.f32 %v1472, %v1615
    %s1618 = smul.u32 8, 3
    %s1619 = smul.addr %s1618, 8
    %s1620 = scalar_lea.vmem [#allocation2], %s1619
    %v1621 = vld [vmem:[%s1620] sm:$0xff]
    %v1622 = vld [vmem:[%s1620 + $0x8] sm:$0xff]
    %v1623 = vld [vmem:[%s1620 + $0x10] sm:$0xff]
    %v1624 = vld [vmem:[%s1620 + $0x18] sm:$0xff]
    %v1625 = vld [vmem:[%s1620 + $0x20] sm:$0xff]
    %v1626 = vld [vmem:[%s1620 + $0x28] sm:$0xff]
    %v1627 = vpack.c.bf16 %v1617, %v1616
    %1628 = vmatprep.subr.bf16.mxu0 %v1004
    %1629 = vmatpush1.bf16.msra.mxu0 %v1003
    %1630 = vmatprep.subr.bf16.mxu0 %v1007
    %1631 = vmatpush1.bf16.msra.mxu0 %v1006
    %1632 = vmatprep.subr.bf16.mxu0 %v1010
    %1633 = vmatpush1.bf16.msra.mxu0 %v1009
    %1634 = vmatprep.subr.bf16.mxu0 %v1013
    %1635 = vmatpush1.bf16.msra.mxu0 %v1012
    %1636 = vmatprep.subr.bf16.mxu0 %v1016
    %1637 = vmatpush1.bf16.msra.mxu0 %v1015
    %1638 = vmatprep.subr.bf16.mxu0 %v1019
    %1639 = vmatpush1.bf16.msra.mxu0 %v1018
    %1640 = vmatprep.subr.bf16.mxu0 %v1022
    %1641 = vmatpush1.bf16.msra.mxu0 %v1021
    %1642 = vmatprep.subr.bf16.mxu0 %v1025
    %1643 = vmatpush1.bf16.msra.mxu0 %v1024
    %1644 = vmatprep.subr.bf16.mxu0 0
    %1645 = vmatpush1.bf16.msra.mxu0 0
    %1646 = vmatprep.subr.bf16.mxu0 0
    %1647 = vmatpush1.bf16.msra.mxu0 0
    %1648 = vmatprep.subr.bf16.mxu0 0
    %1649 = vmatpush1.bf16.msra.mxu0 0
    %1650 = vmatprep.subr.bf16.mxu0 0
    %1651 = vmatpush1.bf16.msra.mxu0 0
    %1652 = vmatprep.subr.bf16.mxu0 0
    %1653 = vmatpush1.bf16.msra.mxu0 0
    %1654 = vmatprep.subr.bf16.mxu0 0
    %1655 = vmatpush1.bf16.msra.mxu0 0
    %1656 = vmatprep.subr.bf16.mxu0 0
    %1657 = vmatpush1.bf16.msra.mxu0 0
    %1658 = vmatprep.subr.bf16.mxu0 0
    %1659 = vmatpush1.bf16.msra.mxu0 0
    %1660 = vmatprep.mubr.bf16.mxu0 0
    %1661 = vmatmul.mubr.bf16.gmra.mrb[0].mxu0 %v1627
    %v1662 = vpop.f32.mrb[0].mxu0
    %v1663 = vadd.f32 %v870, %v1662
    %v1664 = vpop.f32.mrb[0].mxu0
    %v1665 = vadd.f32 %v874, %v1664
    %v1666 = vpop.f32.mrb[0].mxu0
    %v1667 = vadd.f32 %v870, %v1666
    %v1668 = vpop.f32.mrb[0].mxu0
    %v1669 = vadd.f32 %v874, %v1668
    %1670 = vdwg.mxu0
    %1671 = vmatprep.subr.bf16.mxu0 0
    %1672 = vmatpush1.bf16.msra.mxu0 %v1005
    %1673 = vmatprep.subr.bf16.mxu0 0
    %1674 = vmatpush1.bf16.msra.mxu0 %v1008
    %1675 = vmatprep.subr.bf16.mxu0 0
    %1676 = vmatpush1.bf16.msra.mxu0 %v1011
    %1677 = vmatprep.subr.bf16.mxu0 0
    %1678 = vmatpush1.bf16.msra.mxu0 %v1014
    %1679 = vmatprep.subr.bf16.mxu0 0
    %1680 = vmatpush1.bf16.msra.mxu0 %v1017
    %1681 = vmatprep.subr.bf16.mxu0 0
    %1682 = vmatpush1.bf16.msra.mxu0 %v1020
    %1683 = vmatprep.subr.bf16.mxu0 0
    %1684 = vmatpush1.bf16.msra.mxu0 %v1023
    %1685 = vmatprep.subr.bf16.mxu0 0
    %1686 = vmatpush1.bf16.msra.mxu0 %v1026
    %1687 = vmatprep.subr.bf16.mxu0 0
    %1688 = vmatpush1.bf16.msra.mxu0 0
    %1689 = vmatprep.subr.bf16.mxu0 0
    %1690 = vmatpush1.bf16.msra.mxu0 0
    %1691 = vmatprep.subr.bf16.mxu0 0
    %1692 = vmatpush1.bf16.msra.mxu0 0
    %1693 = vmatprep.subr.bf16.mxu0 0
    %1694 = vmatpush1.bf16.msra.mxu0 0
    %1695 = vmatprep.subr.bf16.mxu0 0
    %1696 = vmatpush1.bf16.msra.mxu0 0
    %1697 = vmatprep.subr.bf16.mxu0 0
    %1698 = vmatpush1.bf16.msra.mxu0 0
    %1699 = vmatprep.subr.bf16.mxu0 0
    %1700 = vmatpush1.bf16.msra.mxu0 0
    %1701 = vmatprep.subr.bf16.mxu0 0
    %1702 = vmatpush1.bf16.msra.mxu0 0
    %1703 = vmatprep.mubr.bf16.mxu0 0
    %1704 = vmatmul.mubr.bf16.gmra.mrb[0].mxu0 %v1627
    %v1705 = vpop.f32.mrb[0].mxu0
    %v1706 = vadd.f32 %v878, %v1705
    %v1707 = vpop.f32.mrb[0].mxu0
    %v1708 = vpop.f32.mrb[0].mxu0
    %v1709 = vadd.f32 %v878, %v1708
    %v1710 = vpop.f32.mrb[0].mxu0
    %1711 = vdwg.mxu0
    %v1712 = vadd.f32 %v1621, %v1663
    %v1713 = vadd.f32 %v1624, %v1667
    %v1714 = vxor.u32 %v1712, 2147483648
    %v1715 = vxor.u32 %v1713, 2147483648
    %v1716 = vmul.f32 %v1714, 1.442695
    %v1717 = vpow.pop %v1716
    %v1718 = vmul.f32 %v1715, 1.442695
    %v1719 = vpow.pop %v1718
    %v1720 = vadd.f32 %v1717, 1.0
    %v1721 = vadd.f32 %v1719, 1.0
    %v1722 = vrcp.pop %v1720
    %v1723 = vmul.f32 1.0, %v1722
    %v1724 = vrcp.pop %v1721
    %v1725 = vmul.f32 1.0, %v1724
    %v1726 = vadd.f32 %v1622, %v1665
    %v1727 = vadd.f32 %v1625, %v1669
    %v1728 = vxor.u32 %v1726, 2147483648
    %v1729 = vxor.u32 %v1727, 2147483648
    %v1730 = vmul.f32 %v1728, 1.442695
    %v1731 = vpow.pop %v1730
    %v1732 = vmul.f32 %v1729, 1.442695
    %v1733 = vpow.pop %v1732
    %v1734 = vadd.f32 %v1731, 1.0
    %v1735 = vadd.f32 %v1733, 1.0
    %v1736 = vrcp.pop %v1734
    %v1737 = vmul.f32 1.0, %v1736
    %v1738 = vrcp.pop %v1735
    %v1739 = vmul.f32 1.0, %v1738
    %v1740 = vmul.f32 %v1723, %v1706
    %v1741 = vmul.f32 %v1725, %v1709
    %v1742 = vadd.f32 %v1623, %v1740
    %v1743 = vadd.f32 %v1626, %v1741
    %v1744 = vtanh.pop %v1742
    %v1745 = vtanh.pop %v1743
    %v1746 = vsub.f32 1.0, %v1737
    %v1747 = vsub.f32 1.0, %v1739
    %v1748 = vmul.f32 %v1746, %v1744
    %v1749 = vmul.f32 %v1747, %v1745
    %v1750 = vmul.f32 %v1737, %v1616
    %v1751 = vmul.f32 %v1739, %v1617
    %v1752 = vadd.f32 %v1748, %v1750
    %v1753 = vadd.f32 %v1749, %v1751
    %s1754 = scalar_lea.vmem [#allocation5], 64
    %v1755 = vld [vmem:[%s1754] sm:$0xff]
    %v1756 = vld [vmem:[%s1754 + $0x8] sm:$0xff]
    %v1757 = vsub.f32 %v1752, %v1616
    %v1758 = vsub.f32 %v1753, %v1617
    %v1759 = vmul.f32 %v1755, %v1757
    %v1760 = vmul.f32 %v1756, %v1758
    %v1761 = vadd.f32 %v1616, %v1759
    %v1762 = vadd.f32 %v1617, %v1760
    %s1763 = smul.u32 10, 3
    %s1764 = smul.addr %s1763, 8
    %s1765 = scalar_lea.vmem [#allocation2], %s1764
    %v1766 = vld [vmem:[%s1765] sm:$0xff]
    %v1767 = vld [vmem:[%s1765 + $0x8] sm:$0xff]
    %v1768 = vld [vmem:[%s1765 + $0x10] sm:$0xff]
    %v1769 = vld [vmem:[%s1765 + $0x18] sm:$0xff]
    %v1770 = vld [vmem:[%s1765 + $0x20] sm:$0xff]
    %v1771 = vld [vmem:[%s1765 + $0x28] sm:$0xff]
    %v1772 = vpack.c.bf16 %v1762, %v1761
    %1773 = vmatprep.subr.bf16.mxu0 %v1004
    %1774 = vmatpush1.bf16.msra.mxu0 %v1003
    %1775 = vmatprep.subr.bf16.mxu0 %v1007
    %1776 = vmatpush1.bf16.msra.mxu0 %v1006
    %1777 = vmatprep.subr.bf16.mxu0 %v1010
    %1778 = vmatpush1.bf16.msra.mxu0 %v1009
    %1779 = vmatprep.subr.bf16.mxu0 %v1013
    %1780 = vmatpush1.bf16.msra.mxu0 %v1012
    %1781 = vmatprep.subr.bf16.mxu0 %v1016
    %1782 = vmatpush1.bf16.msra.mxu0 %v1015
    %1783 = vmatprep.subr.bf16.mxu0 %v1019
    %1784 = vmatpush1.bf16.msra.mxu0 %v1018
    %1785 = vmatprep.subr.bf16.mxu0 %v1022
    %1786 = vmatpush1.bf16.msra.mxu0 %v1021
    %1787 = vmatprep.subr.bf16.mxu0 %v1025
    %1788 = vmatpush1.bf16.msra.mxu0 %v1024
    %1789 = vmatprep.subr.bf16.mxu0 0
    %1790 = vmatpush1.bf16.msra.mxu0 0
    %1791 = vmatprep.subr.bf16.mxu0 0
    %1792 = vmatpush1.bf16.msra.mxu0 0
    %1793 = vmatprep.subr.bf16.mxu0 0
    %1794 = vmatpush1.bf16.msra.mxu0 0
    %1795 = vmatprep.subr.bf16.mxu0 0
    %1796 = vmatpush1.bf16.msra.mxu0 0
    %1797 = vmatprep.subr.bf16.mxu0 0
    %1798 = vmatpush1.bf16.msra.mxu0 0
    %1799 = vmatprep.subr.bf16.mxu0 0
    %1800 = vmatpush1.bf16.msra.mxu0 0
    %1801 = vmatprep.subr.bf16.mxu0 0
    %1802 = vmatpush1.bf16.msra.mxu0 0
    %1803 = vmatprep.subr.bf16.mxu0 0
    %1804 = vmatpush1.bf16.msra.mxu0 0
    %1805 = vmatprep.mubr.bf16.mxu0 0
    %1806 = vmatmul.mubr.bf16.gmra.mrb[0].mxu0 %v1772
    %v1807 = vpop.f32.mrb[0].mxu0
    %v1808 = vadd.f32 %v870, %v1807
    %v1809 = vpop.f32.mrb[0].mxu0
    %v1810 = vadd.f32 %v874, %v1809
    %v1811 = vpop.f32.mrb[0].mxu0
    %v1812 = vadd.f32 %v870, %v1811
    %v1813 = vpop.f32.mrb[0].mxu0
    %v1814 = vadd.f32 %v874, %v1813
    %1815 = vdwg.mxu0
    %1816 = vmatprep.subr.bf16.mxu0 0
    %1817 = vmatpush1.bf16.msra.mxu0 %v1005
    %1818 = vmatprep.subr.bf16.mxu0 0
    %1819 = vmatpush1.bf16.msra.mxu0 %v1008
    %1820 = vmatprep.subr.bf16.mxu0 0
    %1821 = vmatpush1.bf16.msra.mxu0 %v1011
    %1822 = vmatprep.subr.bf16.mxu0 0
    %1823 = vmatpush1.bf16.msra.mxu0 %v1014
    %1824 = vmatprep.subr.bf16.mxu0 0
    %1825 = vmatpush1.bf16.msra.mxu0 %v1017
    %1826 = vmatprep.subr.bf16.mxu0 0
    %1827 = vmatpush1.bf16.msra.mxu0 %v1020
    %1828 = vmatprep.subr.bf16.mxu0 0
    %1829 = vmatpush1.bf16.msra.mxu0 %v1023
    %1830 = vmatprep.subr.bf16.mxu0 0
    %1831 = vmatpush1.bf16.msra.mxu0 %v1026
    %1832 = vmatprep.subr.bf16.mxu0 0
    %1833 = vmatpush1.bf16.msra.mxu0 0
    %1834 = vmatprep.subr.bf16.mxu0 0
    %1835 = vmatpush1.bf16.msra.mxu0 0
    %1836 = vmatprep.subr.bf16.mxu0 0
    %1837 = vmatpush1.bf16.msra.mxu0 0
    %1838 = vmatprep.subr.bf16.mxu0 0
    %1839 = vmatpush1.bf16.msra.mxu0 0
    %1840 = vmatprep.subr.bf16.mxu0 0
    %1841 = vmatpush1.bf16.msra.mxu0 0
    %1842 = vmatprep.subr.bf16.mxu0 0
    %1843 = vmatpush1.bf16.msra.mxu0 0
    %1844 = vmatprep.subr.bf16.mxu0 0
    %1845 = vmatpush1.bf16.msra.mxu0 0
    %1846 = vmatprep.subr.bf16.mxu0 0
    %1847 = vmatpush1.bf16.msra.mxu0 0
    %1848 = vmatprep.mubr.bf16.mxu0 0
    %1849 = vmatmul.mubr.bf16.gmra.mrb[0].mxu0 %v1772
    %v1850 = vpop.f32.mrb[0].mxu0
    %v1851 = vadd.f32 %v878, %v1850
    %v1852 = vpop.f32.mrb[0].mxu0
    %v1853 = vpop.f32.mrb[0].mxu0
    %v1854 = vadd.f32 %v878, %v1853
    %v1855 = vpop.f32.mrb[0].mxu0
    %1856 = vdwg.mxu0
    %v1857 = vadd.f32 %v1766, %v1808
    %v1858 = vadd.f32 %v1769, %v1812
    %v1859 = vxor.u32 %v1857, 2147483648
    %v1860 = vxor.u32 %v1858, 2147483648
    %v1861 = vmul.f32 %v1859, 1.442695
    %v1862 = vpow.pop %v1861
    %v1863 = vmul.f32 %v1860, 1.442695
    %v1864 = vpow.pop %v1863
    %v1865 = vadd.f32 %v1862, 1.0
    %v1866 = vadd.f32 %v1864, 1.0
    %v1867 = vrcp.pop %v1865
    %v1868 = vmul.f32 1.0, %v1867
    %v1869 = vrcp.pop %v1866
    %v1870 = vmul.f32 1.0, %v1869
    %v1871 = vadd.f32 %v1767, %v1810
    %v1872 = vadd.f32 %v1770, %v1814
    %v1873 = vxor.u32 %v1871, 2147483648
    %v1874 = vxor.u32 %v1872, 2147483648
    %v1875 = vmul.f32 %v1873, 1.442695
    %v1876 = vpow.pop %v1875
    %v1877 = vmul.f32 %v1874, 1.442695
    %v1878 = vpow.pop %v1877
    %v1879 = vadd.f32 %v1876, 1.0
    %v1880 = vadd.f32 %v1878, 1.0
    %v1881 = vrcp.pop %v1879
    %v1882 = vmul.f32 1.0, %v1881
    %v1883 = vrcp.pop %v1880
    %v1884 = vmul.f32 1.0, %v1883
    %v1885 = vmul.f32 %v1868, %v1851
    %v1886 = vmul.f32 %v1870, %v1854
    %v1887 = vadd.f32 %v1768, %v1885
    %v1888 = vadd.f32 %v1771, %v1886
    %v1889 = vtanh.pop %v1887
    %v1890 = vtanh.pop %v1888
    %v1891 = vsub.f32 1.0, %v1882
    %v1892 = vsub.f32 1.0, %v1884
    %v1893 = vmul.f32 %v1891, %v1889
    %v1894 = vmul.f32 %v1892, %v1890
    %v1895 = vmul.f32 %v1882, %v1761
    %v1896 = vmul.f32 %v1884, %v1762
    %v1897 = vadd.f32 %v1893, %v1895
    %v1898 = vadd.f32 %v1894, %v1896
    %s1899 = scalar_lea.vmem [#allocation5], 80
    %v1900 = vld [vmem:[%s1899] sm:$0xff]
    %v1901 = vld [vmem:[%s1899 + $0x8] sm:$0xff]
    %v1902 = vsub.f32 %v1897, %v1761
    %v1903 = vsub.f32 %v1898, %v1762
    %v1904 = vmul.f32 %v1900, %v1902
    %v1905 = vmul.f32 %v1901, %v1903
    %v1906 = vadd.f32 %v1761, %v1904
    %v1907 = vadd.f32 %v1762, %v1905
    %s1908 = smul.u32 12, 3
    %s1909 = smul.addr %s1908, 8
    %s1910 = scalar_lea.vmem [#allocation2], %s1909
    %v1911 = vld [vmem:[%s1910] sm:$0xff]
    %v1912 = vld [vmem:[%s1910 + $0x8] sm:$0xff]
    %v1913 = vld [vmem:[%s1910 + $0x10] sm:$0xff]
    %v1914 = vld [vmem:[%s1910 + $0x18] sm:$0xff]
    %v1915 = vld [vmem:[%s1910 + $0x20] sm:$0xff]
    %v1916 = vld [vmem:[%s1910 + $0x28] sm:$0xff]
    %v1917 = vpack.c.bf16 %v1907, %v1906
    %1918 = vmatprep.subr.bf16.mxu0 %v1004
    %1919 = vmatpush1.bf16.msra.mxu0 %v1003
    %1920 = vmatprep.subr.bf16.mxu0 %v1007
    %1921 = vmatpush1.bf16.msra.mxu0 %v1006
    %1922 = vmatprep.subr.bf16.mxu0 %v1010
    %1923 = vmatpush1.bf16.msra.mxu0 %v1009
    %1924 = vmatprep.subr.bf16.mxu0 %v1013
    %1925 = vmatpush1.bf16.msra.mxu0 %v1012
    %1926 = vmatprep.subr.bf16.mxu0 %v1016
    %1927 = vmatpush1.bf16.msra.mxu0 %v1015
    %1928 = vmatprep.subr.bf16.mxu0 %v1019
    %1929 = vmatpush1.bf16.msra.mxu0 %v1018
    %1930 = vmatprep.subr.bf16.mxu0 %v1022
    %1931 = vmatpush1.bf16.msra.mxu0 %v1021
    %1932 = vmatprep.subr.bf16.mxu0 %v1025
    %1933 = vmatpush1.bf16.msra.mxu0 %v1024
    %1934 = vmatprep.subr.bf16.mxu0 0
    %1935 = vmatpush1.bf16.msra.mxu0 0
    %1936 = vmatprep.subr.bf16.mxu0 0
    %1937 = vmatpush1.bf16.msra.mxu0 0
    %1938 = vmatprep.subr.bf16.mxu0 0
    %1939 = vmatpush1.bf16.msra.mxu0 0
    %1940 = vmatprep.subr.bf16.mxu0 0
    %1941 = vmatpush1.bf16.msra.mxu0 0
    %1942 = vmatprep.subr.bf16.mxu0 0
    %1943 = vmatpush1.bf16.msra.mxu0 0
    %1944 = vmatprep.subr.bf16.mxu0 0
    %1945 = vmatpush1.bf16.msra.mxu0 0
    %1946 = vmatprep.subr.bf16.mxu0 0
    %1947 = vmatpush1.bf16.msra.mxu0 0
    %1948 = vmatprep.subr.bf16.mxu0 0
    %1949 = vmatpush1.bf16.msra.mxu0 0
    %1950 = vmatprep.mubr.bf16.mxu0 0
    %1951 = vmatmul.mubr.bf16.gmra.mrb[0].mxu0 %v1917
    %v1952 = vpop.f32.mrb[0].mxu0
    %v1953 = vadd.f32 %v870, %v1952
    %v1954 = vpop.f32.mrb[0].mxu0
    %v1955 = vadd.f32 %v874, %v1954
    %v1956 = vpop.f32.mrb[0].mxu0
    %v1957 = vadd.f32 %v870, %v1956
    %v1958 = vpop.f32.mrb[0].mxu0
    %v1959 = vadd.f32 %v874, %v1958
    %1960 = vdwg.mxu0
    %1961 = vmatprep.subr.bf16.mxu0 0
    %1962 = vmatpush1.bf16.msra.mxu0 %v1005
    %1963 = vmatprep.subr.bf16.mxu0 0
    %1964 = vmatpush1.bf16.msra.mxu0 %v1008
    %1965 = vmatprep.subr.bf16.mxu0 0
    %1966 = vmatpush1.bf16.msra.mxu0 %v1011
    %1967 = vmatprep.subr.bf16.mxu0 0
    %1968 = vmatpush1.bf16.msra.mxu0 %v1014
    %1969 = vmatprep.subr.bf16.mxu0 0
    %1970 = vmatpush1.bf16.msra.mxu0 %v1017
    %1971 = vmatprep.subr.bf16.mxu0 0
    %1972 = vmatpush1.bf16.msra.mxu0 %v1020
    %1973 = vmatprep.subr.bf16.mxu0 0
    %1974 = vmatpush1.bf16.msra.mxu0 %v1023
    %1975 = vmatprep.subr.bf16.mxu0 0
    %1976 = vmatpush1.bf16.msra.mxu0 %v1026
    %1977 = vmatprep.subr.bf16.mxu0 0
    %1978 = vmatpush1.bf16.msra.mxu0 0
    %1979 = vmatprep.subr.bf16.mxu0 0
    %1980 = vmatpush1.bf16.msra.mxu0 0
    %1981 = vmatprep.subr.bf16.mxu0 0
    %1982 = vmatpush1.bf16.msra.mxu0 0
    %1983 = vmatprep.subr.bf16.mxu0 0
    %1984 = vmatpush1.bf16.msra.mxu0 0
    %1985 = vmatprep.subr.bf16.mxu0 0
    %1986 = vmatpush1.bf16.msra.mxu0 0
    %1987 = vmatprep.subr.bf16.mxu0 0
    %1988 = vmatpush1.bf16.msra.mxu0 0
    %1989 = vmatprep.subr.bf16.mxu0 0
    %1990 = vmatpush1.bf16.msra.mxu0 0
    %1991 = vmatprep.subr.bf16.mxu0 0
    %1992 = vmatpush1.bf16.msra.mxu0 0
    %1993 = vmatprep.mubr.bf16.mxu0 0
    %1994 = vmatmul.mubr.bf16.gmra.mrb[0].mxu0 %v1917
    %v1995 = vpop.f32.mrb[0].mxu0
    %v1996 = vadd.f32 %v878, %v1995
    %v1997 = vpop.f32.mrb[0].mxu0
    %v1998 = vpop.f32.mrb[0].mxu0
    %v1999 = vadd.f32 %v878, %v1998
    %v2000 = vpop.f32.mrb[0].mxu0
    %2001 = vdwg.mxu0
    %v2002 = vadd.f32 %v1911, %v1953
    %v2003 = vadd.f32 %v1914, %v1957
    %v2004 = vxor.u32 %v2002, 2147483648
    %v2005 = vxor.u32 %v2003, 2147483648
    %v2006 = vmul.f32 %v2004, 1.442695
    %v2007 = vpow.pop %v2006
    %v2008 = vmul.f32 %v2005, 1.442695
    %v2009 = vpow.pop %v2008
    %v2010 = vadd.f32 %v2007, 1.0
    %v2011 = vadd.f32 %v2009, 1.0
    %v2012 = vrcp.pop %v2010
    %v2013 = vmul.f32 1.0, %v2012
    %v2014 = vrcp.pop %v2011
    %v2015 = vmul.f32 1.0, %v2014
    %v2016 = vadd.f32 %v1912, %v1955
    %v2017 = vadd.f32 %v1915, %v1959
    %v2018 = vxor.u32 %v2016, 2147483648
    %v2019 = vxor.u32 %v2017, 2147483648
    %v2020 = vmul.f32 %v2018, 1.442695
    %v2021 = vpow.pop %v2020
    %v2022 = vmul.f32 %v2019, 1.442695
    %v2023 = vpow.pop %v2022
    %v2024 = vadd.f32 %v2021, 1.0
    %v2025 = vadd.f32 %v2023, 1.0
    %v2026 = vrcp.pop %v2024
    %v2027 = vmul.f32 1.0, %v2026
    %v2028 = vrcp.pop %v2025
    %v2029 = vmul.f32 1.0, %v2028
    %v2030 = vmul.f32 %v2013, %v1996
    %v2031 = vmul.f32 %v2015, %v1999
    %v2032 = vadd.f32 %v1913, %v2030
    %v2033 = vadd.f32 %v1916, %v2031
    %v2034 = vtanh.pop %v2032
    %v2035 = vtanh.pop %v2033
    %v2036 = vsub.f32 1.0, %v2027
    %v2037 = vsub.f32 1.0, %v2029
    %v2038 = vmul.f32 %v2036, %v2034
    %v2039 = vmul.f32 %v2037, %v2035
    %v2040 = vmul.f32 %v2027, %v1906
    %v2041 = vmul.f32 %v2029, %v1907
    %v2042 = vadd.f32 %v2038, %v2040
    %v2043 = vadd.f32 %v2039, %v2041
    %s2044 = scalar_lea.vmem [#allocation5], 96
    %v2045 = vld [vmem:[%s2044] sm:$0xff]
    %v2046 = vld [vmem:[%s2044 + $0x8] sm:$0xff]
    %v2047 = vsub.f32 %v2042, %v1906
    %v2048 = vsub.f32 %v2043, %v1907
    %v2049 = vmul.f32 %v2045, %v2047
    %v2050 = vmul.f32 %v2046, %v2048
    %v2051 = vadd.f32 %v1906, %v2049
    %v2052 = vadd.f32 %v1907, %v2050
    %s2053 = smul.u32 14, 3
    %s2054 = smul.addr %s2053, 8
    %s2055 = scalar_lea.vmem [#allocation2], %s2054
    %v2056 = vld [vmem:[%s2055] sm:$0xff]
    %v2057 = vld [vmem:[%s2055 + $0x8] sm:$0xff]
    %v2058 = vld [vmem:[%s2055 + $0x10] sm:$0xff]
    %v2059 = vld [vmem:[%s2055 + $0x18] sm:$0xff]
    %v2060 = vld [vmem:[%s2055 + $0x20] sm:$0xff]
    %v2061 = vld [vmem:[%s2055 + $0x28] sm:$0xff]
    %v2062 = vpack.c.bf16 %v2052, %v2051
    %2063 = vmatprep.subr.bf16.mxu0 %v1004
    %2064 = vmatpush1.bf16.msra.mxu0 %v1003
    %2065 = vmatprep.subr.bf16.mxu0 %v1007
    %2066 = vmatpush1.bf16.msra.mxu0 %v1006
    %2067 = vmatprep.subr.bf16.mxu0 %v1010
    %2068 = vmatpush1.bf16.msra.mxu0 %v1009
    %2069 = vmatprep.subr.bf16.mxu0 %v1013
    %2070 = vmatpush1.bf16.msra.mxu0 %v1012
    %2071 = vmatprep.subr.bf16.mxu0 %v1016
    %2072 = vmatpush1.bf16.msra.mxu0 %v1015
    %2073 = vmatprep.subr.bf16.mxu0 %v1019
    %2074 = vmatpush1.bf16.msra.mxu0 %v1018
    %2075 = vmatprep.subr.bf16.mxu0 %v1022
    %2076 = vmatpush1.bf16.msra.mxu0 %v1021
    %2077 = vmatprep.subr.bf16.mxu0 %v1025
    %2078 = vmatpush1.bf16.msra.mxu0 %v1024
    %2079 = vmatprep.subr.bf16.mxu0 0
    %2080 = vmatpush1.bf16.msra.mxu0 0
    %2081 = vmatprep.subr.bf16.mxu0 0
    %2082 = vmatpush1.bf16.msra.mxu0 0
    %2083 = vmatprep.subr.bf16.mxu0 0
    %2084 = vmatpush1.bf16.msra.mxu0 0
    %2085 = vmatprep.subr.bf16.mxu0 0
    %2086 = vmatpush1.bf16.msra.mxu0 0
    %2087 = vmatprep.subr.bf16.mxu0 0
    %2088 = vmatpush1.bf16.msra.mxu0 0
    %2089 = vmatprep.subr.bf16.mxu0 0
    %2090 = vmatpush1.bf16.msra.mxu0 0
    %2091 = vmatprep.subr.bf16.mxu0 0
    %2092 = vmatpush1.bf16.msra.mxu0 0
    %2093 = vmatprep.subr.bf16.mxu0 0
    %2094 = vmatpush1.bf16.msra.mxu0 0
    %2095 = vmatprep.mubr.bf16.mxu0 0
    %2096 = vmatmul.mubr.bf16.gmra.mrb[0].mxu0 %v2062
    %v2097 = vpop.f32.mrb[0].mxu0
    %v2098 = vadd.f32 %v870, %v2097
    %v2099 = vpop.f32.mrb[0].mxu0
    %v2100 = vadd.f32 %v874, %v2099
    %v2101 = vpop.f32.mrb[0].mxu0
    %v2102 = vadd.f32 %v870, %v2101
    %v2103 = vpop.f32.mrb[0].mxu0
    %v2104 = vadd.f32 %v874, %v2103
    %2105 = vdwg.mxu0
    %2106 = vmatprep.subr.bf16.mxu0 0
    %2107 = vmatpush1.bf16.msra.mxu0 %v1005
    %2108 = vmatprep.subr.bf16.mxu0 0
    %2109 = vmatpush1.bf16.msra.mxu0 %v1008
    %2110 = vmatprep.subr.bf16.mxu0 0
    %2111 = vmatpush1.bf16.msra.mxu0 %v1011
    %2112 = vmatprep.subr.bf16.mxu0 0
    %2113 = vmatpush1.bf16.msra.mxu0 %v1014
    %2114 = vmatprep.subr.bf16.mxu0 0
    %2115 = vmatpush1.bf16.msra.mxu0 %v1017
    %2116 = vmatprep.subr.bf16.mxu0 0
    %2117 = vmatpush1.bf16.msra.mxu0 %v1020
    %2118 = vmatprep.subr.bf16.mxu0 0
    %2119 = vmatpush1.bf16.msra.mxu0 %v1023
    %2120 = vmatprep.subr.bf16.mxu0 0
    %2121 = vmatpush1.bf16.msra.mxu0 %v1026
    %2122 = vmatprep.subr.bf16.mxu0 0
    %2123 = vmatpush1.bf16.msra.mxu0 0
    %2124 = vmatprep.subr.bf16.mxu0 0
    %2125 = vmatpush1.bf16.msra.mxu0 0
    %2126 = vmatprep.subr.bf16.mxu0 0
    %2127 = vmatpush1.bf16.msra.mxu0 0
    %2128 = vmatprep.subr.bf16.mxu0 0
    %2129 = vmatpush1.bf16.msra.mxu0 0
    %2130 = vmatprep.subr.bf16.mxu0 0
    %2131 = vmatpush1.bf16.msra.mxu0 0
    %2132 = vmatprep.subr.bf16.mxu0 0
    %2133 = vmatpush1.bf16.msra.mxu0 0
    %2134 = vmatprep.subr.bf16.mxu0 0
    %2135 = vmatpush1.bf16.msra.mxu0 0
    %2136 = vmatprep.subr.bf16.mxu0 0
    %2137 = vmatpush1.bf16.msra.mxu0 0
    %2138 = vmatprep.mubr.bf16.mxu0 0
    %2139 = vmatmul.mubr.bf16.gmra.mrb[0].mxu0 %v2062
    %v2140 = vpop.f32.mrb[0].mxu0
    %v2141 = vadd.f32 %v878, %v2140
    %v2142 = vpop.f32.mrb[0].mxu0
    %v2143 = vpop.f32.mrb[0].mxu0
    %v2144 = vadd.f32 %v878, %v2143
    %v2145 = vpop.f32.mrb[0].mxu0
    %2146 = vdwg.mxu0
    %v2147 = vadd.f32 %v2056, %v2098
    %v2148 = vadd.f32 %v2059, %v2102
    %v2149 = vxor.u32 %v2147, 2147483648
    %v2150 = vxor.u32 %v2148, 2147483648
    %v2151 = vmul.f32 %v2149, 1.442695
    %v2152 = vpow.pop %v2151
    %v2153 = vmul.f32 %v2150, 1.442695
    %v2154 = vpow.pop %v2153
    %v2155 = vadd.f32 %v2152, 1.0
    %v2156 = vadd.f32 %v2154, 1.0
    %v2157 = vrcp.pop %v2155
    %v2158 = vmul.f32 1.0, %v2157
    %v2159 = vrcp.pop %v2156
    %v2160 = vmul.f32 1.0, %v2159
    %v2161 = vadd.f32 %v2057, %v2100
    %v2162 = vadd.f32 %v2060, %v2104
    %v2163 = vxor.u32 %v2161, 2147483648
    %v2164 = vxor.u32 %v2162, 2147483648
    %v2165 = vmul.f32 %v2163, 1.442695
    %v2166 = vpow.pop %v2165
    %v2167 = vmul.f32 %v2164, 1.442695
    %v2168 = vpow.pop %v2167
    %v2169 = vadd.f32 %v2166, 1.0
    %v2170 = vadd.f32 %v2168, 1.0
    %v2171 = vrcp.pop %v2169
    %v2172 = vmul.f32 1.0, %v2171
    %v2173 = vrcp.pop %v2170
    %v2174 = vmul.f32 1.0, %v2173
    %v2175 = vmul.f32 %v2158, %v2141
    %v2176 = vmul.f32 %v2160, %v2144
    %v2177 = vadd.f32 %v2058, %v2175
    %v2178 = vadd.f32 %v2061, %v2176
    %v2179 = vtanh.pop %v2177
    %v2180 = vtanh.pop %v2178
    %v2181 = vsub.f32 1.0, %v2172
    %v2182 = vsub.f32 1.0, %v2174
    %v2183 = vmul.f32 %v2181, %v2179
    %v2184 = vmul.f32 %v2182, %v2180
    %v2185 = vmul.f32 %v2172, %v2051
    %v2186 = vmul.f32 %v2174, %v2052
    %v2187 = vadd.f32 %v2183, %v2185
    %v2188 = vadd.f32 %v2184, %v2186
    %s2189 = scalar_lea.vmem [#allocation5], 112
    %v2190 = vld [vmem:[%s2189] sm:$0xff]
    %v2191 = vld [vmem:[%s2189 + $0x8] sm:$0xff]
    %v2192 = vsub.f32 %v2187, %v2051
    %v2193 = vsub.f32 %v2188, %v2052
    %v2194 = vmul.f32 %v2190, %v2192
    %v2195 = vmul.f32 %v2191, %v2193
    %v2196 = vadd.f32 %v2051, %v2194
    %v2197 = vadd.f32 %v2052, %v2195
    %v2198 = vpack.c.bf16 %v2197, %v2196
    %v2199 = vld [vmem:[#allocation11] sm:$0xff]
    %v2200 = vld [vmem:[#allocation11 + $0x8] sm:$0xff]
    %v2201 = vld [vmem:[#allocation11 + $0x10] sm:$0xff]
    %v2202 = vld [vmem:[#allocation11 + $0x18] sm:$0xff]
    %v2203 = vld [vmem:[#allocation11 + $0x20] sm:$0xff]
    %v2204 = vld [vmem:[#allocation11 + $0x28] sm:$0xff]
    %v2205 = vld [vmem:[#allocation11 + $0x30] sm:$0xff]
    %v2206 = vld [vmem:[#allocation11 + $0x38] sm:$0xff]
    %v2207 = vld [vmem:[#allocation11 + $0x40] sm:$0xff]
    %v2208 = vld [vmem:[#allocation11 + $0x48] sm:$0xff]
    %v2209 = vld [vmem:[#allocation11 + $0x50] sm:$0xff]
    %v2210 = vld [vmem:[#allocation11 + $0x58] sm:$0xff]
    %v2211 = vld [vmem:[#allocation11 + $0x60] sm:$0xff]
    %v2212 = vld [vmem:[#allocation11 + $0x68] sm:$0xff]
    %v2213 = vld [vmem:[#allocation11 + $0x70] sm:$0xff]
    %v2214 = vld [vmem:[#allocation11 + $0x78] sm:$0xff]
    %v2215 = vld [vmem:[%s8] sm:$0x3]
    %v2217 = vlaneseq
    %v2218 = vshrl.u32 %v2217, 7
    %v2219 = vsub.s32 0, %v2218
    %v2220 = vrot.slane %v2215, %v2219
    %v2221 = vlaneseq
    %v2222 = vshrl.u32 %v2221, 7
    %v2223 = vsub.s32 1, %v2222
    %v2224 = vrot.slane %v2215, %v2223
    %v2243 = vunpack.c.l.b16 %v2199
    %v2244 = vunpack.c.h.b16 %v2199
    %v2245 = vunpack.c.l.b16 %v2200
    %v2246 = vunpack.c.h.b16 %v2200
    %v2247 = vunpack.c.l.b16 %v2201
    %v2248 = vunpack.c.h.b16 %v2201
    %v2249 = vunpack.c.l.b16 %v2202
    %v2250 = vunpack.c.h.b16 %v2202
    %v2251 = vunpack.c.l.b16 %v2203
    %v2252 = vunpack.c.h.b16 %v2203
    %v2253 = vunpack.c.l.b16 %v2204
    %v2254 = vunpack.c.h.b16 %v2204
    %v2255 = vunpack.c.l.b16 %v2205
    %v2256 = vunpack.c.h.b16 %v2205
    %v2257 = vunpack.c.l.b16 %v2206
    %v2258 = vunpack.c.h.b16 %v2206
    %v2259 = vunpack.c.l.b16 %v2207
    %v2260 = vunpack.c.h.b16 %v2207
    %v2261 = vunpack.c.l.b16 %v2208
    %v2262 = vunpack.c.h.b16 %v2208
    %v2263 = vunpack.c.l.b16 %v2209
    %v2264 = vunpack.c.h.b16 %v2209
    %v2265 = vunpack.c.l.b16 %v2210
    %v2266 = vunpack.c.h.b16 %v2210
    %v2267 = vunpack.c.l.b16 %v2211
    %v2268 = vunpack.c.h.b16 %v2211
    %v2269 = vunpack.c.l.b16 %v2212
    %v2270 = vunpack.c.h.b16 %v2212
    %v2271 = vunpack.c.l.b16 %v2213
    %v2272 = vunpack.c.h.b16 %v2213
    %v2273 = vunpack.c.l.b16 %v2214
    %v2274 = vunpack.c.h.b16 %v2214
    %v2275 = vpack.c.b16 %v2245, %v2243
    %v2276 = vpack.c.b16 %v2246, %v2244
    %v2277 = vpack.c.b16 %v2249, %v2247
    %v2278 = vpack.c.b16 %v2250, %v2248
    %v2279 = vpack.c.b16 %v2253, %v2251
    %v2280 = vpack.c.b16 %v2254, %v2252
    %v2281 = vpack.c.b16 %v2257, %v2255
    %v2282 = vpack.c.b16 %v2258, %v2256
    %v2283 = vpack.c.b16 %v2261, %v2259
    %v2284 = vpack.c.b16 %v2262, %v2260
    %v2285 = vpack.c.b16 %v2265, %v2263
    %v2286 = vpack.c.b16 %v2266, %v2264
    %v2287 = vpack.c.b16 %v2269, %v2267
    %v2288 = vpack.c.b16 %v2270, %v2268
    %v2289 = vpack.c.b16 %v2273, %v2271
    %v2290 = vpack.c.b16 %v2274, %v2272
    %2307 = vmatprep.subr.bf16.mxu0 %v2276
    %2308 = vmatpush1.bf16.msra.mxu0 %v2275
    %2309 = vmatprep.subr.bf16.mxu0 %v2278
    %2310 = vmatpush1.bf16.msra.mxu0 %v2277
    %2311 = vmatprep.subr.bf16.mxu0 %v2280
    %2312 = vmatpush1.bf16.msra.mxu0 %v2279
    %2313 = vmatprep.subr.bf16.mxu0 %v2282
    %2314 = vmatpush1.bf16.msra.mxu0 %v2281
    %2315 = vmatprep.subr.bf16.mxu0 %v2284
    %2316 = vmatpush1.bf16.msra.mxu0 %v2283
    %2317 = vmatprep.subr.bf16.mxu0 %v2286
    %2318 = vmatpush1.bf16.msra.mxu0 %v2285
    %2319 = vmatprep.subr.bf16.mxu0 %v2288
    %2320 = vmatpush1.bf16.msra.mxu0 %v2287
    %2321 = vmatprep.subr.bf16.mxu0 %v2290
    %2322 = vmatpush1.bf16.msra.mxu0 %v2289
    %2323 = vmatprep.subr.bf16.mxu0 0
    %2324 = vmatpush1.bf16.msra.mxu0 0
    %2325 = vmatprep.subr.bf16.mxu0 0
    %2326 = vmatpush1.bf16.msra.mxu0 0
    %2327 = vmatprep.subr.bf16.mxu0 0
    %2328 = vmatpush1.bf16.msra.mxu0 0
    %2329 = vmatprep.subr.bf16.mxu0 0
    %2330 = vmatpush1.bf16.msra.mxu0 0
    %2331 = vmatprep.subr.bf16.mxu0 0
    %2332 = vmatpush1.bf16.msra.mxu0 0
    %2333 = vmatprep.subr.bf16.mxu0 0
    %2334 = vmatpush1.bf16.msra.mxu0 0
    %2335 = vmatprep.subr.bf16.mxu0 0
    %2336 = vmatpush1.bf16.msra.mxu0 0
    %2337 = vmatprep.subr.bf16.mxu0 0
    %2338 = vmatpush1.bf16.msra.mxu0 0
    %2339 = vmatprep.mubr.bf16.mxu0 0
    %2340 = vmatmul.mubr.bf16.gmra.mrb[0].mxu0 %v2198
    %v2341 = vpop.f32.mrb[0].mxu0
    %v2342 = vadd.f32 %v2220, %v2341
    %v2343 = vpop.f32.mrb[0].mxu0
    %v2344 = vadd.f32 %v2224, %v2343
    %v2345 = vpop.f32.mrb[0].mxu0
    %v2346 = vadd.f32 %v2220, %v2345
    %v2347 = vpop.f32.mrb[0].mxu0
    %v2348 = vadd.f32 %v2224, %v2347
    %2349 = vdwg.mxu0
    %v2350 = vmul.f32 %v2344, 1.442695
    %v2351 = vpow.pop %v2350
    %v2352 = vmul.f32 %v2348, 1.442695
    %v2353 = vpow.pop %v2352
    %v2354 = vld [vmem:[%s2] sm:$0xff]
    %v2355 = vld [vmem:[%s2 + $0x8] sm:$0xff]
    %v2356 = vmul.f32 %v2351, %v2354
    %v2357 = vmul.f32 %v2353, %v2355
    %v2358 = vadd.f32 %v2342, %v2356
    %v2359 = vadd.f32 %v2346, %v2357
    %2360 = vst [vmem:[#allocation19] sm:$0xff] %v2342
    %2361 = vst [vmem:[#allocation19 + $0x8] sm:$0xff] %v2346
    %2362 = vst [vmem:[#allocation20] sm:$0xff] %v2351
    %2363 = vst [vmem:[#allocation20 + $0x8] sm:$0xff] %v2353
    %2364 = vst [vmem:[#allocation17] sm:$0xff] %v2358
    %2365 = vst [vmem:[#allocation17 + $0x8] sm:$0xff] %v2359
    %v2366 = vpack.c.bf16 %v2359, %v2358
    %v2367 = vld [vmem:[#allocation13] sm:$0xff]
    %v2368 = vld [vmem:[#allocation13 + $0x8] sm:$0xf]
    %v2369 = vld [vmem:[#allocation13 + $0xc] sm:$0xff]
    %v2370 = vld [vmem:[#allocation13 + $0x14] sm:$0xf]
    %v2371 = vld [vmem:[#allocation13 + $0x18] sm:$0xff]
    %v2372 = vld [vmem:[#allocation13 + $0x20] sm:$0xf]
    %v2373 = vld [vmem:[#allocation13 + $0x24] sm:$0xff]
    %v2374 = vld [vmem:[#allocation13 + $0x2c] sm:$0xf]
    %v2375 = vld [vmem:[#allocation13 + $0x30] sm:$0xff]
    %v2376 = vld [vmem:[#allocation13 + $0x38] sm:$0xf]
    %v2377 = vld [vmem:[#allocation13 + $0x3c] sm:$0xff]
    %v2378 = vld [vmem:[#allocation13 + $0x44] sm:$0xf]
    %v2379 = vld [vmem:[#allocation13 + $0x48] sm:$0xff]
    %v2380 = vld [vmem:[#allocation13 + $0x50] sm:$0xf]
    %v2381 = vld [vmem:[#allocation13 + $0x54] sm:$0xff]
    %v2382 = vld [vmem:[#allocation13 + $0x5c] sm:$0xf]
    %v2383 = vld [vmem:[#allocation13 + $0x60] sm:$0xff]
    %v2384 = vld [vmem:[#allocation13 + $0x68] sm:$0xf]
    %v2385 = vld [vmem:[#allocation13 + $0x6c] sm:$0xff]
    %v2386 = vld [vmem:[#allocation13 + $0x74] sm:$0xf]
    %v2387 = vld [vmem:[#allocation13 + $0x78] sm:$0xff]
    %v2388 = vld [vmem:[#allocation13 + $0x80] sm:$0xf]
    %v2389 = vld [vmem:[#allocation13 + $0x84] sm:$0xff]
    %v2390 = vld [vmem:[#allocation13 + $0x8c] sm:$0xf]
    %v2391 = vld [vmem:[#allocation13 + $0x90] sm:$0xff]
    %v2392 = vld [vmem:[#allocation13 + $0x98] sm:$0xf]
    %v2393 = vld [vmem:[#allocation13 + $0x9c] sm:$0xff]
    %v2394 = vld [vmem:[#allocation13 + $0xa4] sm:$0xf]
    %v2395 = vld [vmem:[#allocation13 + $0xa8] sm:$0xff]
    %v2396 = vld [vmem:[#allocation13 + $0xb0] sm:$0xf]
    %v2397 = vld [vmem:[#allocation13 + $0xb4] sm:$0xff]
    %v2398 = vld [vmem:[#allocation13 + $0xbc] sm:$0xf]
    %v2399 = vld [vmem:[%s11] sm:$0x7]
    %v2401 = vlaneseq
    %v2402 = vshrl.u32 %v2401, 7
    %v2403 = vsub.s32 0, %v2402
    %v2404 = vrot.slane %v2399, %v2403
    %v2405 = vlaneseq
    %v2406 = vshrl.u32 %v2405, 7
    %v2407 = vsub.s32 1, %v2406
    %v2408 = vrot.slane %v2399, %v2407
    %v2409 = vlaneseq
    %v2410 = vshrl.u32 %v2409, 7
    %v2411 = vsub.s32 2, %v2410
    %v2412 = vrot.slane %v2399, %v2411
    %v2448 = vunpack.c.l.b16 %v2367
    %v2449 = vunpack.c.h.b16 %v2367
    %v2450 = vunpack.c.l.b16 %v2368
    %v2451 = vunpack.c.l.b16 %v2369
    %v2452 = vunpack.c.h.b16 %v2369
    %v2453 = vunpack.c.l.b16 %v2370
    %v2454 = vunpack.c.l.b16 %v2371
    %v2455 = vunpack.c.h.b16 %v2371
    %v2456 = vunpack.c.l.b16 %v2372
    %v2457 = vunpack.c.l.b16 %v2373
    %v2458 = vunpack.c.h.b16 %v2373
    %v2459 = vunpack.c.l.b16 %v2374
    %v2460 = vunpack.c.l.b16 %v2375
    %v2461 = vunpack.c.h.b16 %v2375
    %v2462 = vunpack.c.l.b16 %v2376
    %v2463 = vunpack.c.l.b16 %v2377
    %v2464 = vunpack.c.h.b16 %v2377
    %v2465 = vunpack.c.l.b16 %v2378
    %v2466 = vunpack.c.l.b16 %v2379
    %v2467 = vunpack.c.h.b16 %v2379
    %v2468 = vunpack.c.l.b16 %v2380
    %v2469 = vunpack.c.l.b16 %v2381
    %v2470 = vunpack.c.h.b16 %v2381
    %v2471 = vunpack.c.l.b16 %v2382
    %v2472 = vunpack.c.l.b16 %v2383
    %v2473 = vunpack.c.h.b16 %v2383
    %v2474 = vunpack.c.l.b16 %v2384
    %v2475 = vunpack.c.l.b16 %v2385
    %v2476 = vunpack.c.h.b16 %v2385
    %v2477 = vunpack.c.l.b16 %v2386
    %v2478 = vunpack.c.l.b16 %v2387
    %v2479 = vunpack.c.h.b16 %v2387
    %v2480 = vunpack.c.l.b16 %v2388
    %v2481 = vunpack.c.l.b16 %v2389
    %v2482 = vunpack.c.h.b16 %v2389
    %v2483 = vunpack.c.l.b16 %v2390
    %v2484 = vunpack.c.l.b16 %v2391
    %v2485 = vunpack.c.h.b16 %v2391
    %v2486 = vunpack.c.l.b16 %v2392
    %v2487 = vunpack.c.l.b16 %v2393
    %v2488 = vunpack.c.h.b16 %v2393
    %v2489 = vunpack.c.l.b16 %v2394
    %v2490 = vunpack.c.l.b16 %v2395
    %v2491 = vunpack.c.h.b16 %v2395
    %v2492 = vunpack.c.l.b16 %v2396
    %v2493 = vunpack.c.l.b16 %v2397
    %v2494 = vunpack.c.h.b16 %v2397
    %v2495 = vunpack.c.l.b16 %v2398
    %v2496 = vpack.c.b16 %v2451, %v2448
    %v2497 = vpack.c.b16 %v2452, %v2449
    %v2498 = vpack.c.b16 %v2453, %v2450
    %v2499 = vpack.c.b16 %v2457, %v2454
    %v2500 = vpack.c.b16 %v2458, %v2455
    %v2501 = vpack.c.b16 %v2459, %v2456
    %v2502 = vpack.c.b16 %v2463, %v2460
    %v2503 = vpack.c.b16 %v2464, %v2461
    %v2504 = vpack.c.b16 %v2465, %v2462
    %v2505 = vpack.c.b16 %v2469, %v2466
    %v2506 = vpack.c.b16 %v2470, %v2467
    %v2507 = vpack.c.b16 %v2471, %v2468
    %v2508 = vpack.c.b16 %v2475, %v2472
    %v2509 = vpack.c.b16 %v2476, %v2473
    %v2510 = vpack.c.b16 %v2477, %v2474
    %v2511 = vpack.c.b16 %v2481, %v2478
    %v2512 = vpack.c.b16 %v2482, %v2479
    %v2513 = vpack.c.b16 %v2483, %v2480
    %v2514 = vpack.c.b16 %v2487, %v2484
    %v2515 = vpack.c.b16 %v2488, %v2485
    %v2516 = vpack.c.b16 %v2489, %v2486
    %v2517 = vpack.c.b16 %v2493, %v2490
    %v2518 = vpack.c.b16 %v2494, %v2491
    %v2519 = vpack.c.b16 %v2495, %v2492
    %2544 = vmatprep.subr.bf16.mxu0 %v2497
    %2545 = vmatpush1.bf16.msra.mxu0 %v2496
    %2546 = vmatprep.subr.bf16.mxu0 %v2500
    %2547 = vmatpush1.bf16.msra.mxu0 %v2499
    %2548 = vmatprep.subr.bf16.mxu0 %v2503
    %2549 = vmatpush1.bf16.msra.mxu0 %v2502
    %2550 = vmatprep.subr.bf16.mxu0 %v2506
    %2551 = vmatpush1.bf16.msra.mxu0 %v2505
    %2552 = vmatprep.subr.bf16.mxu0 %v2509
    %2553 = vmatpush1.bf16.msra.mxu0 %v2508
    %2554 = vmatprep.subr.bf16.mxu0 %v2512
    %2555 = vmatpush1.bf16.msra.mxu0 %v2511
    %2556 = vmatprep.subr.bf16.mxu0 %v2515
    %2557 = vmatpush1.bf16.msra.mxu0 %v2514
    %2558 = vmatprep.subr.bf16.mxu0 %v2518
    %2559 = vmatpush1.bf16.msra.mxu0 %v2517
    %2560 = vmatprep.subr.bf16.mxu0 0
    %2561 = vmatpush1.bf16.msra.mxu0 0
    %2562 = vmatprep.subr.bf16.mxu0 0
    %2563 = vmatpush1.bf16.msra.mxu0 0
    %2564 = vmatprep.subr.bf16.mxu0 0
    %2565 = vmatpush1.bf16.msra.mxu0 0
    %2566 = vmatprep.subr.bf16.mxu0 0
    %2567 = vmatpush1.bf16.msra.mxu0 0
    %2568 = vmatprep.subr.bf16.mxu0 0
    %2569 = vmatpush1.bf16.msra.mxu0 0
    %2570 = vmatprep.subr.bf16.mxu0 0
    %2571 = vmatpush1.bf16.msra.mxu0 0
    %2572 = vmatprep.subr.bf16.mxu0 0
    %2573 = vmatpush1.bf16.msra.mxu0 0
    %2574 = vmatprep.subr.bf16.mxu0 0
    %2575 = vmatpush1.bf16.msra.mxu0 0
    %2576 = vmatprep.mubr.bf16.mxu0 0
    %2577 = vmatmul.mubr.bf16.gmra.mrb[0].mxu0 %v2366
    %v2578 = vpop.f32.mrb[0].mxu0
    %v2579 = vadd.f32 %v2404, %v2578
    %v2580 = vpop.f32.mrb[0].mxu0
    %v2581 = vadd.f32 %v2408, %v2580
    %v2582 = vpop.f32.mrb[0].mxu0
    %v2583 = vadd.f32 %v2404, %v2582
    %v2584 = vpop.f32.mrb[0].mxu0
    %v2585 = vadd.f32 %v2408, %v2584
    %2586 = vdwg.mxu0
    %2587 = vmatprep.subr.bf16.mxu0 0
    %2588 = vmatpush1.bf16.msra.mxu0 %v2498
    %2589 = vmatprep.subr.bf16.mxu0 0
    %2590 = vmatpush1.bf16.msra.mxu0 %v2501
    %2591 = vmatprep.subr.bf16.mxu0 0
    %2592 = vmatpush1.bf16.msra.mxu0 %v2504
    %2593 = vmatprep.subr.bf16.mxu0 0
    %2594 = vmatpush1.bf16.msra.mxu0 %v2507
    %2595 = vmatprep.subr.bf16.mxu0 0
    %2596 = vmatpush1.bf16.msra.mxu0 %v2510
    %2597 = vmatprep.subr.bf16.mxu0 0
    %2598 = vmatpush1.bf16.msra.mxu0 %v2513
    %2599 = vmatprep.subr.bf16.mxu0 0
    %2600 = vmatpush1.bf16.msra.mxu0 %v2516
    %2601 = vmatprep.subr.bf16.mxu0 0
    %2602 = vmatpush1.bf16.msra.mxu0 %v2519
    %2603 = vmatprep.subr.bf16.mxu0 0
    %2604 = vmatpush1.bf16.msra.mxu0 0
    %2605 = vmatprep.subr.bf16.mxu0 0
    %2606 = vmatpush1.bf16.msra.mxu0 0
    %2607 = vmatprep.subr.bf16.mxu0 0
    %2608 = vmatpush1.bf16.msra.mxu0 0
    %2609 = vmatprep.subr.bf16.mxu0 0
    %2610 = vmatpush1.bf16.msra.mxu0 0
    %2611 = vmatprep.subr.bf16.mxu0 0
    %2612 = vmatpush1.bf16.msra.mxu0 0
    %2613 = vmatprep.subr.bf16.mxu0 0
    %2614 = vmatpush1.bf16.msra.mxu0 0
    %2615 = vmatprep.subr.bf16.mxu0 0
    %2616 = vmatpush1.bf16.msra.mxu0 0
    %2617 = vmatprep.subr.bf16.mxu0 0
    %2618 = vmatpush1.bf16.msra.mxu0 0
    %2619 = vmatprep.mubr.bf16.mxu0 0
    %2620 = vmatmul.mubr.bf16.gmra.mrb[0].mxu0 %v2366
    %v2621 = vpop.f32.mrb[0].mxu0
    %v2622 = vadd.f32 %v2412, %v2621
    %v2623 = vpop.f32.mrb[0].mxu0
    %v2624 = vpop.f32.mrb[0].mxu0
    %v2625 = vadd.f32 %v2412, %v2624
    %v2626 = vpop.f32.mrb[0].mxu0
    %2627 = vdwg.mxu0
    %v2628 = vld [vmem:[%s12] sm:$0x7]
    %v2630 = vlaneseq
    %v2631 = vshrl.u32 %v2630, 7
    %v2632 = vsub.s32 0, %v2631
    %v2633 = vrot.slane %v2628, %v2632
    %v2634 = vlaneseq
    %v2635 = vshrl.u32 %v2634, 7
    %v2636 = vsub.s32 1, %v2635
    %v2637 = vrot.slane %v2628, %v2636
    %v2638 = vlaneseq
    %v2639 = vshrl.u32 %v2638, 7
    %v2640 = vsub.s32 2, %v2639
    %v2641 = vrot.slane %v2628, %v2640
    %s2645 = smul.addr %s882, 8
    %s2646 = scalar_lea.vmem [#allocation3], %s2645
    %v2647 = vld [vmem:[%s2646] sm:$0xff]
    %v2648 = vld [vmem:[%s2646 + $0x8] sm:$0xff]
    %v2649 = vld [vmem:[%s2646 + $0x10] sm:$0xff]
    %v2650 = vld [vmem:[%s2646 + $0x18] sm:$0xff]
    %v2651 = vld [vmem:[%s2646 + $0x20] sm:$0xff]
    %v2652 = vld [vmem:[%s2646 + $0x28] sm:$0xff]
    %v2653 = vadd.f32 %v2647, %v2579
    %v2654 = vadd.f32 %v2648, %v2581
    %v2655 = vadd.f32 %v2649, %v2622
    %v2656 = vadd.f32 %v2650, %v2583
    %v2657 = vadd.f32 %v2651, %v2585
    %v2658 = vadd.f32 %v2652, %v2625
    %v2659 = vld [vmem:[#allocation14] sm:$0xff]
    %v2660 = vld [vmem:[#allocation14 + $0x8] sm:$0xf]
    %v2661 = vld [vmem:[#allocation14 + $0xc] sm:$0xff]
    %v2662 = vld [vmem:[#allocation14 + $0x14] sm:$0xf]
    %v2663 = vld [vmem:[#allocation14 + $0x18] sm:$0xff]
    %v2664 = vld [vmem:[#allocation14 + $0x20] sm:$0xf]
    %v2665 = vld [vmem:[#allocation14 + $0x24] sm:$0xff]
    %v2666 = vld [vmem:[#allocation14 + $0x2c] sm:$0xf]
    %v2667 = vld [vmem:[#allocation14 + $0x30] sm:$0xff]
    %v2668 = vld [vmem:[#allocation14 + $0x38] sm:$0xf]
    %v2669 = vld [vmem:[#allocation14 + $0x3c] sm:$0xff]
    %v2670 = vld [vmem:[#allocation14 + $0x44] sm:$0xf]
    %v2671 = vld [vmem:[#allocation14 + $0x48] sm:$0xff]
    %v2672 = vld [vmem:[#allocation14 + $0x50] sm:$0xf]
    %v2673 = vld [vmem:[#allocation14 + $0x54] sm:$0xff]
    %v2674 = vld [vmem:[#allocation14 + $0x5c] sm:$0xf]
    %v2675 = vld [vmem:[#allocation14 + $0x60] sm:$0xff]
    %v2676 = vld [vmem:[#allocation14 + $0x68] sm:$0xf]
    %v2677 = vld [vmem:[#allocation14 + $0x6c] sm:$0xff]
    %v2678 = vld [vmem:[#allocation14 + $0x74] sm:$0xf]
    %v2679 = vld [vmem:[#allocation14 + $0x78] sm:$0xff]
    %v2680 = vld [vmem:[#allocation14 + $0x80] sm:$0xf]
    %v2681 = vld [vmem:[#allocation14 + $0x84] sm:$0xff]
    %v2682 = vld [vmem:[#allocation14 + $0x8c] sm:$0xf]
    %v2683 = vld [vmem:[#allocation14 + $0x90] sm:$0xff]
    %v2684 = vld [vmem:[#allocation14 + $0x98] sm:$0xf]
    %v2685 = vld [vmem:[#allocation14 + $0x9c] sm:$0xff]
    %v2686 = vld [vmem:[#allocation14 + $0xa4] sm:$0xf]
    %v2687 = vld [vmem:[#allocation14 + $0xa8] sm:$0xff]
    %v2688 = vld [vmem:[#allocation14 + $0xb0] sm:$0xf]
    %v2689 = vld [vmem:[#allocation14 + $0xb4] sm:$0xff]
    %v2690 = vld [vmem:[#allocation14 + $0xbc] sm:$0xf]
    %v2723 = vunpack.c.l.b16 %v2659
    %v2724 = vunpack.c.h.b16 %v2659
    %v2725 = vunpack.c.l.b16 %v2660
    %v2726 = vunpack.c.l.b16 %v2661
    %v2727 = vunpack.c.h.b16 %v2661
    %v2728 = vunpack.c.l.b16 %v2662
    %v2729 = vunpack.c.l.b16 %v2663
    %v2730 = vunpack.c.h.b16 %v2663
    %v2731 = vunpack.c.l.b16 %v2664
    %v2732 = vunpack.c.l.b16 %v2665
    %v2733 = vunpack.c.h.b16 %v2665
    %v2734 = vunpack.c.l.b16 %v2666
    %v2735 = vunpack.c.l.b16 %v2667
    %v2736 = vunpack.c.h.b16 %v2667
    %v2737 = vunpack.c.l.b16 %v2668
    %v2738 = vunpack.c.l.b16 %v2669
    %v2739 = vunpack.c.h.b16 %v2669
    %v2740 = vunpack.c.l.b16 %v2670
    %v2741 = vunpack.c.l.b16 %v2671
    %v2742 = vunpack.c.h.b16 %v2671
    %v2743 = vunpack.c.l.b16 %v2672
    %v2744 = vunpack.c.l.b16 %v2673
    %v2745 = vunpack.c.h.b16 %v2673
    %v2746 = vunpack.c.l.b16 %v2674
    %v2747 = vunpack.c.l.b16 %v2675
    %v2748 = vunpack.c.h.b16 %v2675
    %v2749 = vunpack.c.l.b16 %v2676
    %v2750 = vunpack.c.l.b16 %v2677
    %v2751 = vunpack.c.h.b16 %v2677
    %v2752 = vunpack.c.l.b16 %v2678
    %v2753 = vunpack.c.l.b16 %v2679
    %v2754 = vunpack.c.h.b16 %v2679
    %v2755 = vunpack.c.l.b16 %v2680
    %v2756 = vunpack.c.l.b16 %v2681
    %v2757 = vunpack.c.h.b16 %v2681
    %v2758 = vunpack.c.l.b16 %v2682
    %v2759 = vunpack.c.l.b16 %v2683
    %v2760 = vunpack.c.h.b16 %v2683
    %v2761 = vunpack.c.l.b16 %v2684
    %v2762 = vunpack.c.l.b16 %v2685
    %v2763 = vunpack.c.h.b16 %v2685
    %v2764 = vunpack.c.l.b16 %v2686
    %v2765 = vunpack.c.l.b16 %v2687
    %v2766 = vunpack.c.h.b16 %v2687
    %v2767 = vunpack.c.l.b16 %v2688
    %v2768 = vunpack.c.l.b16 %v2689
    %v2769 = vunpack.c.h.b16 %v2689
    %v2770 = vunpack.c.l.b16 %v2690
    %v2771 = vpack.c.b16 %v2726, %v2723
    %v2772 = vpack.c.b16 %v2727, %v2724
    %v2773 = vpack.c.b16 %v2728, %v2725
    %v2774 = vpack.c.b16 %v2732, %v2729
    %v2775 = vpack.c.b16 %v2733, %v2730
    %v2776 = vpack.c.b16 %v2734, %v2731
    %v2777 = vpack.c.b16 %v2738, %v2735
    %v2778 = vpack.c.b16 %v2739, %v2736
    %v2779 = vpack.c.b16 %v2740, %v2737
    %v2780 = vpack.c.b16 %v2744, %v2741
    %v2781 = vpack.c.b16 %v2745, %v2742
    %v2782 = vpack.c.b16 %v2746, %v2743
    %v2783 = vpack.c.b16 %v2750, %v2747
    %v2784 = vpack.c.b16 %v2751, %v2748
    %v2785 = vpack.c.b16 %v2752, %v2749
    %v2786 = vpack.c.b16 %v2756, %v2753
    %v2787 = vpack.c.b16 %v2757, %v2754
    %v2788 = vpack.c.b16 %v2758, %v2755
    %v2789 = vpack.c.b16 %v2762, %v2759
    %v2790 = vpack.c.b16 %v2763, %v2760
    %v2791 = vpack.c.b16 %v2764, %v2761
    %v2792 = vpack.c.b16 %v2768, %v2765
    %v2793 = vpack.c.b16 %v2769, %v2766
    %v2794 = vpack.c.b16 %v2770, %v2767
    %2819 = vmatprep.subr.bf16.mxu0 %v2772
    %2820 = vmatpush1.bf16.msra.mxu0 %v2771
    %2821 = vmatprep.subr.bf16.mxu0 %v2775
    %2822 = vmatpush1.bf16.msra.mxu0 %v2774
    %2823 = vmatprep.subr.bf16.mxu0 %v2778
    %2824 = vmatpush1.bf16.msra.mxu0 %v2777
    %2825 = vmatprep.subr.bf16.mxu0 %v2781
    %2826 = vmatpush1.bf16.msra.mxu0 %v2780
    %2827 = vmatprep.subr.bf16.mxu0 %v2784
    %2828 = vmatpush1.bf16.msra.mxu0 %v2783
    %2829 = vmatprep.subr.bf16.mxu0 %v2787
    %2830 = vmatpush1.bf16.msra.mxu0 %v2786
    %2831 = vmatprep.subr.bf16.mxu0 %v2790
    %2832 = vmatpush1.bf16.msra.mxu0 %v2789
    %2833 = vmatprep.subr.bf16.mxu0 %v2793
    %2834 = vmatpush1.bf16.msra.mxu0 %v2792
    %2835 = vmatprep.subr.bf16.mxu0 0
    %2836 = vmatpush1.bf16.msra.mxu0 0
    %2837 = vmatprep.subr.bf16.mxu0 0
    %2838 = vmatpush1.bf16.msra.mxu0 0
    %2839 = vmatprep.subr.bf16.mxu0 0
    %2840 = vmatpush1.bf16.msra.mxu0 0
    %2841 = vmatprep.subr.bf16.mxu0 0
    %2842 = vmatpush1.bf16.msra.mxu0 0
    %2843 = vmatprep.subr.bf16.mxu0 0
    %2844 = vmatpush1.bf16.msra.mxu0 0
    %2845 = vmatprep.subr.bf16.mxu0 0
    %2846 = vmatpush1.bf16.msra.mxu0 0
    %2847 = vmatprep.subr.bf16.mxu0 0
    %2848 = vmatpush1.bf16.msra.mxu0 0
    %2849 = vmatprep.subr.bf16.mxu0 0
    %2850 = vmatpush1.bf16.msra.mxu0 0
    %2851 = vmatprep.mubr.bf16.mxu0 0
    %2852 = vmatmul.mubr.bf16.gmra.mrb[0].mxu0 %v2366
    %v2853 = vpop.f32.mrb[0].mxu0
    %v2854 = vadd.f32 %v2633, %v2853
    %v2855 = vpop.f32.mrb[0].mxu0
    %v2856 = vadd.f32 %v2637, %v2855
    %v2857 = vpop.f32.mrb[0].mxu0
    %v2858 = vadd.f32 %v2633, %v2857
    %v2859 = vpop.f32.mrb[0].mxu0
    %v2860 = vadd.f32 %v2637, %v2859
    %2861 = vdwg.mxu0
    %2862 = vmatprep.subr.bf16.mxu0 0
    %2863 = vmatpush1.bf16.msra.mxu0 %v2773
    %2864 = vmatprep.subr.bf16.mxu0 0
    %2865 = vmatpush1.bf16.msra.mxu0 %v2776
    %2866 = vmatprep.subr.bf16.mxu0 0
    %2867 = vmatpush1.bf16.msra.mxu0 %v2779
    %2868 = vmatprep.subr.bf16.mxu0 0
    %2869 = vmatpush1.bf16.msra.mxu0 %v2782
    %2870 = vmatprep.subr.bf16.mxu0 0
    %2871 = vmatpush1.bf16.msra.mxu0 %v2785
    %2872 = vmatprep.subr.bf16.mxu0 0
    %2873 = vmatpush1.bf16.msra.mxu0 %v2788
    %2874 = vmatprep.subr.bf16.mxu0 0
    %2875 = vmatpush1.bf16.msra.mxu0 %v2791
    %2876 = vmatprep.subr.bf16.mxu0 0
    %2877 = vmatpush1.bf16.msra.mxu0 %v2794
    %2878 = vmatprep.subr.bf16.mxu0 0
    %2879 = vmatpush1.bf16.msra.mxu0 0
    %2880 = vmatprep.subr.bf16.mxu0 0
    %2881 = vmatpush1.bf16.msra.mxu0 0
    %2882 = vmatprep.subr.bf16.mxu0 0
    %2883 = vmatpush1.bf16.msra.mxu0 0
    %2884 = vmatprep.subr.bf16.mxu0 0
    %2885 = vmatpush1.bf16.msra.mxu0 0
    %2886 = vmatprep.subr.bf16.mxu0 0
    %2887 = vmatpush1.bf16.msra.mxu0 0
    %2888 = vmatprep.subr.bf16.mxu0 0
    %2889 = vmatpush1.bf16.msra.mxu0 0
    %2890 = vmatprep.subr.bf16.mxu0 0
    %2891 = vmatpush1.bf16.msra.mxu0 0
    %2892 = vmatprep.subr.bf16.mxu0 0
    %2893 = vmatpush1.bf16.msra.mxu0 0
    %2894 = vmatprep.mubr.bf16.mxu0 0
    %2895 = vmatmul.mubr.bf16.gmra.mrb[0].mxu0 %v2366
    %v2896 = vpop.f32.mrb[0].mxu0
    %v2897 = vadd.f32 %v2641, %v2896
    %v2898 = vpop.f32.mrb[0].mxu0
    %v2899 = vpop.f32.mrb[0].mxu0
    %v2900 = vadd.f32 %v2641, %v2899
    %v2901 = vpop.f32.mrb[0].mxu0
    %2902 = vdwg.mxu0
    %v2903 = vadd.f32 %v2653, %v2854
    %v2904 = vadd.f32 %v2656, %v2858
    %v2905 = vxor.u32 %v2903, 2147483648
    %v2906 = vxor.u32 %v2904, 2147483648
    %v2907 = vmul.f32 %v2905, 1.442695
    %v2908 = vpow.pop %v2907
    %v2909 = vmul.f32 %v2906, 1.442695
    %v2910 = vpow.pop %v2909
    %v2911 = vadd.f32 %v2908, 1.0
    %v2912 = vadd.f32 %v2910, 1.0
    %v2913 = vrcp.pop %v2911
    %v2914 = vmul.f32 1.0, %v2913
    %v2915 = vrcp.pop %v2912
    %v2916 = vmul.f32 1.0, %v2915
    %v2917 = vadd.f32 %v2654, %v2856
    %v2918 = vadd.f32 %v2657, %v2860
    %v2919 = vxor.u32 %v2917, 2147483648
    %v2920 = vxor.u32 %v2918, 2147483648
    %v2921 = vmul.f32 %v2919, 1.442695
    %v2922 = vpow.pop %v2921
    %v2923 = vmul.f32 %v2920, 1.442695
    %v2924 = vpow.pop %v2923
    %v2925 = vadd.f32 %v2922, 1.0
    %v2926 = vadd.f32 %v2924, 1.0
    %v2927 = vrcp.pop %v2925
    %v2928 = vmul.f32 1.0, %v2927
    %v2929 = vrcp.pop %v2926
    %v2930 = vmul.f32 1.0, %v2929
    %v2931 = vmul.f32 %v2914, %v2897
    %v2932 = vmul.f32 %v2916, %v2900
    %v2933 = vadd.f32 %v2655, %v2931
    %v2934 = vadd.f32 %v2658, %v2932
    %v2935 = vtanh.pop %v2933
    %v2936 = vtanh.pop %v2934
    %v2937 = vsub.f32 1.0, %v2928
    %v2938 = vsub.f32 1.0, %v2930
    %v2939 = vmul.f32 %v2937, %v2935
    %v2940 = vmul.f32 %v2938, %v2936
    %v2941 = vmul.f32 %v2928, %v2358
    %v2942 = vmul.f32 %v2930, %v2359
    %v2943 = vadd.f32 %v2939, %v2941
    %v2944 = vadd.f32 %v2940, %v2942
    %2945 = vst [vmem:[#allocation4] sm:$0xff] %v2943
    %2946 = vst [vmem:[#allocation4 + $0x8] sm:$0xff] %v2944
    %s2947 = smul.addr %s1183, 8
    %s2948 = scalar_lea.vmem [#allocation3], %s2947
    %v2949 = vld [vmem:[%s2948] sm:$0xff]
    %v2950 = vld [vmem:[%s2948 + $0x8] sm:$0xff]
    %v2951 = vld [vmem:[%s2948 + $0x10] sm:$0xff]
    %v2952 = vld [vmem:[%s2948 + $0x18] sm:$0xff]
    %v2953 = vld [vmem:[%s2948 + $0x20] sm:$0xff]
    %v2954 = vld [vmem:[%s2948 + $0x28] sm:$0xff]
    %v2955 = vadd.f32 %v2949, %v2579
    %v2956 = vadd.f32 %v2950, %v2581
    %v2957 = vadd.f32 %v2951, %v2622
    %v2958 = vadd.f32 %v2952, %v2583
    %v2959 = vadd.f32 %v2953, %v2585
    %v2960 = vadd.f32 %v2954, %v2625
    %v2961 = vpack.c.bf16 %v2944, %v2943
    %v2962 = vld [vmem:[#allocation14] sm:$0xff]
    %v2963 = vld [vmem:[#allocation14 + $0x8] sm:$0xf]
    %v2964 = vld [vmem:[#allocation14 + $0xc] sm:$0xff]
    %v2965 = vld [vmem:[#allocation14 + $0x14] sm:$0xf]
    %v2966 = vld [vmem:[#allocation14 + $0x18] sm:$0xff]
    %v2967 = vld [vmem:[#allocation14 + $0x20] sm:$0xf]
    %v2968 = vld [vmem:[#allocation14 + $0x24] sm:$0xff]
    %v2969 = vld [vmem:[#allocation14 + $0x2c] sm:$0xf]
    %v2970 = vld [vmem:[#allocation14 + $0x30] sm:$0xff]
    %v2971 = vld [vmem:[#allocation14 + $0x38] sm:$0xf]
    %v2972 = vld [vmem:[#allocation14 + $0x3c] sm:$0xff]
    %v2973 = vld [vmem:[#allocation14 + $0x44] sm:$0xf]
    %v2974 = vld [vmem:[#allocation14 + $0x48] sm:$0xff]
    %v2975 = vld [vmem:[#allocation14 + $0x50] sm:$0xf]
    %v2976 = vld [vmem:[#allocation14 + $0x54] sm:$0xff]
    %v2977 = vld [vmem:[#allocation14 + $0x5c] sm:$0xf]
    %v2978 = vld [vmem:[#allocation14 + $0x60] sm:$0xff]
    %v2979 = vld [vmem:[#allocation14 + $0x68] sm:$0xf]
    %v2980 = vld [vmem:[#allocation14 + $0x6c] sm:$0xff]
    %v2981 = vld [vmem:[#allocation14 + $0x74] sm:$0xf]
    %v2982 = vld [vmem:[#allocation14 + $0x78] sm:$0xff]
    %v2983 = vld [vmem:[#allocation14 + $0x80] sm:$0xf]
    %v2984 = vld [vmem:[#allocation14 + $0x84] sm:$0xff]
    %v2985 = vld [vmem:[#allocation14 + $0x8c] sm:$0xf]
    %v2986 = vld [vmem:[#allocation14 + $0x90] sm:$0xff]
    %v2987 = vld [vmem:[#allocation14 + $0x98] sm:$0xf]
    %v2988 = vld [vmem:[#allocation14 + $0x9c] sm:$0xff]
    %v2989 = vld [vmem:[#allocation14 + $0xa4] sm:$0xf]
    %v2990 = vld [vmem:[#allocation14 + $0xa8] sm:$0xff]
    %v2991 = vld [vmem:[#allocation14 + $0xb0] sm:$0xf]
    %v2992 = vld [vmem:[#allocation14 + $0xb4] sm:$0xff]
    %v2993 = vld [vmem:[#allocation14 + $0xbc] sm:$0xf]
    %v3026 = vunpack.c.l.b16 %v2962
    %v3027 = vunpack.c.h.b16 %v2962
    %v3028 = vunpack.c.l.b16 %v2963
    %v3029 = vunpack.c.l.b16 %v2964
    %v3030 = vunpack.c.h.b16 %v2964
    %v3031 = vunpack.c.l.b16 %v2965
    %v3032 = vunpack.c.l.b16 %v2966
    %v3033 = vunpack.c.h.b16 %v2966
    %v3034 = vunpack.c.l.b16 %v2967
    %v3035 = vunpack.c.l.b16 %v2968
    %v3036 = vunpack.c.h.b16 %v2968
    %v3037 = vunpack.c.l.b16 %v2969
    %v3038 = vunpack.c.l.b16 %v2970
    %v3039 = vunpack.c.h.b16 %v2970
    %v3040 = vunpack.c.l.b16 %v2971
    %v3041 = vunpack.c.l.b16 %v2972
    %v3042 = vunpack.c.h.b16 %v2972
    %v3043 = vunpack.c.l.b16 %v2973
    %v3044 = vunpack.c.l.b16 %v2974
    %v3045 = vunpack.c.h.b16 %v2974
    %v3046 = vunpack.c.l.b16 %v2975
    %v3047 = vunpack.c.l.b16 %v2976
    %v3048 = vunpack.c.h.b16 %v2976
    %v3049 = vunpack.c.l.b16 %v2977
    %v3050 = vunpack.c.l.b16 %v2978
    %v3051 = vunpack.c.h.b16 %v2978
    %v3052 = vunpack.c.l.b16 %v2979
    %v3053 = vunpack.c.l.b16 %v2980
    %v3054 = vunpack.c.h.b16 %v2980
    %v3055 = vunpack.c.l.b16 %v2981
    %v3056 = vunpack.c.l.b16 %v2982
    %v3057 = vunpack.c.h.b16 %v2982
    %v3058 = vunpack.c.l.b16 %v2983
    %v3059 = vunpack.c.l.b16 %v2984
    %v3060 = vunpack.c.h.b16 %v2984
    %v3061 = vunpack.c.l.b16 %v2985
    %v3062 = vunpack.c.l.b16 %v2986
    %v3063 = vunpack.c.h.b16 %v2986
    %v3064 = vunpack.c.l.b16 %v2987
    %v3065 = vunpack.c.l.b16 %v2988
    %v3066 = vunpack.c.h.b16 %v2988
    %v3067 = vunpack.c.l.b16 %v2989
    %v3068 = vunpack.c.l.b16 %v2990
    %v3069 = vunpack.c.h.b16 %v2990
    %v3070 = vunpack.c.l.b16 %v2991
    %v3071 = vunpack.c.l.b16 %v2992
    %v3072 = vunpack.c.h.b16 %v2992
    %v3073 = vunpack.c.l.b16 %v2993
    %v3074 = vpack.c.b16 %v3029, %v3026
    %v3075 = vpack.c.b16 %v3030, %v3027
    %v3076 = vpack.c.b16 %v3031, %v3028
    %v3077 = vpack.c.b16 %v3035, %v3032
    %v3078 = vpack.c.b16 %v3036, %v3033
    %v3079 = vpack.c.b16 %v3037, %v3034
    %v3080 = vpack.c.b16 %v3041, %v3038
    %v3081 = vpack.c.b16 %v3042, %v3039
    %v3082 = vpack.c.b16 %v3043, %v3040
    %v3083 = vpack.c.b16 %v3047, %v3044
    %v3084 = vpack.c.b16 %v3048, %v3045
    %v3085 = vpack.c.b16 %v3049, %v3046
    %v3086 = vpack.c.b16 %v3053, %v3050
    %v3087 = vpack.c.b16 %v3054, %v3051
    %v3088 = vpack.c.b16 %v3055, %v3052
    %v3089 = vpack.c.b16 %v3059, %v3056
    %v3090 = vpack.c.b16 %v3060, %v3057
    %v3091 = vpack.c.b16 %v3061, %v3058
    %v3092 = vpack.c.b16 %v3065, %v3062
    %v3093 = vpack.c.b16 %v3066, %v3063
    %v3094 = vpack.c.b16 %v3067, %v3064
    %v3095 = vpack.c.b16 %v3071, %v3068
    %v3096 = vpack.c.b16 %v3072, %v3069
    %v3097 = vpack.c.b16 %v3073, %v3070
    %3122 = vmatprep.subr.bf16.mxu0 %v3075
    %3123 = vmatpush1.bf16.msra.mxu0 %v3074
    %3124 = vmatprep.subr.bf16.mxu0 %v3078
    %3125 = vmatpush1.bf16.msra.mxu0 %v3077
    %3126 = vmatprep.subr.bf16.mxu0 %v3081
    %3127 = vmatpush1.bf16.msra.mxu0 %v3080
    %3128 = vmatprep.subr.bf16.mxu0 %v3084
    %3129 = vmatpush1.bf16.msra.mxu0 %v3083
    %3130 = vmatprep.subr.bf16.mxu0 %v3087
    %3131 = vmatpush1.bf16.msra.mxu0 %v3086
    %3132 = vmatprep.subr.bf16.mxu0 %v3090
    %3133 = vmatpush1.bf16.msra.mxu0 %v3089
    %3134 = vmatprep.subr.bf16.mxu0 %v3093
    %3135 = vmatpush1.bf16.msra.mxu0 %v3092
    %3136 = vmatprep.subr.bf16.mxu0 %v3096
    %3137 = vmatpush1.bf16.msra.mxu0 %v3095
    %3138 = vmatprep.subr.bf16.mxu0 0
    %3139 = vmatpush1.bf16.msra.mxu0 0
    %3140 = vmatprep.subr.bf16.mxu0 0
    %3141 = vmatpush1.bf16.msra.mxu0 0
    %3142 = vmatprep.subr.bf16.mxu0 0
    %3143 = vmatpush1.bf16.msra.mxu0 0
    %3144 = vmatprep.subr.bf16.mxu0 0
    %3145 = vmatpush1.bf16.msra.mxu0 0
    %3146 = vmatprep.subr.bf16.mxu0 0
    %3147 = vmatpush1.bf16.msra.mxu0 0
    %3148 = vmatprep.subr.bf16.mxu0 0
    %3149 = vmatpush1.bf16.msra.mxu0 0
    %3150 = vmatprep.subr.bf16.mxu0 0
    %3151 = vmatpush1.bf16.msra.mxu0 0
    %3152 = vmatprep.subr.bf16.mxu0 0
    %3153 = vmatpush1.bf16.msra.mxu0 0
    %3154 = vmatprep.mubr.bf16.mxu0 0
    %3155 = vmatmul.mubr.bf16.gmra.mrb[0].mxu0 %v2961
    %v3156 = vpop.f32.mrb[0].mxu0
    %v3157 = vadd.f32 %v2633, %v3156
    %v3158 = vpop.f32.mrb[0].mxu0
    %v3159 = vadd.f32 %v2637, %v3158
    %v3160 = vpop.f32.mrb[0].mxu0
    %v3161 = vadd.f32 %v2633, %v3160
    %v3162 = vpop.f32.mrb[0].mxu0
    %v3163 = vadd.f32 %v2637, %v3162
    %3164 = vdwg.mxu0
    %3165 = vmatprep.subr.bf16.mxu0 0
    %3166 = vmatpush1.bf16.msra.mxu0 %v3076
    %3167 = vmatprep.subr.bf16.mxu0 0
    %3168 = vmatpush1.bf16.msra.mxu0 %v3079
    %3169 = vmatprep.subr.bf16.mxu0 0
    %3170 = vmatpush1.bf16.msra.mxu0 %v3082
    %3171 = vmatprep.subr.bf16.mxu0 0
    %3172 = vmatpush1.bf16.msra.mxu0 %v3085
    %3173 = vmatprep.subr.bf16.mxu0 0
    %3174 = vmatpush1.bf16.msra.mxu0 %v3088
    %3175 = vmatprep.subr.bf16.mxu0 0
    %3176 = vmatpush1.bf16.msra.mxu0 %v3091
    %3177 = vmatprep.subr.bf16.mxu0 0
    %3178 = vmatpush1.bf16.msra.mxu0 %v3094
    %3179 = vmatprep.subr.bf16.mxu0 0
    %3180 = vmatpush1.bf16.msra.mxu0 %v3097
    %3181 = vmatprep.subr.bf16.mxu0 0
    %3182 = vmatpush1.bf16.msra.mxu0 0
    %3183 = vmatprep.subr.bf16.mxu0 0
    %3184 = vmatpush1.bf16.msra.mxu0 0
    %3185 = vmatprep.subr.bf16.mxu0 0
    %3186 = vmatpush1.bf16.msra.mxu0 0
    %3187 = vmatprep.subr.bf16.mxu0 0
    %3188 = vmatpush1.bf16.msra.mxu0 0
    %3189 = vmatprep.subr.bf16.mxu0 0
    %3190 = vmatpush1.bf16.msra.mxu0 0
    %3191 = vmatprep.subr.bf16.mxu0 0
    %3192 = vmatpush1.bf16.msra.mxu0 0
    %3193 = vmatprep.subr.bf16.mxu0 0
    %3194 = vmatpush1.bf16.msra.mxu0 0
    %3195 = vmatprep.subr.bf16.mxu0 0
    %3196 = vmatpush1.bf16.msra.mxu0 0
    %3197 = vmatprep.mubr.bf16.mxu0 0
    %3198 = vmatmul.mubr.bf16.gmra.mrb[0].mxu0 %v2961
    %v3199 = vpop.f32.mrb[0].mxu0
    %v3200 = vadd.f32 %v2641, %v3199
    %v3201 = vpop.f32.mrb[0].mxu0
    %v3202 = vpop.f32.mrb[0].mxu0
    %v3203 = vadd.f32 %v2641, %v3202
    %v3204 = vpop.f32.mrb[0].mxu0
    %3205 = vdwg.mxu0
    %v3206 = vadd.f32 %v2955, %v3157
    %v3207 = vadd.f32 %v2958, %v3161
    %v3208 = vxor.u32 %v3206, 2147483648
    %v3209 = vxor.u32 %v3207, 2147483648
    %v3210 = vmul.f32 %v3208, 1.442695
    %v3211 = vpow.pop %v3210
    %v3212 = vmul.f32 %v3209, 1.442695
    %v3213 = vpow.pop %v3212
    %v3214 = vadd.f32 %v3211, 1.0
    %v3215 = vadd.f32 %v3213, 1.0
    %v3216 = vrcp.pop %v3214
    %v3217 = vmul.f32 1.0, %v3216
    %v3218 = vrcp.pop %v3215
    %v3219 = vmul.f32 1.0, %v3218
    %v3220 = vadd.f32 %v2956, %v3159
    %v3221 = vadd.f32 %v2959, %v3163
    %v3222 = vxor.u32 %v3220, 2147483648
    %v3223 = vxor.u32 %v3221, 2147483648
    %v3224 = vmul.f32 %v3222, 1.442695
    %v3225 = vpow.pop %v3224
    %v3226 = vmul.f32 %v3223, 1.442695
    %v3227 = vpow.pop %v3226
    %v3228 = vadd.f32 %v3225, 1.0
    %v3229 = vadd.f32 %v3227, 1.0
    %v3230 = vrcp.pop %v3228
    %v3231 = vmul.f32 1.0, %v3230
    %v3232 = vrcp.pop %v3229
    %v3233 = vmul.f32 1.0, %v3232
    %v3234 = vmul.f32 %v3217, %v3200
    %v3235 = vmul.f32 %v3219, %v3203
    %v3236 = vadd.f32 %v2957, %v3234
    %v3237 = vadd.f32 %v2960, %v3235
    %v3238 = vtanh.pop %v3236
    %v3239 = vtanh.pop %v3237
    %v3240 = vsub.f32 1.0, %v3231
    %v3241 = vsub.f32 1.0, %v3233
    %v3242 = vmul.f32 %v3240, %v3238
    %v3243 = vmul.f32 %v3241, %v3239
    %v3244 = vmul.f32 %v3231, %v2943
    %v3245 = vmul.f32 %v3233, %v2944
    %v3246 = vadd.f32 %v3242, %v3244
    %v3247 = vadd.f32 %v3243, %v3245
    %s3248 = scalar_lea.vmem [#allocation4], 16
    %3249 = vst [vmem:[%s3248] sm:$0xff] %v3246
    %3250 = vst [vmem:[%s3248 + $0x8] sm:$0xff] %v3247
    %s3251 = smul.addr %s1328, 8
    %s3252 = scalar_lea.vmem [#allocation3], %s3251
    %v3253 = vld [vmem:[%s3252] sm:$0xff]
    %v3254 = vld [vmem:[%s3252 + $0x8] sm:$0xff]
    %v3255 = vld [vmem:[%s3252 + $0x10] sm:$0xff]
    %v3256 = vld [vmem:[%s3252 + $0x18] sm:$0xff]
    %v3257 = vld [vmem:[%s3252 + $0x20] sm:$0xff]
    %v3258 = vld [vmem:[%s3252 + $0x28] sm:$0xff]
    %v3259 = vadd.f32 %v3253, %v2579
    %v3260 = vadd.f32 %v3254, %v2581
    %v3261 = vadd.f32 %v3255, %v2622
    %v3262 = vadd.f32 %v3256, %v2583
    %v3263 = vadd.f32 %v3257, %v2585
    %v3264 = vadd.f32 %v3258, %v2625
    %v3265 = vpack.c.bf16 %v3247, %v3246
    %v3266 = vld [vmem:[#allocation14] sm:$0xff]
    %v3267 = vld [vmem:[#allocation14 + $0x8] sm:$0xf]
    %v3268 = vld [vmem:[#allocation14 + $0xc] sm:$0xff]
    %v3269 = vld [vmem:[#allocation14 + $0x14] sm:$0xf]
    %v3270 = vld [vmem:[#allocation14 + $0x18] sm:$0xff]
    %v3271 = vld [vmem:[#allocation14 + $0x20] sm:$0xf]
    %v3272 = vld [vmem:[#allocation14 + $0x24] sm:$0xff]
    %v3273 = vld [vmem:[#allocation14 + $0x2c] sm:$0xf]
    %v3274 = vld [vmem:[#allocation14 + $0x30] sm:$0xff]
    %v3275 = vld [vmem:[#allocation14 + $0x38] sm:$0xf]
    %v3276 = vld [vmem:[#allocation14 + $0x3c] sm:$0xff]
    %v3277 = vld [vmem:[#allocation14 + $0x44] sm:$0xf]
    %v3278 = vld [vmem:[#allocation14 + $0x48] sm:$0xff]
    %v3279 = vld [vmem:[#allocation14 + $0x50] sm:$0xf]
    %v3280 = vld [vmem:[#allocation14 + $0x54] sm:$0xff]
    %v3281 = vld [vmem:[#allocation14 + $0x5c] sm:$0xf]
    %v3282 = vld [vmem:[#allocation14 + $0x60] sm:$0xff]
    %v3283 = vld [vmem:[#allocation14 + $0x68] sm:$0xf]
    %v3284 = vld [vmem:[#allocation14 + $0x6c] sm:$0xff]
    %v3285 = vld [vmem:[#allocation14 + $0x74] sm:$0xf]
    %v3286 = vld [vmem:[#allocation14 + $0x78] sm:$0xff]
    %v3287 = vld [vmem:[#allocation14 + $0x80] sm:$0xf]
    %v3288 = vld [vmem:[#allocation14 + $0x84] sm:$0xff]
    %v3289 = vld [vmem:[#allocation14 + $0x8c] sm:$0xf]
    %v3290 = vld [vmem:[#allocation14 + $0x90] sm:$0xff]
    %v3291 = vld [vmem:[#allocation14 + $0x98] sm:$0xf]
    %v3292 = vld [vmem:[#allocation14 + $0x9c] sm:$0xff]
    %v3293 = vld [vmem:[#allocation14 + $0xa4] sm:$0xf]
    %v3294 = vld [vmem:[#allocation14 + $0xa8] sm:$0xff]
    %v3295 = vld [vmem:[#allocation14 + $0xb0] sm:$0xf]
    %v3296 = vld [vmem:[#allocation14 + $0xb4] sm:$0xff]
    %v3297 = vld [vmem:[#allocation14 + $0xbc] sm:$0xf]
    %v3330 = vunpack.c.l.b16 %v3266
    %v3331 = vunpack.c.h.b16 %v3266
    %v3332 = vunpack.c.l.b16 %v3267
    %v3333 = vunpack.c.l.b16 %v3268
    %v3334 = vunpack.c.h.b16 %v3268
    %v3335 = vunpack.c.l.b16 %v3269
    %v3336 = vunpack.c.l.b16 %v3270
    %v3337 = vunpack.c.h.b16 %v3270
    %v3338 = vunpack.c.l.b16 %v3271
    %v3339 = vunpack.c.l.b16 %v3272
    %v3340 = vunpack.c.h.b16 %v3272
    %v3341 = vunpack.c.l.b16 %v3273
    %v3342 = vunpack.c.l.b16 %v3274
    %v3343 = vunpack.c.h.b16 %v3274
    %v3344 = vunpack.c.l.b16 %v3275
    %v3345 = vunpack.c.l.b16 %v3276
    %v3346 = vunpack.c.h.b16 %v3276
    %v3347 = vunpack.c.l.b16 %v3277
    %v3348 = vunpack.c.l.b16 %v3278
    %v3349 = vunpack.c.h.b16 %v3278
    %v3350 = vunpack.c.l.b16 %v3279
    %v3351 = vunpack.c.l.b16 %v3280
    %v3352 = vunpack.c.h.b16 %v3280
    %v3353 = vunpack.c.l.b16 %v3281
    %v3354 = vunpack.c.l.b16 %v3282
    %v3355 = vunpack.c.h.b16 %v3282
    %v3356 = vunpack.c.l.b16 %v3283
    %v3357 = vunpack.c.l.b16 %v3284
    %v3358 = vunpack.c.h.b16 %v3284
    %v3359 = vunpack.c.l.b16 %v3285
    %v3360 = vunpack.c.l.b16 %v3286
    %v3361 = vunpack.c.h.b16 %v3286
    %v3362 = vunpack.c.l.b16 %v3287
    %v3363 = vunpack.c.l.b16 %v3288
    %v3364 = vunpack.c.h.b16 %v3288
    %v3365 = vunpack.c.l.b16 %v3289
    %v3366 = vunpack.c.l.b16 %v3290
    %v3367 = vunpack.c.h.b16 %v3290
    %v3368 = vunpack.c.l.b16 %v3291
    %v3369 = vunpack.c.l.b16 %v3292
    %v3370 = vunpack.c.h.b16 %v3292
    %v3371 = vunpack.c.l.b16 %v3293
    %v3372 = vunpack.c.l.b16 %v3294
    %v3373 = vunpack.c.h.b16 %v3294
    %v3374 = vunpack.c.l.b16 %v3295
    %v3375 = vunpack.c.l.b16 %v3296
    %v3376 = vunpack.c.h.b16 %v3296
    %v3377 = vunpack.c.l.b16 %v3297
    %v3378 = vpack.c.b16 %v3333, %v3330
    %v3379 = vpack.c.b16 %v3334, %v3331
    %v3380 = vpack.c.b16 %v3335, %v3332
    %v3381 = vpack.c.b16 %v3339, %v3336
    %v3382 = vpack.c.b16 %v3340, %v3337
    %v3383 = vpack.c.b16 %v3341, %v3338
    %v3384 = vpack.c.b16 %v3345, %v3342
    %v3385 = vpack.c.b16 %v3346, %v3343
    %v3386 = vpack.c.b16 %v3347, %v3344
    %v3387 = vpack.c.b16 %v3351, %v3348
    %v3388 = vpack.c.b16 %v3352, %v3349
    %v3389 = vpack.c.b16 %v3353, %v3350
    %v3390 = vpack.c.b16 %v3357, %v3354
    %v3391 = vpack.c.b16 %v3358, %v3355
    %v3392 = vpack.c.b16 %v3359, %v3356
    %v3393 = vpack.c.b16 %v3363, %v3360
    %v3394 = vpack.c.b16 %v3364, %v3361
    %v3395 = vpack.c.b16 %v3365, %v3362
    %v3396 = vpack.c.b16 %v3369, %v3366
    %v3397 = vpack.c.b16 %v3370, %v3367
    %v3398 = vpack.c.b16 %v3371, %v3368
    %v3399 = vpack.c.b16 %v3375, %v3372
    %v3400 = vpack.c.b16 %v3376, %v3373
    %v3401 = vpack.c.b16 %v3377, %v3374
    %3426 = vmatprep.subr.bf16.mxu0 %v3379
    %3427 = vmatpush1.bf16.msra.mxu0 %v3378
    %3428 = vmatprep.subr.bf16.mxu0 %v3382
    %3429 = vmatpush1.bf16.msra.mxu0 %v3381
    %3430 = vmatprep.subr.bf16.mxu0 %v3385
    %3431 = vmatpush1.bf16.msra.mxu0 %v3384
    %3432 = vmatprep.subr.bf16.mxu0 %v3388
    %3433 = vmatpush1.bf16.msra.mxu0 %v3387
    %3434 = vmatprep.subr.bf16.mxu0 %v3391
    %3435 = vmatpush1.bf16.msra.mxu0 %v3390
    %3436 = vmatprep.subr.bf16.mxu0 %v3394
    %3437 = vmatpush1.bf16.msra.mxu0 %v3393
    %3438 = vmatprep.subr.bf16.mxu0 %v3397
    %3439 = vmatpush1.bf16.msra.mxu0 %v3396
    %3440 = vmatprep.subr.bf16.mxu0 %v3400
    %3441 = vmatpush1.bf16.msra.mxu0 %v3399
    %3442 = vmatprep.subr.bf16.mxu0 0
    %3443 = vmatpush1.bf16.msra.mxu0 0
    %3444 = vmatprep.subr.bf16.mxu0 0
    %3445 = vmatpush1.bf16.msra.mxu0 0
    %3446 = vmatprep.subr.bf16.mxu0 0
    %3447 = vmatpush1.bf16.msra.mxu0 0
    %3448 = vmatprep.subr.bf16.mxu0 0
    %3449 = vmatpush1.bf16.msra.mxu0 0
    %3450 = vmatprep.subr.bf16.mxu0 0
    %3451 = vmatpush1.bf16.msra.mxu0 0
    %3452 = vmatprep.subr.bf16.mxu0 0
    %3453 = vmatpush1.bf16.msra.mxu0 0
    %3454 = vmatprep.subr.bf16.mxu0 0
    %3455 = vmatpush1.bf16.msra.mxu0 0
    %3456 = vmatprep.subr.bf16.mxu0 0
    %3457 = vmatpush1.bf16.msra.mxu0 0
    %3458 = vmatprep.mubr.bf16.mxu0 0
    %3459 = vmatmul.mubr.bf16.gmra.mrb[0].mxu0 %v3265
    %v3460 = vpop.f32.mrb[0].mxu0
    %v3461 = vadd.f32 %v2633, %v3460
    %v3462 = vpop.f32.mrb[0].mxu0
    %v3463 = vadd.f32 %v2637, %v3462
    %v3464 = vpop.f32.mrb[0].mxu0
    %v3465 = vadd.f32 %v2633, %v3464
    %v3466 = vpop.f32.mrb[0].mxu0
    %v3467 = vadd.f32 %v2637, %v3466
    %3468 = vdwg.mxu0
    %3469 = vmatprep.subr.bf16.mxu0 0
    %3470 = vmatpush1.bf16.msra.mxu0 %v3380
    %3471 = vmatprep.subr.bf16.mxu0 0
    %3472 = vmatpush1.bf16.msra.mxu0 %v3383
    %3473 = vmatprep.subr.bf16.mxu0 0
    %3474 = vmatpush1.bf16.msra.mxu0 %v3386
    %3475 = vmatprep.subr.bf16.mxu0 0
    %3476 = vmatpush1.bf16.msra.mxu0 %v3389
    %3477 = vmatprep.subr.bf16.mxu0 0
    %3478 = vmatpush1.bf16.msra.mxu0 %v3392
    %3479 = vmatprep.subr.bf16.mxu0 0
    %3480 = vmatpush1.bf16.msra.mxu0 %v3395
    %3481 = vmatprep.subr.bf16.mxu0 0
    %3482 = vmatpush1.bf16.msra.mxu0 %v3398
    %3483 = vmatprep.subr.bf16.mxu0 0
    %3484 = vmatpush1.bf16.msra.mxu0 %v3401
    %3485 = vmatprep.subr.bf16.mxu0 0
    %3486 = vmatpush1.bf16.msra.mxu0 0
    %3487 = vmatprep.subr.bf16.mxu0 0
    %3488 = vmatpush1.bf16.msra.mxu0 0
    %3489 = vmatprep.subr.bf16.mxu0 0
    %3490 = vmatpush1.bf16.msra.mxu0 0
    %3491 = vmatprep.subr.bf16.mxu0 0
    %3492 = vmatpush1.bf16.msra.mxu0 0
    %3493 = vmatprep.subr.bf16.mxu0 0
    %3494 = vmatpush1.bf16.msra.mxu0 0
    %3495 = vmatprep.subr.bf16.mxu0 0
    %3496 = vmatpush1.bf16.msra.mxu0 0
    %3497 = vmatprep.subr.bf16.mxu0 0
    %3498 = vmatpush1.bf16.msra.mxu0 0
    %3499 = vmatprep.subr.bf16.mxu0 0
    %3500 = vmatpush1.bf16.msra.mxu0 0
    %3501 = vmatprep.mubr.bf16.mxu0 0
    %3502 = vmatmul.mubr.bf16.gmra.mrb[0].mxu0 %v3265
    %v3503 = vpop.f32.mrb[0].mxu0
    %v3504 = vadd.f32 %v2641, %v3503
    %v3505 = vpop.f32.mrb[0].mxu0
    %v3506 = vpop.f32.mrb[0].mxu0
    %v3507 = vadd.f32 %v2641, %v3506
    %v3508 = vpop.f32.mrb[0].mxu0
    %3509 = vdwg.mxu0
    %v3510 = vadd.f32 %v3259, %v3461
    %v3511 = vadd.f32 %v3262, %v3465
    %v3512 = vxor.u32 %v3510, 2147483648
    %v3513 = vxor.u32 %v3511, 2147483648
    %v3514 = vmul.f32 %v3512, 1.442695
    %v3515 = vpow.pop %v3514
    %v3516 = vmul.f32 %v3513, 1.442695
    %v3517 = vpow.pop %v3516
    %v3518 = vadd.f32 %v3515, 1.0
    %v3519 = vadd.f32 %v3517, 1.0
    %v3520 = vrcp.pop %v3518
    %v3521 = vmul.f32 1.0, %v3520
    %v3522 = vrcp.pop %v3519
    %v3523 = vmul.f32 1.0, %v3522
    %v3524 = vadd.f32 %v3260, %v3463
    %v3525 = vadd.f32 %v3263, %v3467
    %v3526 = vxor.u32 %v3524, 2147483648
    %v3527 = vxor.u32 %v3525, 2147483648
    %v3528 = vmul.f32 %v3526, 1.442695
    %v3529 = vpow.pop %v3528
    %v3530 = vmul.f32 %v3527, 1.442695
    %v3531 = vpow.pop %v3530
    %v3532 = vadd.f32 %v3529, 1.0
    %v3533 = vadd.f32 %v3531, 1.0
    %v3534 = vrcp.pop %v3532
    %v3535 = vmul.f32 1.0, %v3534
    %v3536 = vrcp.pop %v3533
    %v3537 = vmul.f32 1.0, %v3536
    %v3538 = vmul.f32 %v3521, %v3504
    %v3539 = vmul.f32 %v3523, %v3507
    %v3540 = vadd.f32 %v3261, %v3538
    %v3541 = vadd.f32 %v3264, %v3539
    %v3542 = vtanh.pop %v3540
    %v3543 = vtanh.pop %v3541
    %v3544 = vsub.f32 1.0, %v3535
    %v3545 = vsub.f32 1.0, %v3537
    %v3546 = vmul.f32 %v3544, %v3542
    %v3547 = vmul.f32 %v3545, %v3543
    %v3548 = vmul.f32 %v3535, %v3246
    %v3549 = vmul.f32 %v3537, %v3247
    %v3550 = vadd.f32 %v3546, %v3548
    %v3551 = vadd.f32 %v3547, %v3549
    %s3552 = scalar_lea.vmem [#allocation4], 32
    %3553 = vst [vmem:[%s3552] sm:$0xff] %v3550
    %3554 = vst [vmem:[%s3552 + $0x8] sm:$0xff] %v3551
    %s3555 = smul.addr %s1473, 8
    %s3556 = scalar_lea.vmem [#allocation3], %s3555
    %v3557 = vld [vmem:[%s3556] sm:$0xff]
    %v3558 = vld [vmem:[%s3556 + $0x8] sm:$0xff]
    %v3559 = vld [vmem:[%s3556 + $0x10] sm:$0xff]
    %v3560 = vld [vmem:[%s3556 + $0x18] sm:$0xff]
    %v3561 = vld [vmem:[%s3556 + $0x20] sm:$0xff]
    %v3562 = vld [vmem:[%s3556 + $0x28] sm:$0xff]
    %v3563 = vadd.f32 %v3557, %v2579
    %v3564 = vadd.f32 %v3558, %v2581
    %v3565 = vadd.f32 %v3559, %v2622
    %v3566 = vadd.f32 %v3560, %v2583
    %v3567 = vadd.f32 %v3561, %v2585
    %v3568 = vadd.f32 %v3562, %v2625
    %v3569 = vpack.c.bf16 %v3551, %v3550
    %v3570 = vld [vmem:[#allocation14] sm:$0xff]
    %v3571 = vld [vmem:[#allocation14 + $0x8] sm:$0xf]
    %v3572 = vld [vmem:[#allocation14 + $0xc] sm:$0xff]
    %v3573 = vld [vmem:[#allocation14 + $0x14] sm:$0xf]
    %v3574 = vld [vmem:[#allocation14 + $0x18] sm:$0xff]
    %v3575 = vld [vmem:[#allocation14 + $0x20] sm:$0xf]
    %v3576 = vld [vmem:[#allocation14 + $0x24] sm:$0xff]
    %v3577 = vld [vmem:[#allocation14 + $0x2c] sm:$0xf]
    %v3578 = vld [vmem:[#allocation14 + $0x30] sm:$0xff]
    %v3579 = vld [vmem:[#allocation14 + $0x38] sm:$0xf]
    %v3580 = vld [vmem:[#allocation14 + $0x3c] sm:$0xff]
    %v3581 = vld [vmem:[#allocation14 + $0x44] sm:$0xf]
    %v3582 = vld [vmem:[#allocation14 + $0x48] sm:$0xff]
    %v3583 = vld [vmem:[#allocation14 + $0x50] sm:$0xf]
    %v3584 = vld [vmem:[#allocation14 + $0x54] sm:$0xff]
    %v3585 = vld [vmem:[#allocation14 + $0x5c] sm:$0xf]
    %v3586 = vld [vmem:[#allocation14 + $0x60] sm:$0xff]
    %v3587 = vld [vmem:[#allocation14 + $0x68] sm:$0xf]
    %v3588 = vld [vmem:[#allocation14 + $0x6c] sm:$0xff]
    %v3589 = vld [vmem:[#allocation14 + $0x74] sm:$0xf]
    %v3590 = vld [vmem:[#allocation14 + $0x78] sm:$0xff]
    %v3591 = vld [vmem:[#allocation14 + $0x80] sm:$0xf]
    %v3592 = vld [vmem:[#allocation14 + $0x84] sm:$0xff]
    %v3593 = vld [vmem:[#allocation14 + $0x8c] sm:$0xf]
    %v3594 = vld [vmem:[#allocation14 + $0x90] sm:$0xff]
    %v3595 = vld [vmem:[#allocation14 + $0x98] sm:$0xf]
    %v3596 = vld [vmem:[#allocation14 + $0x9c] sm:$0xff]
    %v3597 = vld [vmem:[#allocation14 + $0xa4] sm:$0xf]
    %v3598 = vld [vmem:[#allocation14 + $0xa8] sm:$0xff]
    %v3599 = vld [vmem:[#allocation14 + $0xb0] sm:$0xf]
    %v3600 = vld [vmem:[#allocation14 + $0xb4] sm:$0xff]
    %v3601 = vld [vmem:[#allocation14 + $0xbc] sm:$0xf]
    %v3634 = vunpack.c.l.b16 %v3570
    %v3635 = vunpack.c.h.b16 %v3570
    %v3636 = vunpack.c.l.b16 %v3571
    %v3637 = vunpack.c.l.b16 %v3572
    %v3638 = vunpack.c.h.b16 %v3572
    %v3639 = vunpack.c.l.b16 %v3573
    %v3640 = vunpack.c.l.b16 %v3574
    %v3641 = vunpack.c.h.b16 %v3574
    %v3642 = vunpack.c.l.b16 %v3575
    %v3643 = vunpack.c.l.b16 %v3576
    %v3644 = vunpack.c.h.b16 %v3576
    %v3645 = vunpack.c.l.b16 %v3577
    %v3646 = vunpack.c.l.b16 %v3578
    %v3647 = vunpack.c.h.b16 %v3578
    %v3648 = vunpack.c.l.b16 %v3579
    %v3649 = vunpack.c.l.b16 %v3580
    %v3650 = vunpack.c.h.b16 %v3580
    %v3651 = vunpack.c.l.b16 %v3581
    %v3652 = vunpack.c.l.b16 %v3582
    %v3653 = vunpack.c.h.b16 %v3582
    %v3654 = vunpack.c.l.b16 %v3583
    %v3655 = vunpack.c.l.b16 %v3584
    %v3656 = vunpack.c.h.b16 %v3584
    %v3657 = vunpack.c.l.b16 %v3585
    %v3658 = vunpack.c.l.b16 %v3586
    %v3659 = vunpack.c.h.b16 %v3586
    %v3660 = vunpack.c.l.b16 %v3587
    %v3661 = vunpack.c.l.b16 %v3588
    %v3662 = vunpack.c.h.b16 %v3588
    %v3663 = vunpack.c.l.b16 %v3589
    %v3664 = vunpack.c.l.b16 %v3590
    %v3665 = vunpack.c.h.b16 %v3590
    %v3666 = vunpack.c.l.b16 %v3591
    %v3667 = vunpack.c.l.b16 %v3592
    %v3668 = vunpack.c.h.b16 %v3592
    %v3669 = vunpack.c.l.b16 %v3593
    %v3670 = vunpack.c.l.b16 %v3594
    %v3671 = vunpack.c.h.b16 %v3594
    %v3672 = vunpack.c.l.b16 %v3595
    %v3673 = vunpack.c.l.b16 %v3596
    %v3674 = vunpack.c.h.b16 %v3596
    %v3675 = vunpack.c.l.b16 %v3597
    %v3676 = vunpack.c.l.b16 %v3598
    %v3677 = vunpack.c.h.b16 %v3598
    %v3678 = vunpack.c.l.b16 %v3599
    %v3679 = vunpack.c.l.b16 %v3600
    %v3680 = vunpack.c.h.b16 %v3600
    %v3681 = vunpack.c.l.b16 %v3601
    %v3682 = vpack.c.b16 %v3637, %v3634
    %v3683 = vpack.c.b16 %v3638, %v3635
    %v3684 = vpack.c.b16 %v3639, %v3636
    %v3685 = vpack.c.b16 %v3643, %v3640
    %v3686 = vpack.c.b16 %v3644, %v3641
    %v3687 = vpack.c.b16 %v3645, %v3642
    %v3688 = vpack.c.b16 %v3649, %v3646
    %v3689 = vpack.c.b16 %v3650, %v3647
    %v3690 = vpack.c.b16 %v3651, %v3648
    %v3691 = vpack.c.b16 %v3655, %v3652
    %v3692 = vpack.c.b16 %v3656, %v3653
    %v3693 = vpack.c.b16 %v3657, %v3654
    %v3694 = vpack.c.b16 %v3661, %v3658
    %v3695 = vpack.c.b16 %v3662, %v3659
    %v3696 = vpack.c.b16 %v3663, %v3660
    %v3697 = vpack.c.b16 %v3667, %v3664
    %v3698 = vpack.c.b16 %v3668, %v3665
    %v3699 = vpack.c.b16 %v3669, %v3666
    %v3700 = vpack.c.b16 %v3673, %v3670
    %v3701 = vpack.c.b16 %v3674, %v3671
    %v3702 = vpack.c.b16 %v3675, %v3672
    %v3703 = vpack.c.b16 %v3679, %v3676
    %v3704 = vpack.c.b16 %v3680, %v3677
    %v3705 = vpack.c.b16 %v3681, %v3678
    %3730 = vmatprep.subr.bf16.mxu0 %v3683
    %3731 = vmatpush1.bf16.msra.mxu0 %v3682
    %3732 = vmatprep.subr.bf16.mxu0 %v3686
    %3733 = vmatpush1.bf16.msra.mxu0 %v3685
    %3734 = vmatprep.subr.bf16.mxu0 %v3689
    %3735 = vmatpush1.bf16.msra.mxu0 %v3688
    %3736 = vmatprep.subr.bf16.mxu0 %v3692
    %3737 = vmatpush1.bf16.msra.mxu0 %v3691
    %3738 = vmatprep.subr.bf16.mxu0 %v3695
    %3739 = vmatpush1.bf16.msra.mxu0 %v3694
    %3740 = vmatprep.subr.bf16.mxu0 %v3698
    %3741 = vmatpush1.bf16.msra.mxu0 %v3697
    %3742 = vmatprep.subr.bf16.mxu0 %v3701
    %3743 = vmatpush1.bf16.msra.mxu0 %v3700
    %3744 = vmatprep.subr.bf16.mxu0 %v3704
    %3745 = vmatpush1.bf16.msra.mxu0 %v3703
    %3746 = vmatprep.subr.bf16.mxu0 0
    %3747 = vmatpush1.bf16.msra.mxu0 0
    %3748 = vmatprep.subr.bf16.mxu0 0
    %3749 = vmatpush1.bf16.msra.mxu0 0
    %3750 = vmatprep.subr.bf16.mxu0 0
    %3751 = vmatpush1.bf16.msra.mxu0 0
    %3752 = vmatprep.subr.bf16.mxu0 0
    %3753 = vmatpush1.bf16.msra.mxu0 0
    %3754 = vmatprep.subr.bf16.mxu0 0
    %3755 = vmatpush1.bf16.msra.mxu0 0
    %3756 = vmatprep.subr.bf16.mxu0 0
    %3757 = vmatpush1.bf16.msra.mxu0 0
    %3758 = vmatprep.subr.bf16.mxu0 0
    %3759 = vmatpush1.bf16.msra.mxu0 0
    %3760 = vmatprep.subr.bf16.mxu0 0
    %3761 = vmatpush1.bf16.msra.mxu0 0
    %3762 = vmatprep.mubr.bf16.mxu0 0
    %3763 = vmatmul.mubr.bf16.gmra.mrb[0].mxu0 %v3569
    %v3764 = vpop.f32.mrb[0].mxu0
    %v3765 = vadd.f32 %v2633, %v3764
    %v3766 = vpop.f32.mrb[0].mxu0
    %v3767 = vadd.f32 %v2637, %v3766
    %v3768 = vpop.f32.mrb[0].mxu0
    %v3769 = vadd.f32 %v2633, %v3768
    %v3770 = vpop.f32.mrb[0].mxu0
    %v3771 = vadd.f32 %v2637, %v3770
    %3772 = vdwg.mxu0
    %3773 = vmatprep.subr.bf16.mxu0 0
    %3774 = vmatpush1.bf16.msra.mxu0 %v3684
    %3775 = vmatprep.subr.bf16.mxu0 0
    %3776 = vmatpush1.bf16.msra.mxu0 %v3687
    %3777 = vmatprep.subr.bf16.mxu0 0
    %3778 = vmatpush1.bf16.msra.mxu0 %v3690
    %3779 = vmatprep.subr.bf16.mxu0 0
    %3780 = vmatpush1.bf16.msra.mxu0 %v3693
    %3781 = vmatprep.subr.bf16.mxu0 0
    %3782 = vmatpush1.bf16.msra.mxu0 %v3696
    %3783 = vmatprep.subr.bf16.mxu0 0
    %3784 = vmatpush1.bf16.msra.mxu0 %v3699
    %3785 = vmatprep.subr.bf16.mxu0 0
    %3786 = vmatpush1.bf16.msra.mxu0 %v3702
    %3787 = vmatprep.subr.bf16.mxu0 0
    %3788 = vmatpush1.bf16.msra.mxu0 %v3705
    %3789 = vmatprep.subr.bf16.mxu0 0
    %3790 = vmatpush1.bf16.msra.mxu0 0
    %3791 = vmatprep.subr.bf16.mxu0 0
    %3792 = vmatpush1.bf16.msra.mxu0 0
    %3793 = vmatprep.subr.bf16.mxu0 0
    %3794 = vmatpush1.bf16.msra.mxu0 0
    %3795 = vmatprep.subr.bf16.mxu0 0
    %3796 = vmatpush1.bf16.msra.mxu0 0
    %3797 = vmatprep.subr.bf16.mxu0 0
    %3798 = vmatpush1.bf16.msra.mxu0 0
    %3799 = vmatprep.subr.bf16.mxu0 0
    %3800 = vmatpush1.bf16.msra.mxu0 0
    %3801 = vmatprep.subr.bf16.mxu0 0
    %3802 = vmatpush1.bf16.msra.mxu0 0
    %3803 = vmatprep.subr.bf16.mxu0 0
    %3804 = vmatpush1.bf16.msra.mxu0 0
    %3805 = vmatprep.mubr.bf16.mxu0 0
    %3806 = vmatmul.mubr.bf16.gmra.mrb[0].mxu0 %v3569
    %v3807 = vpop.f32.mrb[0].mxu0
    %v3808 = vadd.f32 %v2641, %v3807
    %v3809 = vpop.f32.mrb[0].mxu0
    %v3810 = vpop.f32.mrb[0].mxu0
    %v3811 = vadd.f32 %v2641, %v3810
    %v3812 = vpop.f32.mrb[0].mxu0
    %3813 = vdwg.mxu0
    %v3814 = vadd.f32 %v3563, %v3765
    %v3815 = vadd.f32 %v3566, %v3769
    %v3816 = vxor.u32 %v3814, 2147483648
    %v3817 = vxor.u32 %v3815, 2147483648
    %v3818 = vmul.f32 %v3816, 1.442695
    %v3819 = vpow.pop %v3818
    %v3820 = vmul.f32 %v3817, 1.442695
    %v3821 = vpow.pop %v3820
    %v3822 = vadd.f32 %v3819, 1.0
    %v3823 = vadd.f32 %v3821, 1.0
    %v3824 = vrcp.pop %v3822
    %v3825 = vmul.f32 1.0, %v3824
    %v3826 = vrcp.pop %v3823
    %v3827 = vmul.f32 1.0, %v3826
    %v3828 = vadd.f32 %v3564, %v3767
    %v3829 = vadd.f32 %v3567, %v3771
    %v3830 = vxor.u32 %v3828, 2147483648
    %v3831 = vxor.u32 %v3829, 2147483648
    %v3832 = vmul.f32 %v3830, 1.442695
    %v3833 = vpow.pop %v3832
    %v3834 = vmul.f32 %v3831, 1.442695
    %v3835 = vpow.pop %v3834
    %v3836 = vadd.f32 %v3833, 1.0
    %v3837 = vadd.f32 %v3835, 1.0
    %v3838 = vrcp.pop %v3836
    %v3839 = vmul.f32 1.0, %v3838
    %v3840 = vrcp.pop %v3837
    %v3841 = vmul.f32 1.0, %v3840
    %v3842 = vmul.f32 %v3825, %v3808
    %v3843 = vmul.f32 %v3827, %v3811
    %v3844 = vadd.f32 %v3565, %v3842
    %v3845 = vadd.f32 %v3568, %v3843
    %v3846 = vtanh.pop %v3844
    %v3847 = vtanh.pop %v3845
    %v3848 = vsub.f32 1.0, %v3839
    %v3849 = vsub.f32 1.0, %v3841
    %v3850 = vmul.f32 %v3848, %v3846
    %v3851 = vmul.f32 %v3849, %v3847
    %v3852 = vmul.f32 %v3839, %v3550
    %v3853 = vmul.f32 %v3841, %v3551
    %v3854 = vadd.f32 %v3850, %v3852
    %v3855 = vadd.f32 %v3851, %v3853
    %s3856 = scalar_lea.vmem [#allocation4], 48
    %3857 = vst [vmem:[%s3856] sm:$0xff] %v3854
    %3858 = vst [vmem:[%s3856 + $0x8] sm:$0xff] %v3855
    %s3859 = smul.addr %s1618, 8
    %s3860 = scalar_lea.vmem [#allocation3], %s3859
    %v3861 = vld [vmem:[%s3860] sm:$0xff]
    %v3862 = vld [vmem:[%s3860 + $0x8] sm:$0xff]
    %v3863 = vld [vmem:[%s3860 + $0x10] sm:$0xff]
    %v3864 = vld [vmem:[%s3860 + $0x18] sm:$0xff]
    %v3865 = vld [vmem:[%s3860 + $0x20] sm:$0xff]
    %v3866 = vld [vmem:[%s3860 + $0x28] sm:$0xff]
    %v3867 = vadd.f32 %v3861, %v2579
    %v3868 = vadd.f32 %v3862, %v2581
    %v3869 = vadd.f32 %v3863, %v2622
    %v3870 = vadd.f32 %v3864, %v2583
    %v3871 = vadd.f32 %v3865, %v2585
    %v3872 = vadd.f32 %v3866, %v2625
    %v3873 = vpack.c.bf16 %v3855, %v3854
    %v3874 = vld [vmem:[#allocation14] sm:$0xff]
    %v3875 = vld [vmem:[#allocation14 + $0x8] sm:$0xf]
    %v3876 = vld [vmem:[#allocation14 + $0xc] sm:$0xff]
    %v3877 = vld [vmem:[#allocation14 + $0x14] sm:$0xf]
    %v3878 = vld [vmem:[#allocation14 + $0x18] sm:$0xff]
    %v3879 = vld [vmem:[#allocation14 + $0x20] sm:$0xf]
    %v3880 = vld [vmem:[#allocation14 + $0x24] sm:$0xff]
    %v3881 = vld [vmem:[#allocation14 + $0x2c] sm:$0xf]
    %v3882 = vld [vmem:[#allocation14 + $0x30] sm:$0xff]
    %v3883 = vld [vmem:[#allocation14 + $0x38] sm:$0xf]
    %v3884 = vld [vmem:[#allocation14 + $0x3c] sm:$0xff]
    %v3885 = vld [vmem:[#allocation14 + $0x44] sm:$0xf]
    %v3886 = vld [vmem:[#allocation14 + $0x48] sm:$0xff]
    %v3887 = vld [vmem:[#allocation14 + $0x50] sm:$0xf]
    %v3888 = vld [vmem:[#allocation14 + $0x54] sm:$0xff]
    %v3889 = vld [vmem:[#allocation14 + $0x5c] sm:$0xf]
    %v3890 = vld [vmem:[#allocation14 + $0x60] sm:$0xff]
    %v3891 = vld [vmem:[#allocation14 + $0x68] sm:$0xf]
    %v3892 = vld [vmem:[#allocation14 + $0x6c] sm:$0xff]
    %v3893 = vld [vmem:[#allocation14 + $0x74] sm:$0xf]
    %v3894 = vld [vmem:[#allocation14 + $0x78] sm:$0xff]
    %v3895 = vld [vmem:[#allocation14 + $0x80] sm:$0xf]
    %v3896 = vld [vmem:[#allocation14 + $0x84] sm:$0xff]
    %v3897 = vld [vmem:[#allocation14 + $0x8c] sm:$0xf]
    %v3898 = vld [vmem:[#allocation14 + $0x90] sm:$0xff]
    %v3899 = vld [vmem:[#allocation14 + $0x98] sm:$0xf]
    %v3900 = vld [vmem:[#allocation14 + $0x9c] sm:$0xff]
    %v3901 = vld [vmem:[#allocation14 + $0xa4] sm:$0xf]
    %v3902 = vld [vmem:[#allocation14 + $0xa8] sm:$0xff]
    %v3903 = vld [vmem:[#allocation14 + $0xb0] sm:$0xf]
    %v3904 = vld [vmem:[#allocation14 + $0xb4] sm:$0xff]
    %v3905 = vld [vmem:[#allocation14 + $0xbc] sm:$0xf]
    %v3938 = vunpack.c.l.b16 %v3874
    %v3939 = vunpack.c.h.b16 %v3874
    %v3940 = vunpack.c.l.b16 %v3875
    %v3941 = vunpack.c.l.b16 %v3876
    %v3942 = vunpack.c.h.b16 %v3876
    %v3943 = vunpack.c.l.b16 %v3877
    %v3944 = vunpack.c.l.b16 %v3878
    %v3945 = vunpack.c.h.b16 %v3878
    %v3946 = vunpack.c.l.b16 %v3879
    %v3947 = vunpack.c.l.b16 %v3880
    %v3948 = vunpack.c.h.b16 %v3880
    %v3949 = vunpack.c.l.b16 %v3881
    %v3950 = vunpack.c.l.b16 %v3882
    %v3951 = vunpack.c.h.b16 %v3882
    %v3952 = vunpack.c.l.b16 %v3883
    %v3953 = vunpack.c.l.b16 %v3884
    %v3954 = vunpack.c.h.b16 %v3884
    %v3955 = vunpack.c.l.b16 %v3885
    %v3956 = vunpack.c.l.b16 %v3886
    %v3957 = vunpack.c.h.b16 %v3886
    %v3958 = vunpack.c.l.b16 %v3887
    %v3959 = vunpack.c.l.b16 %v3888
    %v3960 = vunpack.c.h.b16 %v3888
    %v3961 = vunpack.c.l.b16 %v3889
    %v3962 = vunpack.c.l.b16 %v3890
    %v3963 = vunpack.c.h.b16 %v3890
    %v3964 = vunpack.c.l.b16 %v3891
    %v3965 = vunpack.c.l.b16 %v3892
    %v3966 = vunpack.c.h.b16 %v3892
    %v3967 = vunpack.c.l.b16 %v3893
    %v3968 = vunpack.c.l.b16 %v3894
    %v3969 = vunpack.c.h.b16 %v3894
    %v3970 = vunpack.c.l.b16 %v3895
    %v3971 = vunpack.c.l.b16 %v3896
    %v3972 = vunpack.c.h.b16 %v3896
    %v3973 = vunpack.c.l.b16 %v3897
    %v3974 = vunpack.c.l.b16 %v3898
    %v3975 = vunpack.c.h.b16 %v3898
    %v3976 = vunpack.c.l.b16 %v3899
    %v3977 = vunpack.c.l.b16 %v3900
    %v3978 = vunpack.c.h.b16 %v3900
    %v3979 = vunpack.c.l.b16 %v3901
    %v3980 = vunpack.c.l.b16 %v3902
    %v3981 = vunpack.c.h.b16 %v3902
    %v3982 = vunpack.c.l.b16 %v3903
    %v3983 = vunpack.c.l.b16 %v3904
    %v3984 = vunpack.c.h.b16 %v3904
    %v3985 = vunpack.c.l.b16 %v3905
    %v3986 = vpack.c.b16 %v3941, %v3938
    %v3987 = vpack.c.b16 %v3942, %v3939
    %v3988 = vpack.c.b16 %v3943, %v3940
    %v3989 = vpack.c.b16 %v3947, %v3944
    %v3990 = vpack.c.b16 %v3948, %v3945
    %v3991 = vpack.c.b16 %v3949, %v3946
    %v3992 = vpack.c.b16 %v3953, %v3950
    %v3993 = vpack.c.b16 %v3954, %v3951
    %v3994 = vpack.c.b16 %v3955, %v3952
    %v3995 = vpack.c.b16 %v3959, %v3956
    %v3996 = vpack.c.b16 %v3960, %v3957
    %v3997 = vpack.c.b16 %v3961, %v3958
    %v3998 = vpack.c.b16 %v3965, %v3962
    %v3999 = vpack.c.b16 %v3966, %v3963
    %v4000 = vpack.c.b16 %v3967, %v3964
    %v4001 = vpack.c.b16 %v3971, %v3968
    %v4002 = vpack.c.b16 %v3972, %v3969
    %v4003 = vpack.c.b16 %v3973, %v3970
    %v4004 = vpack.c.b16 %v3977, %v3974
    %v4005 = vpack.c.b16 %v3978, %v3975
    %v4006 = vpack.c.b16 %v3979, %v3976
    %v4007 = vpack.c.b16 %v3983, %v3980
    %v4008 = vpack.c.b16 %v3984, %v3981
    %v4009 = vpack.c.b16 %v3985, %v3982
    %4034 = vmatprep.subr.bf16.mxu0 %v3987
    %4035 = vmatpush1.bf16.msra.mxu0 %v3986
    %4036 = vmatprep.subr.bf16.mxu0 %v3990
    %4037 = vmatpush1.bf16.msra.mxu0 %v3989
    %4038 = vmatprep.subr.bf16.mxu0 %v3993
    %4039 = vmatpush1.bf16.msra.mxu0 %v3992
    %4040 = vmatprep.subr.bf16.mxu0 %v3996
    %4041 = vmatpush1.bf16.msra.mxu0 %v3995
    %4042 = vmatprep.subr.bf16.mxu0 %v3999
    %4043 = vmatpush1.bf16.msra.mxu0 %v3998
    %4044 = vmatprep.subr.bf16.mxu0 %v4002
    %4045 = vmatpush1.bf16.msra.mxu0 %v4001
    %4046 = vmatprep.subr.bf16.mxu0 %v4005
    %4047 = vmatpush1.bf16.msra.mxu0 %v4004
    %4048 = vmatprep.subr.bf16.mxu0 %v4008
    %4049 = vmatpush1.bf16.msra.mxu0 %v4007
    %4050 = vmatprep.subr.bf16.mxu0 0
    %4051 = vmatpush1.bf16.msra.mxu0 0
    %4052 = vmatprep.subr.bf16.mxu0 0
    %4053 = vmatpush1.bf16.msra.mxu0 0
    %4054 = vmatprep.subr.bf16.mxu0 0
    %4055 = vmatpush1.bf16.msra.mxu0 0
    %4056 = vmatprep.subr.bf16.mxu0 0
    %4057 = vmatpush1.bf16.msra.mxu0 0
    %4058 = vmatprep.subr.bf16.mxu0 0
    %4059 = vmatpush1.bf16.msra.mxu0 0
    %4060 = vmatprep.subr.bf16.mxu0 0
    %4061 = vmatpush1.bf16.msra.mxu0 0
    %4062 = vmatprep.subr.bf16.mxu0 0
    %4063 = vmatpush1.bf16.msra.mxu0 0
    %4064 = vmatprep.subr.bf16.mxu0 0
    %4065 = vmatpush1.bf16.msra.mxu0 0
    %4066 = vmatprep.mubr.bf16.mxu0 0
    %4067 = vmatmul.mubr.bf16.gmra.mrb[0].mxu0 %v3873
    %v4068 = vpop.f32.mrb[0].mxu0
    %v4069 = vadd.f32 %v2633, %v4068
    %v4070 = vpop.f32.mrb[0].mxu0
    %v4071 = vadd.f32 %v2637, %v4070
    %v4072 = vpop.f32.mrb[0].mxu0
    %v4073 = vadd.f32 %v2633, %v4072
    %v4074 = vpop.f32.mrb[0].mxu0
    %v4075 = vadd.f32 %v2637, %v4074
    %4076 = vdwg.mxu0
    %4077 = vmatprep.subr.bf16.mxu0 0
    %4078 = vmatpush1.bf16.msra.mxu0 %v3988
    %4079 = vmatprep.subr.bf16.mxu0 0
    %4080 = vmatpush1.bf16.msra.mxu0 %v3991
    %4081 = vmatprep.subr.bf16.mxu0 0
    %4082 = vmatpush1.bf16.msra.mxu0 %v3994
    %4083 = vmatprep.subr.bf16.mxu0 0
    %4084 = vmatpush1.bf16.msra.mxu0 %v3997
    %4085 = vmatprep.subr.bf16.mxu0 0
    %4086 = vmatpush1.bf16.msra.mxu0 %v4000
    %4087 = vmatprep.subr.bf16.mxu0 0
    %4088 = vmatpush1.bf16.msra.mxu0 %v4003
    %4089 = vmatprep.subr.bf16.mxu0 0
    %4090 = vmatpush1.bf16.msra.mxu0 %v4006
    %4091 = vmatprep.subr.bf16.mxu0 0
    %4092 = vmatpush1.bf16.msra.mxu0 %v4009
    %4093 = vmatprep.subr.bf16.mxu0 0
    %4094 = vmatpush1.bf16.msra.mxu0 0
    %4095 = vmatprep.subr.bf16.mxu0 0
    %4096 = vmatpush1.bf16.msra.mxu0 0
    %4097 = vmatprep.subr.bf16.mxu0 0
    %4098 = vmatpush1.bf16.msra.mxu0 0
    %4099 = vmatprep.subr.bf16.mxu0 0
    %4100 = vmatpush1.bf16.msra.mxu0 0
    %4101 = vmatprep.subr.bf16.mxu0 0
    %4102 = vmatpush1.bf16.msra.mxu0 0
    %4103 = vmatprep.subr.bf16.mxu0 0
    %4104 = vmatpush1.bf16.msra.mxu0 0
    %4105 = vmatprep.subr.bf16.mxu0 0
    %4106 = vmatpush1.bf16.msra.mxu0 0
    %4107 = vmatprep.subr.bf16.mxu0 0
    %4108 = vmatpush1.bf16.msra.mxu0 0
    %4109 = vmatprep.mubr.bf16.mxu0 0
    %4110 = vmatmul.mubr.bf16.gmra.mrb[0].mxu0 %v3873
    %v4111 = vpop.f32.mrb[0].mxu0
    %v4112 = vadd.f32 %v2641, %v4111
    %v4113 = vpop.f32.mrb[0].mxu0
    %v4114 = vpop.f32.mrb[0].mxu0
    %v4115 = vadd.f32 %v2641, %v4114
    %v4116 = vpop.f32.mrb[0].mxu0
    %4117 = vdwg.mxu0
    %v4118 = vadd.f32 %v3867, %v4069
    %v4119 = vadd.f32 %v3870, %v4073
    %v4120 = vxor.u32 %v4118, 2147483648
    %v4121 = vxor.u32 %v4119, 2147483648
    %v4122 = vmul.f32 %v4120, 1.442695
    %v4123 = vpow.pop %v4122
    %v4124 = vmul.f32 %v4121, 1.442695
    %v4125 = vpow.pop %v4124
    %v4126 = vadd.f32 %v4123, 1.0
    %v4127 = vadd.f32 %v4125, 1.0
    %v4128 = vrcp.pop %v4126
    %v4129 = vmul.f32 1.0, %v4128
    %v4130 = vrcp.pop %v4127
    %v4131 = vmul.f32 1.0, %v4130
    %v4132 = vadd.f32 %v3868, %v4071
    %v4133 = vadd.f32 %v3871, %v4075
    %v4134 = vxor.u32 %v4132, 2147483648
    %v4135 = vxor.u32 %v4133, 2147483648
    %v4136 = vmul.f32 %v4134, 1.442695
    %v4137 = vpow.pop %v4136
    %v4138 = vmul.f32 %v4135, 1.442695
    %v4139 = vpow.pop %v4138
    %v4140 = vadd.f32 %v4137, 1.0
    %v4141 = vadd.f32 %v4139, 1.0
    %v4142 = vrcp.pop %v4140
    %v4143 = vmul.f32 1.0, %v4142
    %v4144 = vrcp.pop %v4141
    %v4145 = vmul.f32 1.0, %v4144
    %v4146 = vmul.f32 %v4129, %v4112
    %v4147 = vmul.f32 %v4131, %v4115
    %v4148 = vadd.f32 %v3869, %v4146
    %v4149 = vadd.f32 %v3872, %v4147
    %v4150 = vtanh.pop %v4148
    %v4151 = vtanh.pop %v4149
    %v4152 = vsub.f32 1.0, %v4143
    %v4153 = vsub.f32 1.0, %v4145
    %v4154 = vmul.f32 %v4152, %v4150
    %v4155 = vmul.f32 %v4153, %v4151
    %v4156 = vmul.f32 %v4143, %v3854
    %v4157 = vmul.f32 %v4145, %v3855
    %v4158 = vadd.f32 %v4154, %v4156
    %v4159 = vadd.f32 %v4155, %v4157
    %s4160 = scalar_lea.vmem [#allocation4], 64
    %4161 = vst [vmem:[%s4160] sm:$0xff] %v4158
    %4162 = vst [vmem:[%s4160 + $0x8] sm:$0xff] %v4159
    %s4163 = smul.addr %s1763, 8
    %s4164 = scalar_lea.vmem [#allocation3], %s4163
    %v4165 = vld [vmem:[%s4164] sm:$0xff]
    %v4166 = vld [vmem:[%s4164 + $0x8] sm:$0xff]
    %v4167 = vld [vmem:[%s4164 + $0x10] sm:$0xff]
    %v4168 = vld [vmem:[%s4164 + $0x18] sm:$0xff]
    %v4169 = vld [vmem:[%s4164 + $0x20] sm:$0xff]
    %v4170 = vld [vmem:[%s4164 + $0x28] sm:$0xff]
    %v4171 = vadd.f32 %v4165, %v2579
    %v4172 = vadd.f32 %v4166, %v2581
    %v4173 = vadd.f32 %v4167, %v2622
    %v4174 = vadd.f32 %v4168, %v2583
    %v4175 = vadd.f32 %v4169, %v2585
    %v4176 = vadd.f32 %v4170, %v2625
    %v4177 = vpack.c.bf16 %v4159, %v4158
    %v4178 = vld [vmem:[#allocation14] sm:$0xff]
    %v4179 = vld [vmem:[#allocation14 + $0x8] sm:$0xf]
    %v4180 = vld [vmem:[#allocation14 + $0xc] sm:$0xff]
    %v4181 = vld [vmem:[#allocation14 + $0x14] sm:$0xf]
    %v4182 = vld [vmem:[#allocation14 + $0x18] sm:$0xff]
    %v4183 = vld [vmem:[#allocation14 + $0x20] sm:$0xf]
    %v4184 = vld [vmem:[#allocation14 + $0x24] sm:$0xff]
    %v4185 = vld [vmem:[#allocation14 + $0x2c] sm:$0xf]
    %v4186 = vld [vmem:[#allocation14 + $0x30] sm:$0xff]
    %v4187 = vld [vmem:[#allocation14 + $0x38] sm:$0xf]
    %v4188 = vld [vmem:[#allocation14 + $0x3c] sm:$0xff]
    %v4189 = vld [vmem:[#allocation14 + $0x44] sm:$0xf]
    %v4190 = vld [vmem:[#allocation14 + $0x48] sm:$0xff]
    %v4191 = vld [vmem:[#allocation14 + $0x50] sm:$0xf]
    %v4192 = vld [vmem:[#allocation14 + $0x54] sm:$0xff]
    %v4193 = vld [vmem:[#allocation14 + $0x5c] sm:$0xf]
    %v4194 = vld [vmem:[#allocation14 + $0x60] sm:$0xff]
    %v4195 = vld [vmem:[#allocation14 + $0x68] sm:$0xf]
    %v4196 = vld [vmem:[#allocation14 + $0x6c] sm:$0xff]
    %v4197 = vld [vmem:[#allocation14 + $0x74] sm:$0xf]
    %v4198 = vld [vmem:[#allocation14 + $0x78] sm:$0xff]
    %v4199 = vld [vmem:[#allocation14 + $0x80] sm:$0xf]
    %v4200 = vld [vmem:[#allocation14 + $0x84] sm:$0xff]
    %v4201 = vld [vmem:[#allocation14 + $0x8c] sm:$0xf]
    %v4202 = vld [vmem:[#allocation14 + $0x90] sm:$0xff]
    %v4203 = vld [vmem:[#allocation14 + $0x98] sm:$0xf]
    %v4204 = vld [vmem:[#allocation14 + $0x9c] sm:$0xff]
    %v4205 = vld [vmem:[#allocation14 + $0xa4] sm:$0xf]
    %v4206 = vld [vmem:[#allocation14 + $0xa8] sm:$0xff]
    %v4207 = vld [vmem:[#allocation14 + $0xb0] sm:$0xf]
    %v4208 = vld [vmem:[#allocation14 + $0xb4] sm:$0xff]
    %v4209 = vld [vmem:[#allocation14 + $0xbc] sm:$0xf]
    %v4242 = vunpack.c.l.b16 %v4178
    %v4243 = vunpack.c.h.b16 %v4178
    %v4244 = vunpack.c.l.b16 %v4179
    %v4245 = vunpack.c.l.b16 %v4180
    %v4246 = vunpack.c.h.b16 %v4180
    %v4247 = vunpack.c.l.b16 %v4181
    %v4248 = vunpack.c.l.b16 %v4182
    %v4249 = vunpack.c.h.b16 %v4182
    %v4250 = vunpack.c.l.b16 %v4183
    %v4251 = vunpack.c.l.b16 %v4184
    %v4252 = vunpack.c.h.b16 %v4184
    %v4253 = vunpack.c.l.b16 %v4185
    %v4254 = vunpack.c.l.b16 %v4186
    %v4255 = vunpack.c.h.b16 %v4186
    %v4256 = vunpack.c.l.b16 %v4187
    %v4257 = vunpack.c.l.b16 %v4188
    %v4258 = vunpack.c.h.b16 %v4188
    %v4259 = vunpack.c.l.b16 %v4189
    %v4260 = vunpack.c.l.b16 %v4190
    %v4261 = vunpack.c.h.b16 %v4190
    %v4262 = vunpack.c.l.b16 %v4191
    %v4263 = vunpack.c.l.b16 %v4192
    %v4264 = vunpack.c.h.b16 %v4192
    %v4265 = vunpack.c.l.b16 %v4193
    %v4266 = vunpack.c.l.b16 %v4194
    %v4267 = vunpack.c.h.b16 %v4194
    %v4268 = vunpack.c.l.b16 %v4195
    %v4269 = vunpack.c.l.b16 %v4196
    %v4270 = vunpack.c.h.b16 %v4196
    %v4271 = vunpack.c.l.b16 %v4197
    %v4272 = vunpack.c.l.b16 %v4198
    %v4273 = vunpack.c.h.b16 %v4198
    %v4274 = vunpack.c.l.b16 %v4199
    %v4275 = vunpack.c.l.b16 %v4200
    %v4276 = vunpack.c.h.b16 %v4200
    %v4277 = vunpack.c.l.b16 %v4201
    %v4278 = vunpack.c.l.b16 %v4202
    %v4279 = vunpack.c.h.b16 %v4202
    %v4280 = vunpack.c.l.b16 %v4203
    %v4281 = vunpack.c.l.b16 %v4204
    %v4282 = vunpack.c.h.b16 %v4204
    %v4283 = vunpack.c.l.b16 %v4205
    %v4284 = vunpack.c.l.b16 %v4206
    %v4285 = vunpack.c.h.b16 %v4206
    %v4286 = vunpack.c.l.b16 %v4207
    %v4287 = vunpack.c.l.b16 %v4208
    %v4288 = vunpack.c.h.b16 %v4208
    %v4289 = vunpack.c.l.b16 %v4209
    %v4290 = vpack.c.b16 %v4245, %v4242
    %v4291 = vpack.c.b16 %v4246, %v4243
    %v4292 = vpack.c.b16 %v4247, %v4244
    %v4293 = vpack.c.b16 %v4251, %v4248
    %v4294 = vpack.c.b16 %v4252, %v4249
    %v4295 = vpack.c.b16 %v4253, %v4250
    %v4296 = vpack.c.b16 %v4257, %v4254
    %v4297 = vpack.c.b16 %v4258, %v4255
    %v4298 = vpack.c.b16 %v4259, %v4256
    %v4299 = vpack.c.b16 %v4263, %v4260
    %v4300 = vpack.c.b16 %v4264, %v4261
    %v4301 = vpack.c.b16 %v4265, %v4262
    %v4302 = vpack.c.b16 %v4269, %v4266
    %v4303 = vpack.c.b16 %v4270, %v4267
    %v4304 = vpack.c.b16 %v4271, %v4268
    %v4305 = vpack.c.b16 %v4275, %v4272
    %v4306 = vpack.c.b16 %v4276, %v4273
    %v4307 = vpack.c.b16 %v4277, %v4274
    %v4308 = vpack.c.b16 %v4281, %v4278
    %v4309 = vpack.c.b16 %v4282, %v4279
    %v4310 = vpack.c.b16 %v4283, %v4280
    %v4311 = vpack.c.b16 %v4287, %v4284
    %v4312 = vpack.c.b16 %v4288, %v4285
    %v4313 = vpack.c.b16 %v4289, %v4286
    %4338 = vmatprep.subr.bf16.mxu0 %v4291
    %4339 = vmatpush1.bf16.msra.mxu0 %v4290
    %4340 = vmatprep.subr.bf16.mxu0 %v4294
    %4341 = vmatpush1.bf16.msra.mxu0 %v4293
    %4342 = vmatprep.subr.bf16.mxu0 %v4297
    %4343 = vmatpush1.bf16.msra.mxu0 %v4296
    %4344 = vmatprep.subr.bf16.mxu0 %v4300
    %4345 = vmatpush1.bf16.msra.mxu0 %v4299
    %4346 = vmatprep.subr.bf16.mxu0 %v4303
    %4347 = vmatpush1.bf16.msra.mxu0 %v4302
    %4348 = vmatprep.subr.bf16.mxu0 %v4306
    %4349 = vmatpush1.bf16.msra.mxu0 %v4305
    %4350 = vmatprep.subr.bf16.mxu0 %v4309
    %4351 = vmatpush1.bf16.msra.mxu0 %v4308
    %4352 = vmatprep.subr.bf16.mxu0 %v4312
    %4353 = vmatpush1.bf16.msra.mxu0 %v4311
    %4354 = vmatprep.subr.bf16.mxu0 0
    %4355 = vmatpush1.bf16.msra.mxu0 0
    %4356 = vmatprep.subr.bf16.mxu0 0
    %4357 = vmatpush1.bf16.msra.mxu0 0
    %4358 = vmatprep.subr.bf16.mxu0 0
    %4359 = vmatpush1.bf16.msra.mxu0 0
    %4360 = vmatprep.subr.bf16.mxu0 0
    %4361 = vmatpush1.bf16.msra.mxu0 0
    %4362 = vmatprep.subr.bf16.mxu0 0
    %4363 = vmatpush1.bf16.msra.mxu0 0
    %4364 = vmatprep.subr.bf16.mxu0 0
    %4365 = vmatpush1.bf16.msra.mxu0 0
    %4366 = vmatprep.subr.bf16.mxu0 0
    %4367 = vmatpush1.bf16.msra.mxu0 0
    %4368 = vmatprep.subr.bf16.mxu0 0
    %4369 = vmatpush1.bf16.msra.mxu0 0
    %4370 = vmatprep.mubr.bf16.mxu0 0
    %4371 = vmatmul.mubr.bf16.gmra.mrb[0].mxu0 %v4177
    %v4372 = vpop.f32.mrb[0].mxu0
    %v4373 = vadd.f32 %v2633, %v4372
    %v4374 = vpop.f32.mrb[0].mxu0
    %v4375 = vadd.f32 %v2637, %v4374
    %v4376 = vpop.f32.mrb[0].mxu0
    %v4377 = vadd.f32 %v2633, %v4376
    %v4378 = vpop.f32.mrb[0].mxu0
    %v4379 = vadd.f32 %v2637, %v4378
    %4380 = vdwg.mxu0
    %4381 = vmatprep.subr.bf16.mxu0 0
    %4382 = vmatpush1.bf16.msra.mxu0 %v4292
    %4383 = vmatprep.subr.bf16.mxu0 0
    %4384 = vmatpush1.bf16.msra.mxu0 %v4295
    %4385 = vmatprep.subr.bf16.mxu0 0
    %4386 = vmatpush1.bf16.msra.mxu0 %v4298
    %4387 = vmatprep.subr.bf16.mxu0 0
    %4388 = vmatpush1.bf16.msra.mxu0 %v4301
    %4389 = vmatprep.subr.bf16.mxu0 0
    %4390 = vmatpush1.bf16.msra.mxu0 %v4304
    %4391 = vmatprep.subr.bf16.mxu0 0
    %4392 = vmatpush1.bf16.msra.mxu0 %v4307
    %4393 = vmatprep.subr.bf16.mxu0 0
    %4394 = vmatpush1.bf16.msra.mxu0 %v4310
    %4395 = vmatprep.subr.bf16.mxu0 0
    %4396 = vmatpush1.bf16.msra.mxu0 %v4313
    %4397 = vmatprep.subr.bf16.mxu0 0
    %4398 = vmatpush1.bf16.msra.mxu0 0
    %4399 = vmatprep.subr.bf16.mxu0 0
    %4400 = vmatpush1.bf16.msra.mxu0 0
    %4401 = vmatprep.subr.bf16.mxu0 0
    %4402 = vmatpush1.bf16.msra.mxu0 0
    %4403 = vmatprep.subr.bf16.mxu0 0
    %4404 = vmatpush1.bf16.msra.mxu0 0
    %4405 = vmatprep.subr.bf16.mxu0 0
    %4406 = vmatpush1.bf16.msra.mxu0 0
    %4407 = vmatprep.subr.bf16.mxu0 0
    %4408 = vmatpush1.bf16.msra.mxu0 0
    %4409 = vmatprep.subr.bf16.mxu0 0
    %4410 = vmatpush1.bf16.msra.mxu0 0
    %4411 = vmatprep.subr.bf16.mxu0 0
    %4412 = vmatpush1.bf16.msra.mxu0 0
    %4413 = vmatprep.mubr.bf16.mxu0 0
    %4414 = vmatmul.mubr.bf16.gmra.mrb[0].mxu0 %v4177
    %v4415 = vpop.f32.mrb[0].mxu0
    %v4416 = vadd.f32 %v2641, %v4415
    %v4417 = vpop.f32.mrb[0].mxu0
    %v4418 = vpop.f32.mrb[0].mxu0
    %v4419 = vadd.f32 %v2641, %v4418
    %v4420 = vpop.f32.mrb[0].mxu0
    %4421 = vdwg.mxu0
    %v4422 = vadd.f32 %v4171, %v4373
    %v4423 = vadd.f32 %v4174, %v4377
    %v4424 = vxor.u32 %v4422, 2147483648
    %v4425 = vxor.u32 %v4423, 2147483648
    %v4426 = vmul.f32 %v4424, 1.442695
    %v4427 = vpow.pop %v4426
    %v4428 = vmul.f32 %v4425, 1.442695
    %v4429 = vpow.pop %v4428
    %v4430 = vadd.f32 %v4427, 1.0
    %v4431 = vadd.f32 %v4429, 1.0
    %v4432 = vrcp.pop %v4430
    %v4433 = vmul.f32 1.0, %v4432
    %v4434 = vrcp.pop %v4431
    %v4435 = vmul.f32 1.0, %v4434
    %v4436 = vadd.f32 %v4172, %v4375
    %v4437 = vadd.f32 %v4175, %v4379
    %v4438 = vxor.u32 %v4436, 2147483648
    %v4439 = vxor.u32 %v4437, 2147483648
    %v4440 = vmul.f32 %v4438, 1.442695
    %v4441 = vpow.pop %v4440
    %v4442 = vmul.f32 %v4439, 1.442695
    %v4443 = vpow.pop %v4442
    %v4444 = vadd.f32 %v4441, 1.0
    %v4445 = vadd.f32 %v4443, 1.0
    %v4446 = vrcp.pop %v4444
    %v4447 = vmul.f32 1.0, %v4446
    %v4448 = vrcp.pop %v4445
    %v4449 = vmul.f32 1.0, %v4448
    %v4450 = vmul.f32 %v4433, %v4416
    %v4451 = vmul.f32 %v4435, %v4419
    %v4452 = vadd.f32 %v4173, %v4450
    %v4453 = vadd.f32 %v4176, %v4451
    %v4454 = vtanh.pop %v4452
    %v4455 = vtanh.pop %v4453
    %v4456 = vsub.f32 1.0, %v4447
    %v4457 = vsub.f32 1.0, %v4449
    %v4458 = vmul.f32 %v4456, %v4454
    %v4459 = vmul.f32 %v4457, %v4455
    %v4460 = vmul.f32 %v4447, %v4158
    %v4461 = vmul.f32 %v4449, %v4159
    %v4462 = vadd.f32 %v4458, %v4460
    %v4463 = vadd.f32 %v4459, %v4461
    %s4464 = scalar_lea.vmem [#allocation4], 80
    %4465 = vst [vmem:[%s4464] sm:$0xff] %v4462
    %4466 = vst [vmem:[%s4464 + $0x8] sm:$0xff] %v4463
    %s4467 = smul.addr %s1908, 8
    %s4468 = scalar_lea.vmem [#allocation3], %s4467
    %v4469 = vld [vmem:[%s4468] sm:$0xff]
    %v4470 = vld [vmem:[%s4468 + $0x8] sm:$0xff]
    %v4471 = vld [vmem:[%s4468 + $0x10] sm:$0xff]
    %v4472 = vld [vmem:[%s4468 + $0x18] sm:$0xff]
    %v4473 = vld [vmem:[%s4468 + $0x20] sm:$0xff]
    %v4474 = vld [vmem:[%s4468 + $0x28] sm:$0xff]
    %v4475 = vadd.f32 %v4469, %v2579
    %v4476 = vadd.f32 %v4470, %v2581
    %v4477 = vadd.f32 %v4471, %v2622
    %v4478 = vadd.f32 %v4472, %v2583
    %v4479 = vadd.f32 %v4473, %v2585
    %v4480 = vadd.f32 %v4474, %v2625
    %v4481 = vpack.c.bf16 %v4463, %v4462
    %v4482 = vld [vmem:[#allocation14] sm:$0xff]
    %v4483 = vld [vmem:[#allocation14 + $0x8] sm:$0xf]
    %v4484 = vld [vmem:[#allocation14 + $0xc] sm:$0xff]
    %v4485 = vld [vmem:[#allocation14 + $0x14] sm:$0xf]
    %v4486 = vld [vmem:[#allocation14 + $0x18] sm:$0xff]
    %v4487 = vld [vmem:[#allocation14 + $0x20] sm:$0xf]
    %v4488 = vld [vmem:[#allocation14 + $0x24] sm:$0xff]
    %v4489 = vld [vmem:[#allocation14 + $0x2c] sm:$0xf]
    %v4490 = vld [vmem:[#allocation14 + $0x30] sm:$0xff]
    %v4491 = vld [vmem:[#allocation14 + $0x38] sm:$0xf]
    %v4492 = vld [vmem:[#allocation14 + $0x3c] sm:$0xff]
    %v4493 = vld [vmem:[#allocation14 + $0x44] sm:$0xf]
    %v4494 = vld [vmem:[#allocation14 + $0x48] sm:$0xff]
    %v4495 = vld [vmem:[#allocation14 + $0x50] sm:$0xf]
    %v4496 = vld [vmem:[#allocation14 + $0x54] sm:$0xff]
    %v4497 = vld [vmem:[#allocation14 + $0x5c] sm:$0xf]
    %v4498 = vld [vmem:[#allocation14 + $0x60] sm:$0xff]
    %v4499 = vld [vmem:[#allocation14 + $0x68] sm:$0xf]
    %v4500 = vld [vmem:[#allocation14 + $0x6c] sm:$0xff]
    %v4501 = vld [vmem:[#allocation14 + $0x74] sm:$0xf]
    %v4502 = vld [vmem:[#allocation14 + $0x78] sm:$0xff]
    %v4503 = vld [vmem:[#allocation14 + $0x80] sm:$0xf]
    %v4504 = vld [vmem:[#allocation14 + $0x84] sm:$0xff]
    %v4505 = vld [vmem:[#allocation14 + $0x8c] sm:$0xf]
    %v4506 = vld [vmem:[#allocation14 + $0x90] sm:$0xff]
    %v4507 = vld [vmem:[#allocation14 + $0x98] sm:$0xf]
    %v4508 = vld [vmem:[#allocation14 + $0x9c] sm:$0xff]
    %v4509 = vld [vmem:[#allocation14 + $0xa4] sm:$0xf]
    %v4510 = vld [vmem:[#allocation14 + $0xa8] sm:$0xff]
    %v4511 = vld [vmem:[#allocation14 + $0xb0] sm:$0xf]
    %v4512 = vld [vmem:[#allocation14 + $0xb4] sm:$0xff]
    %v4513 = vld [vmem:[#allocation14 + $0xbc] sm:$0xf]
    %v4546 = vunpack.c.l.b16 %v4482
    %v4547 = vunpack.c.h.b16 %v4482
    %v4548 = vunpack.c.l.b16 %v4483
    %v4549 = vunpack.c.l.b16 %v4484
    %v4550 = vunpack.c.h.b16 %v4484
    %v4551 = vunpack.c.l.b16 %v4485
    %v4552 = vunpack.c.l.b16 %v4486
    %v4553 = vunpack.c.h.b16 %v4486
    %v4554 = vunpack.c.l.b16 %v4487
    %v4555 = vunpack.c.l.b16 %v4488
    %v4556 = vunpack.c.h.b16 %v4488
    %v4557 = vunpack.c.l.b16 %v4489
    %v4558 = vunpack.c.l.b16 %v4490
    %v4559 = vunpack.c.h.b16 %v4490
    %v4560 = vunpack.c.l.b16 %v4491
    %v4561 = vunpack.c.l.b16 %v4492
    %v4562 = vunpack.c.h.b16 %v4492
    %v4563 = vunpack.c.l.b16 %v4493
    %v4564 = vunpack.c.l.b16 %v4494
    %v4565 = vunpack.c.h.b16 %v4494
    %v4566 = vunpack.c.l.b16 %v4495
    %v4567 = vunpack.c.l.b16 %v4496
    %v4568 = vunpack.c.h.b16 %v4496
    %v4569 = vunpack.c.l.b16 %v4497
    %v4570 = vunpack.c.l.b16 %v4498
    %v4571 = vunpack.c.h.b16 %v4498
    %v4572 = vunpack.c.l.b16 %v4499
    %v4573 = vunpack.c.l.b16 %v4500
    %v4574 = vunpack.c.h.b16 %v4500
    %v4575 = vunpack.c.l.b16 %v4501
    %v4576 = vunpack.c.l.b16 %v4502
    %v4577 = vunpack.c.h.b16 %v4502
    %v4578 = vunpack.c.l.b16 %v4503
    %v4579 = vunpack.c.l.b16 %v4504
    %v4580 = vunpack.c.h.b16 %v4504
    %v4581 = vunpack.c.l.b16 %v4505
    %v4582 = vunpack.c.l.b16 %v4506
    %v4583 = vunpack.c.h.b16 %v4506
    %v4584 = vunpack.c.l.b16 %v4507
    %v4585 = vunpack.c.l.b16 %v4508
    %v4586 = vunpack.c.h.b16 %v4508
    %v4587 = vunpack.c.l.b16 %v4509
    %v4588 = vunpack.c.l.b16 %v4510
    %v4589 = vunpack.c.h.b16 %v4510
    %v4590 = vunpack.c.l.b16 %v4511
    %v4591 = vunpack.c.l.b16 %v4512
    %v4592 = vunpack.c.h.b16 %v4512
    %v4593 = vunpack.c.l.b16 %v4513
    %v4594 = vpack.c.b16 %v4549, %v4546
    %v4595 = vpack.c.b16 %v4550, %v4547
    %v4596 = vpack.c.b16 %v4551, %v4548
    %v4597 = vpack.c.b16 %v4555, %v4552
    %v4598 = vpack.c.b16 %v4556, %v4553
    %v4599 = vpack.c.b16 %v4557, %v4554
    %v4600 = vpack.c.b16 %v4561, %v4558
    %v4601 = vpack.c.b16 %v4562, %v4559
    %v4602 = vpack.c.b16 %v4563, %v4560
    %v4603 = vpack.c.b16 %v4567, %v4564
    %v4604 = vpack.c.b16 %v4568, %v4565
    %v4605 = vpack.c.b16 %v4569, %v4566
    %v4606 = vpack.c.b16 %v4573, %v4570
    %v4607 = vpack.c.b16 %v4574, %v4571
    %v4608 = vpack.c.b16 %v4575, %v4572
    %v4609 = vpack.c.b16 %v4579, %v4576
    %v4610 = vpack.c.b16 %v4580, %v4577
    %v4611 = vpack.c.b16 %v4581, %v4578
    %v4612 = vpack.c.b16 %v4585, %v4582
    %v4613 = vpack.c.b16 %v4586, %v4583
    %v4614 = vpack.c.b16 %v4587, %v4584
    %v4615 = vpack.c.b16 %v4591, %v4588
    %v4616 = vpack.c.b16 %v4592, %v4589
    %v4617 = vpack.c.b16 %v4593, %v4590
    %4642 = vmatprep.subr.bf16.mxu0 %v4595
    %4643 = vmatpush1.bf16.msra.mxu0 %v4594
    %4644 = vmatprep.subr.bf16.mxu0 %v4598
    %4645 = vmatpush1.bf16.msra.mxu0 %v4597
    %4646 = vmatprep.subr.bf16.mxu0 %v4601
    %4647 = vmatpush1.bf16.msra.mxu0 %v4600
    %4648 = vmatprep.subr.bf16.mxu0 %v4604
    %4649 = vmatpush1.bf16.msra.mxu0 %v4603
    %4650 = vmatprep.subr.bf16.mxu0 %v4607
    %4651 = vmatpush1.bf16.msra.mxu0 %v4606
    %4652 = vmatprep.subr.bf16.mxu0 %v4610
    %4653 = vmatpush1.bf16.msra.mxu0 %v4609
    %4654 = vmatprep.subr.bf16.mxu0 %v4613
    %4655 = vmatpush1.bf16.msra.mxu0 %v4612
    %4656 = vmatprep.subr.bf16.mxu0 %v4616
    %4657 = vmatpush1.bf16.msra.mxu0 %v4615
    %4658 = vmatprep.subr.bf16.mxu0 0
    %4659 = vmatpush1.bf16.msra.mxu0 0
    %4660 = vmatprep.subr.bf16.mxu0 0
    %4661 = vmatpush1.bf16.msra.mxu0 0
    %4662 = vmatprep.subr.bf16.mxu0 0
    %4663 = vmatpush1.bf16.msra.mxu0 0
    %4664 = vmatprep.subr.bf16.mxu0 0
    %4665 = vmatpush1.bf16.msra.mxu0 0
    %4666 = vmatprep.subr.bf16.mxu0 0
    %4667 = vmatpush1.bf16.msra.mxu0 0
    %4668 = vmatprep.subr.bf16.mxu0 0
    %4669 = vmatpush1.bf16.msra.mxu0 0
    %4670 = vmatprep.subr.bf16.mxu0 0
    %4671 = vmatpush1.bf16.msra.mxu0 0
    %4672 = vmatprep.subr.bf16.mxu0 0
    %4673 = vmatpush1.bf16.msra.mxu0 0
    %4674 = vmatprep.mubr.bf16.mxu0 0
    %4675 = vmatmul.mubr.bf16.gmra.mrb[0].mxu0 %v4481
    %v4676 = vpop.f32.mrb[0].mxu0
    %v4677 = vadd.f32 %v2633, %v4676
    %v4678 = vpop.f32.mrb[0].mxu0
    %v4679 = vadd.f32 %v2637, %v4678
    %v4680 = vpop.f32.mrb[0].mxu0
    %v4681 = vadd.f32 %v2633, %v4680
    %v4682 = vpop.f32.mrb[0].mxu0
    %v4683 = vadd.f32 %v2637, %v4682
    %4684 = vdwg.mxu0
    %4685 = vmatprep.subr.bf16.mxu0 0
    %4686 = vmatpush1.bf16.msra.mxu0 %v4596
    %4687 = vmatprep.subr.bf16.mxu0 0
    %4688 = vmatpush1.bf16.msra.mxu0 %v4599
    %4689 = vmatprep.subr.bf16.mxu0 0
    %4690 = vmatpush1.bf16.msra.mxu0 %v4602
    %4691 = vmatprep.subr.bf16.mxu0 0
    %4692 = vmatpush1.bf16.msra.mxu0 %v4605
    %4693 = vmatprep.subr.bf16.mxu0 0
    %4694 = vmatpush1.bf16.msra.mxu0 %v4608
    %4695 = vmatprep.subr.bf16.mxu0 0
    %4696 = vmatpush1.bf16.msra.mxu0 %v4611
    %4697 = vmatprep.subr.bf16.mxu0 0
    %4698 = vmatpush1.bf16.msra.mxu0 %v4614
    %4699 = vmatprep.subr.bf16.mxu0 0
    %4700 = vmatpush1.bf16.msra.mxu0 %v4617
    %4701 = vmatprep.subr.bf16.mxu0 0
    %4702 = vmatpush1.bf16.msra.mxu0 0
    %4703 = vmatprep.subr.bf16.mxu0 0
    %4704 = vmatpush1.bf16.msra.mxu0 0
    %4705 = vmatprep.subr.bf16.mxu0 0
    %4706 = vmatpush1.bf16.msra.mxu0 0
    %4707 = vmatprep.subr.bf16.mxu0 0
    %4708 = vmatpush1.bf16.msra.mxu0 0
    %4709 = vmatprep.subr.bf16.mxu0 0
    %4710 = vmatpush1.bf16.msra.mxu0 0
    %4711 = vmatprep.subr.bf16.mxu0 0
    %4712 = vmatpush1.bf16.msra.mxu0 0
    %4713 = vmatprep.subr.bf16.mxu0 0
    %4714 = vmatpush1.bf16.msra.mxu0 0
    %4715 = vmatprep.subr.bf16.mxu0 0
    %4716 = vmatpush1.bf16.msra.mxu0 0
    %4717 = vmatprep.mubr.bf16.mxu0 0
    %4718 = vmatmul.mubr.bf16.gmra.mrb[0].mxu0 %v4481
    %v4719 = vpop.f32.mrb[0].mxu0
    %v4720 = vadd.f32 %v2641, %v4719
    %v4721 = vpop.f32.mrb[0].mxu0
    %v4722 = vpop.f32.mrb[0].mxu0
    %v4723 = vadd.f32 %v2641, %v4722
    %v4724 = vpop.f32.mrb[0].mxu0
    %4725 = vdwg.mxu0
    %v4726 = vadd.f32 %v4475, %v4677
    %v4727 = vadd.f32 %v4478, %v4681
    %v4728 = vxor.u32 %v4726, 2147483648
    %v4729 = vxor.u32 %v4727, 2147483648
    %v4730 = vmul.f32 %v4728, 1.442695
    %v4731 = vpow.pop %v4730
    %v4732 = vmul.f32 %v4729, 1.442695
    %v4733 = vpow.pop %v4732
    %v4734 = vadd.f32 %v4731, 1.0
    %v4735 = vadd.f32 %v4733, 1.0
    %v4736 = vrcp.pop %v4734
    %v4737 = vmul.f32 1.0, %v4736
    %v4738 = vrcp.pop %v4735
    %v4739 = vmul.f32 1.0, %v4738
    %v4740 = vadd.f32 %v4476, %v4679
    %v4741 = vadd.f32 %v4479, %v4683
    %v4742 = vxor.u32 %v4740, 2147483648
    %v4743 = vxor.u32 %v4741, 2147483648
    %v4744 = vmul.f32 %v4742, 1.442695
    %v4745 = vpow.pop %v4744
    %v4746 = vmul.f32 %v4743, 1.442695
    %v4747 = vpow.pop %v4746
    %v4748 = vadd.f32 %v4745, 1.0
    %v4749 = vadd.f32 %v4747, 1.0
    %v4750 = vrcp.pop %v4748
    %v4751 = vmul.f32 1.0, %v4750
    %v4752 = vrcp.pop %v4749
    %v4753 = vmul.f32 1.0, %v4752
    %v4754 = vmul.f32 %v4737, %v4720
    %v4755 = vmul.f32 %v4739, %v4723
    %v4756 = vadd.f32 %v4477, %v4754
    %v4757 = vadd.f32 %v4480, %v4755
    %v4758 = vtanh.pop %v4756
    %v4759 = vtanh.pop %v4757
    %v4760 = vsub.f32 1.0, %v4751
    %v4761 = vsub.f32 1.0, %v4753
    %v4762 = vmul.f32 %v4760, %v4758
    %v4763 = vmul.f32 %v4761, %v4759
    %v4764 = vmul.f32 %v4751, %v4462
    %v4765 = vmul.f32 %v4753, %v4463
    %v4766 = vadd.f32 %v4762, %v4764
    %v4767 = vadd.f32 %v4763, %v4765
    %s4768 = scalar_lea.vmem [#allocation4], 96
    %4769 = vst [vmem:[%s4768] sm:$0xff] %v4766
    %4770 = vst [vmem:[%s4768 + $0x8] sm:$0xff] %v4767
    %s4771 = smul.addr %s2053, 8
    %s4772 = scalar_lea.vmem [#allocation3], %s4771
    %v4773 = vld [vmem:[%s4772] sm:$0xff]
    %v4774 = vld [vmem:[%s4772 + $0x8] sm:$0xff]
    %v4775 = vld [vmem:[%s4772 + $0x10] sm:$0xff]
    %v4776 = vld [vmem:[%s4772 + $0x18] sm:$0xff]
    %v4777 = vld [vmem:[%s4772 + $0x20] sm:$0xff]
    %v4778 = vld [vmem:[%s4772 + $0x28] sm:$0xff]
    %v4779 = vadd.f32 %v4773, %v2579
    %v4780 = vadd.f32 %v4774, %v2581
    %v4781 = vadd.f32 %v4775, %v2622
    %v4782 = vadd.f32 %v4776, %v2583
    %v4783 = vadd.f32 %v4777, %v2585
    %v4784 = vadd.f32 %v4778, %v2625
    %v4785 = vpack.c.bf16 %v4767, %v4766
    %v4786 = vld [vmem:[#allocation14] sm:$0xff]
    %v4787 = vld [vmem:[#allocation14 + $0x8] sm:$0xf]
    %v4788 = vld [vmem:[#allocation14 + $0xc] sm:$0xff]
    %v4789 = vld [vmem:[#allocation14 + $0x14] sm:$0xf]
    %v4790 = vld [vmem:[#allocation14 + $0x18] sm:$0xff]
    %v4791 = vld [vmem:[#allocation14 + $0x20] sm:$0xf]
    %v4792 = vld [vmem:[#allocation14 + $0x24] sm:$0xff]
    %v4793 = vld [vmem:[#allocation14 + $0x2c] sm:$0xf]
    %v4794 = vld [vmem:[#allocation14 + $0x30] sm:$0xff]
    %v4795 = vld [vmem:[#allocation14 + $0x38] sm:$0xf]
    %v4796 = vld [vmem:[#allocation14 + $0x3c] sm:$0xff]
    %v4797 = vld [vmem:[#allocation14 + $0x44] sm:$0xf]
    %v4798 = vld [vmem:[#allocation14 + $0x48] sm:$0xff]
    %v4799 = vld [vmem:[#allocation14 + $0x50] sm:$0xf]
    %v4800 = vld [vmem:[#allocation14 + $0x54] sm:$0xff]
    %v4801 = vld [vmem:[#allocation14 + $0x5c] sm:$0xf]
    %v4802 = vld [vmem:[#allocation14 + $0x60] sm:$0xff]
    %v4803 = vld [vmem:[#allocation14 + $0x68] sm:$0xf]
    %v4804 = vld [vmem:[#allocation14 + $0x6c] sm:$0xff]
    %v4805 = vld [vmem:[#allocation14 + $0x74] sm:$0xf]
    %v4806 = vld [vmem:[#allocation14 + $0x78] sm:$0xff]
    %v4807 = vld [vmem:[#allocation14 + $0x80] sm:$0xf]
    %v4808 = vld [vmem:[#allocation14 + $0x84] sm:$0xff]
    %v4809 = vld [vmem:[#allocation14 + $0x8c] sm:$0xf]
    %v4810 = vld [vmem:[#allocation14 + $0x90] sm:$0xff]
    %v4811 = vld [vmem:[#allocation14 + $0x98] sm:$0xf]
    %v4812 = vld [vmem:[#allocation14 + $0x9c] sm:$0xff]
    %v4813 = vld [vmem:[#allocation14 + $0xa4] sm:$0xf]
    %v4814 = vld [vmem:[#allocation14 + $0xa8] sm:$0xff]
    %v4815 = vld [vmem:[#allocation14 + $0xb0] sm:$0xf]
    %v4816 = vld [vmem:[#allocation14 + $0xb4] sm:$0xff]
    %v4817 = vld [vmem:[#allocation14 + $0xbc] sm:$0xf]
    %v4850 = vunpack.c.l.b16 %v4786
    %v4851 = vunpack.c.h.b16 %v4786
    %v4852 = vunpack.c.l.b16 %v4787
    %v4853 = vunpack.c.l.b16 %v4788
    %v4854 = vunpack.c.h.b16 %v4788
    %v4855 = vunpack.c.l.b16 %v4789
    %v4856 = vunpack.c.l.b16 %v4790
    %v4857 = vunpack.c.h.b16 %v4790
    %v4858 = vunpack.c.l.b16 %v4791
    %v4859 = vunpack.c.l.b16 %v4792
    %v4860 = vunpack.c.h.b16 %v4792
    %v4861 = vunpack.c.l.b16 %v4793
    %v4862 = vunpack.c.l.b16 %v4794
    %v4863 = vunpack.c.h.b16 %v4794
    %v4864 = vunpack.c.l.b16 %v4795
    %v4865 = vunpack.c.l.b16 %v4796
    %v4866 = vunpack.c.h.b16 %v4796
    %v4867 = vunpack.c.l.b16 %v4797
    %v4868 = vunpack.c.l.b16 %v4798
    %v4869 = vunpack.c.h.b16 %v4798
    %v4870 = vunpack.c.l.b16 %v4799
    %v4871 = vunpack.c.l.b16 %v4800
    %v4872 = vunpack.c.h.b16 %v4800
    %v4873 = vunpack.c.l.b16 %v4801
    %v4874 = vunpack.c.l.b16 %v4802
    %v4875 = vunpack.c.h.b16 %v4802
    %v4876 = vunpack.c.l.b16 %v4803
    %v4877 = vunpack.c.l.b16 %v4804
    %v4878 = vunpack.c.h.b16 %v4804
    %v4879 = vunpack.c.l.b16 %v4805
    %v4880 = vunpack.c.l.b16 %v4806
    %v4881 = vunpack.c.h.b16 %v4806
    %v4882 = vunpack.c.l.b16 %v4807
    %v4883 = vunpack.c.l.b16 %v4808
    %v4884 = vunpack.c.h.b16 %v4808
    %v4885 = vunpack.c.l.b16 %v4809
    %v4886 = vunpack.c.l.b16 %v4810
    %v4887 = vunpack.c.h.b16 %v4810
    %v4888 = vunpack.c.l.b16 %v4811
    %v4889 = vunpack.c.l.b16 %v4812
    %v4890 = vunpack.c.h.b16 %v4812
    %v4891 = vunpack.c.l.b16 %v4813
    %v4892 = vunpack.c.l.b16 %v4814
    %v4893 = vunpack.c.h.b16 %v4814
    %v4894 = vunpack.c.l.b16 %v4815
    %v4895 = vunpack.c.l.b16 %v4816
    %v4896 = vunpack.c.h.b16 %v4816
    %v4897 = vunpack.c.l.b16 %v4817
    %v4898 = vpack.c.b16 %v4853, %v4850
    %v4899 = vpack.c.b16 %v4854, %v4851
    %v4900 = vpack.c.b16 %v4855, %v4852
    %v4901 = vpack.c.b16 %v4859, %v4856
    %v4902 = vpack.c.b16 %v4860, %v4857
    %v4903 = vpack.c.b16 %v4861, %v4858
    %v4904 = vpack.c.b16 %v4865, %v4862
    %v4905 = vpack.c.b16 %v4866, %v4863
    %v4906 = vpack.c.b16 %v4867, %v4864
    %v4907 = vpack.c.b16 %v4871, %v4868
    %v4908 = vpack.c.b16 %v4872, %v4869
    %v4909 = vpack.c.b16 %v4873, %v4870
    %v4910 = vpack.c.b16 %v4877, %v4874
    %v4911 = vpack.c.b16 %v4878, %v4875
    %v4912 = vpack.c.b16 %v4879, %v4876
    %v4913 = vpack.c.b16 %v4883, %v4880
    %v4914 = vpack.c.b16 %v4884, %v4881
    %v4915 = vpack.c.b16 %v4885, %v4882
    %v4916 = vpack.c.b16 %v4889, %v4886
    %v4917 = vpack.c.b16 %v4890, %v4887
    %v4918 = vpack.c.b16 %v4891, %v4888
    %v4919 = vpack.c.b16 %v4895, %v4892
    %v4920 = vpack.c.b16 %v4896, %v4893
    %v4921 = vpack.c.b16 %v4897, %v4894
    %4946 = vmatprep.subr.bf16.mxu0 %v4899
    %4947 = vmatpush1.bf16.msra.mxu0 %v4898
    %4948 = vmatprep.subr.bf16.mxu0 %v4902
    %4949 = vmatpush1.bf16.msra.mxu0 %v4901
    %4950 = vmatprep.subr.bf16.mxu0 %v4905
    %4951 = vmatpush1.bf16.msra.mxu0 %v4904
    %4952 = vmatprep.subr.bf16.mxu0 %v4908
    %4953 = vmatpush1.bf16.msra.mxu0 %v4907
    %4954 = vmatprep.subr.bf16.mxu0 %v4911
    %4955 = vmatpush1.bf16.msra.mxu0 %v4910
    %4956 = vmatprep.subr.bf16.mxu0 %v4914
    %4957 = vmatpush1.bf16.msra.mxu0 %v4913
    %4958 = vmatprep.subr.bf16.mxu0 %v4917
    %4959 = vmatpush1.bf16.msra.mxu0 %v4916
    %4960 = vmatprep.subr.bf16.mxu0 %v4920
    %4961 = vmatpush1.bf16.msra.mxu0 %v4919
    %4962 = vmatprep.subr.bf16.mxu0 0
    %4963 = vmatpush1.bf16.msra.mxu0 0
    %4964 = vmatprep.subr.bf16.mxu0 0
    %4965 = vmatpush1.bf16.msra.mxu0 0
    %4966 = vmatprep.subr.bf16.mxu0 0
    %4967 = vmatpush1.bf16.msra.mxu0 0
    %4968 = vmatprep.subr.bf16.mxu0 0
    %4969 = vmatpush1.bf16.msra.mxu0 0
    %4970 = vmatprep.subr.bf16.mxu0 0
    %4971 = vmatpush1.bf16.msra.mxu0 0
    %4972 = vmatprep.subr.bf16.mxu0 0
    %4973 = vmatpush1.bf16.msra.mxu0 0
    %4974 = vmatprep.subr.bf16.mxu0 0
    %4975 = vmatpush1.bf16.msra.mxu0 0
    %4976 = vmatprep.subr.bf16.mxu0 0
    %4977 = vmatpush1.bf16.msra.mxu0 0
    %4978 = vmatprep.mubr.bf16.mxu0 0
    %4979 = vmatmul.mubr.bf16.gmra.mrb[0].mxu0 %v4785
    %v4980 = vpop.f32.mrb[0].mxu0
    %v4981 = vadd.f32 %v2633, %v4980
    %v4982 = vpop.f32.mrb[0].mxu0
    %v4983 = vadd.f32 %v2637, %v4982
    %v4984 = vpop.f32.mrb[0].mxu0
    %v4985 = vadd.f32 %v2633, %v4984
    %v4986 = vpop.f32.mrb[0].mxu0
    %v4987 = vadd.f32 %v2637, %v4986
    %4988 = vdwg.mxu0
    %4989 = vmatprep.subr.bf16.mxu0 0
    %4990 = vmatpush1.bf16.msra.mxu0 %v4900
    %4991 = vmatprep.subr.bf16.mxu0 0
    %4992 = vmatpush1.bf16.msra.mxu0 %v4903
    %4993 = vmatprep.subr.bf16.mxu0 0
    %4994 = vmatpush1.bf16.msra.mxu0 %v4906
    %4995 = vmatprep.subr.bf16.mxu0 0
    %4996 = vmatpush1.bf16.msra.mxu0 %v4909
    %4997 = vmatprep.subr.bf16.mxu0 0
    %4998 = vmatpush1.bf16.msra.mxu0 %v4912
    %4999 = vmatprep.subr.bf16.mxu0 0
    %5000 = vmatpush1.bf16.msra.mxu0 %v4915
    %5001 = vmatprep.subr.bf16.mxu0 0
    %5002 = vmatpush1.bf16.msra.mxu0 %v4918
    %5003 = vmatprep.subr.bf16.mxu0 0
    %5004 = vmatpush1.bf16.msra.mxu0 %v4921
    %5005 = vmatprep.subr.bf16.mxu0 0
    %5006 = vmatpush1.bf16.msra.mxu0 0
    %5007 = vmatprep.subr.bf16.mxu0 0
    %5008 = vmatpush1.bf16.msra.mxu0 0
    %5009 = vmatprep.subr.bf16.mxu0 0
    %5010 = vmatpush1.bf16.msra.mxu0 0
    %5011 = vmatprep.subr.bf16.mxu0 0
    %5012 = vmatpush1.bf16.msra.mxu0 0
    %5013 = vmatprep.subr.bf16.mxu0 0
    %5014 = vmatpush1.bf16.msra.mxu0 0
    %5015 = vmatprep.subr.bf16.mxu0 0
    %5016 = vmatpush1.bf16.msra.mxu0 0
    %5017 = vmatprep.subr.bf16.mxu0 0
    %5018 = vmatpush1.bf16.msra.mxu0 0
    %5019 = vmatprep.subr.bf16.mxu0 0
    %5020 = vmatpush1.bf16.msra.mxu0 0
    %5021 = vmatprep.mubr.bf16.mxu0 0
    %5022 = vmatmul.mubr.bf16.gmra.mrb[0].mxu0 %v4785
    %v5023 = vpop.f32.mrb[0].mxu0
    %v5024 = vadd.f32 %v2641, %v5023
    %v5025 = vpop.f32.mrb[0].mxu0
    %v5026 = vpop.f32.mrb[0].mxu0
    %v5027 = vadd.f32 %v2641, %v5026
    %v5028 = vpop.f32.mrb[0].mxu0
    %5029 = vdwg.mxu0
    %v5030 = vadd.f32 %v4779, %v4981
    %v5031 = vadd.f32 %v4782, %v4985
    %v5032 = vxor.u32 %v5030, 2147483648
    %v5033 = vxor.u32 %v5031, 2147483648
    %v5034 = vmul.f32 %v5032, 1.442695
    %v5035 = vpow.pop %v5034
    %v5036 = vmul.f32 %v5033, 1.442695
    %v5037 = vpow.pop %v5036
    %v5038 = vadd.f32 %v5035, 1.0
    %v5039 = vadd.f32 %v5037, 1.0
    %v5040 = vrcp.pop %v5038
    %v5041 = vmul.f32 1.0, %v5040
    %v5042 = vrcp.pop %v5039
    %v5043 = vmul.f32 1.0, %v5042
    %v5044 = vadd.f32 %v4780, %v4983
    %v5045 = vadd.f32 %v4783, %v4987
    %v5046 = vxor.u32 %v5044, 2147483648
    %v5047 = vxor.u32 %v5045, 2147483648
    %v5048 = vmul.f32 %v5046, 1.442695
    %v5049 = vpow.pop %v5048
    %v5050 = vmul.f32 %v5047, 1.442695
    %v5051 = vpow.pop %v5050
    %v5052 = vadd.f32 %v5049, 1.0
    %v5053 = vadd.f32 %v5051, 1.0
    %v5054 = vrcp.pop %v5052
    %v5055 = vmul.f32 1.0, %v5054
    %v5056 = vrcp.pop %v5053
    %v5057 = vmul.f32 1.0, %v5056
    %v5058 = vmul.f32 %v5041, %v5024
    %v5059 = vmul.f32 %v5043, %v5027
    %v5060 = vadd.f32 %v4781, %v5058
    %v5061 = vadd.f32 %v4784, %v5059
    %v5062 = vtanh.pop %v5060
    %v5063 = vtanh.pop %v5061
    %v5064 = vsub.f32 1.0, %v5055
    %v5065 = vsub.f32 1.0, %v5057
    %v5066 = vmul.f32 %v5064, %v5062
    %v5067 = vmul.f32 %v5065, %v5063
    %v5068 = vmul.f32 %v5055, %v4766
    %v5069 = vmul.f32 %v5057, %v4767
    %v5070 = vadd.f32 %v5066, %v5068
    %v5071 = vadd.f32 %v5067, %v5069
    %s5072 = scalar_lea.vmem [#allocation4], 112
    %5073 = vst [vmem:[%s5072] sm:$0xff] %v5070
    %5074 = vst [vmem:[%s5072 + $0x8] sm:$0xff] %v5071
    %v5075 = vld [vmem:[#allocation4] sm:$0xff]
    %v5076 = vld [vmem:[#allocation4 + $0x8] sm:$0xff]
    %v5077 = vld [vmem:[#allocation4 + $0x10] sm:$0xff]
    %v5078 = vld [vmem:[#allocation4 + $0x18] sm:$0xff]
    %v5079 = vld [vmem:[#allocation4 + $0x20] sm:$0xff]
    %v5080 = vld [vmem:[#allocation4 + $0x28] sm:$0xff]
    %v5081 = vld [vmem:[#allocation4 + $0x30] sm:$0xff]
    %v5082 = vld [vmem:[#allocation4 + $0x38] sm:$0xff]
    %v5083 = vld [vmem:[#allocation4 + $0x40] sm:$0xff]
    %v5084 = vld [vmem:[#allocation4 + $0x48] sm:$0xff]
    %v5085 = vld [vmem:[#allocation4 + $0x50] sm:$0xff]
    %v5086 = vld [vmem:[#allocation4 + $0x58] sm:$0xff]
    %v5087 = vld [vmem:[#allocation4 + $0x60] sm:$0xff]
    %v5088 = vld [vmem:[#allocation4 + $0x68] sm:$0xff]
    %v5089 = vld [vmem:[#allocation4 + $0x70] sm:$0xff]
    %v5090 = vld [vmem:[#allocation4 + $0x78] sm:$0xff]
    %v5091 = vpack.c.bf16 %v5076, %v5075
    %v5092 = vpack.c.bf16 %v5078, %v5077
    %v5093 = vpack.c.bf16 %v5080, %v5079
    %v5094 = vpack.c.bf16 %v5082, %v5081
    %v5095 = vpack.c.bf16 %v5084, %v5083
    %v5096 = vpack.c.bf16 %v5086, %v5085
    %v5097 = vpack.c.bf16 %v5088, %v5087
    %v5098 = vpack.c.bf16 %v5090, %v5089
    %v5099 = vld [vmem:[%s13] sm:$0xf]
    %v5100 = vld [vmem:[%s13 + $0x4] sm:$0xf]
    %v5101 = vld [vmem:[%s13 + $0x8] sm:$0xf]
    %v5102 = vld [vmem:[%s13 + $0xc] sm:$0xf]
    %v5103 = vld [vmem:[%s13 + $0x10] sm:$0xf]
    %v5104 = vld [vmem:[%s13 + $0x14] sm:$0xf]
    %v5105 = vld [vmem:[%s13 + $0x18] sm:$0xf]
    %v5106 = vld [vmem:[%s13 + $0x1c] sm:$0xf]
    %v5107 = vld [vmem:[%s13 + $0x20] sm:$0xf]
    %v5108 = vld [vmem:[%s13 + $0x24] sm:$0xf]
    %v5109 = vld [vmem:[%s13 + $0x28] sm:$0xf]
    %v5110 = vld [vmem:[%s13 + $0x2c] sm:$0xf]
    %v5111 = vld [vmem:[%s13 + $0x30] sm:$0xf]
    %v5112 = vld [vmem:[%s13 + $0x34] sm:$0xf]
    %v5113 = vld [vmem:[%s13 + $0x38] sm:$0xf]
    %v5114 = vld [vmem:[%s13 + $0x3c] sm:$0xf]
    %v5115 = vld [vmem:[%s14] sm:$0x1]
    %v5117 = vlaneseq
    %v5118 = vshrl.u32 %v5117, 7
    %v5119 = vsub.s32 0, %v5118
    %v5120 = vrot.slane %v5115, %v5119
    %v5138 = vunpack.c.l.b16 %v5099
    %v5139 = vunpack.c.l.b16 %v5100
    %v5140 = vunpack.c.l.b16 %v5101
    %v5141 = vunpack.c.l.b16 %v5102
    %v5142 = vunpack.c.l.b16 %v5103
    %v5143 = vunpack.c.l.b16 %v5104
    %v5144 = vunpack.c.l.b16 %v5105
    %v5145 = vunpack.c.l.b16 %v5106
    %v5146 = vunpack.c.l.b16 %v5107
    %v5147 = vunpack.c.l.b16 %v5108
    %v5148 = vunpack.c.l.b16 %v5109
    %v5149 = vunpack.c.l.b16 %v5110
    %v5150 = vunpack.c.l.b16 %v5111
    %v5151 = vunpack.c.l.b16 %v5112
    %v5152 = vunpack.c.l.b16 %v5113
    %v5153 = vunpack.c.l.b16 %v5114
    %v5154 = vpack.c.b16 %v5139, %v5138
    %v5155 = vpack.c.b16 %v5141, %v5140
    %v5156 = vpack.c.b16 %v5143, %v5142
    %v5157 = vpack.c.b16 %v5145, %v5144
    %v5158 = vpack.c.b16 %v5147, %v5146
    %v5159 = vpack.c.b16 %v5149, %v5148
    %v5160 = vpack.c.b16 %v5151, %v5150
    %v5161 = vpack.c.b16 %v5153, %v5152
    %5170 = vmatprep.subr.bf16.mxu0 0
    %5171 = vmatpush1.bf16.msra.mxu0 %v5154
    %5172 = vmatprep.subr.bf16.mxu0 0
    %5173 = vmatpush1.bf16.msra.mxu0 %v5155
    %5174 = vmatprep.subr.bf16.mxu0 0
    %5175 = vmatpush1.bf16.msra.mxu0 %v5156
    %5176 = vmatprep.subr.bf16.mxu0 0
    %5177 = vmatpush1.bf16.msra.mxu0 %v5157
    %5178 = vmatprep.subr.bf16.mxu0 0
    %5179 = vmatpush1.bf16.msra.mxu0 %v5158
    %5180 = vmatprep.subr.bf16.mxu0 0
    %5181 = vmatpush1.bf16.msra.mxu0 %v5159
    %5182 = vmatprep.subr.bf16.mxu0 0
    %5183 = vmatpush1.bf16.msra.mxu0 %v5160
    %5184 = vmatprep.subr.bf16.mxu0 0
    %5185 = vmatpush1.bf16.msra.mxu0 %v5161
    %5186 = vmatprep.subr.bf16.mxu0 0
    %5187 = vmatpush1.bf16.msra.mxu0 0
    %5188 = vmatprep.subr.bf16.mxu0 0
    %5189 = vmatpush1.bf16.msra.mxu0 0
    %5190 = vmatprep.subr.bf16.mxu0 0
    %5191 = vmatpush1.bf16.msra.mxu0 0
    %5192 = vmatprep.subr.bf16.mxu0 0
    %5193 = vmatpush1.bf16.msra.mxu0 0
    %5194 = vmatprep.subr.bf16.mxu0 0
    %5195 = vmatpush1.bf16.msra.mxu0 0
    %5196 = vmatprep.subr.bf16.mxu0 0
    %5197 = vmatpush1.bf16.msra.mxu0 0
    %5198 = vmatprep.subr.bf16.mxu0 0
    %5199 = vmatpush1.bf16.msra.mxu0 0
    %5200 = vmatprep.subr.bf16.mxu0 0
    %5201 = vmatpush1.bf16.msra.mxu0 0
    %5202 = vmatprep.mubr.bf16.mxu0 0
    %5203 = vmatmul.mubr.bf16.gmra.mrb[0].mxu0 %v5091
    %v5204 = vpop.f32.mrb[0].mxu0
    %v5205 = vadd.f32 %v5120, %v5204
    %v5206 = vpop.f32.mrb[0].mxu0
    %v5207 = vpop.f32.mrb[0].mxu0
    %v5208 = vadd.f32 %v5120, %v5207
    %v5209 = vpop.f32.mrb[0].mxu0
    %5210 = vmatprep.mubr.bf16.mxu0 0
    %5211 = vmatmul.mubr.bf16.gmra.mrb[0].mxu0 %v5092
    %v5212 = vpop.f32.mrb[0].mxu0
    %v5213 = vadd.f32 %v5120, %v5212
    %v5214 = vpop.f32.mrb[0].mxu0
    %v5215 = vpop.f32.mrb[0].mxu0
    %v5216 = vadd.f32 %v5120, %v5215
    %v5217 = vpop.f32.mrb[0].mxu0
    %5218 = vmatprep.mubr.bf16.mxu0 0
    %5219 = vmatmul.mubr.bf16.gmra.mrb[0].mxu0 %v5093
    %v5220 = vpop.f32.mrb[0].mxu0
    %v5221 = vadd.f32 %v5120, %v5220
    %v5222 = vpop.f32.mrb[0].mxu0
    %v5223 = vpop.f32.mrb[0].mxu0
    %v5224 = vadd.f32 %v5120, %v5223
    %v5225 = vpop.f32.mrb[0].mxu0
    %5226 = vmatprep.mubr.bf16.mxu0 0
    %5227 = vmatmul.mubr.bf16.gmra.mrb[0].mxu0 %v5094
    %v5228 = vpop.f32.mrb[0].mxu0
    %v5229 = vadd.f32 %v5120, %v5228
    %v5230 = vpop.f32.mrb[0].mxu0
    %v5231 = vpop.f32.mrb[0].mxu0
    %v5232 = vadd.f32 %v5120, %v5231
    %v5233 = vpop.f32.mrb[0].mxu0
    %5234 = vmatprep.mubr.bf16.mxu0 0
    %5235 = vmatmul.mubr.bf16.gmra.mrb[0].mxu0 %v5095
    %v5236 = vpop.f32.mrb[0].mxu0
    %v5237 = vadd.f32 %v5120, %v5236
    %v5238 = vpop.f32.mrb[0].mxu0
    %v5239 = vpop.f32.mrb[0].mxu0
    %v5240 = vadd.f32 %v5120, %v5239
    %v5241 = vpop.f32.mrb[0].mxu0
    %5242 = vmatprep.mubr.bf16.mxu0 0
    %5243 = vmatmul.mubr.bf16.gmra.mrb[0].mxu0 %v5096
    %v5244 = vpop.f32.mrb[0].mxu0
    %v5245 = vadd.f32 %v5120, %v5244
    %v5246 = vpop.f32.mrb[0].mxu0
    %v5247 = vpop.f32.mrb[0].mxu0
    %v5248 = vadd.f32 %v5120, %v5247
    %v5249 = vpop.f32.mrb[0].mxu0
    %5250 = vmatprep.mubr.bf16.mxu0 0
    %5251 = vmatmul.mubr.bf16.gmra.mrb[0].mxu0 %v5097
    %v5252 = vpop.f32.mrb[0].mxu0
    %v5253 = vadd.f32 %v5120, %v5252
    %v5254 = vpop.f32.mrb[0].mxu0
    %v5255 = vpop.f32.mrb[0].mxu0
    %v5256 = vadd.f32 %v5120, %v5255
    %v5257 = vpop.f32.mrb[0].mxu0
    %5258 = vmatprep.mubr.bf16.mxu0 0
    %5259 = vmatmul.mubr.bf16.gmra.mrb[0].mxu0 %v5098
    %v5260 = vpop.f32.mrb[0].mxu0
    %v5261 = vadd.f32 %v5120, %v5260
    %v5262 = vpop.f32.mrb[0].mxu0
    %v5263 = vpop.f32.mrb[0].mxu0
    %v5264 = vadd.f32 %v5120, %v5263
    %v5265 = vpop.f32.mrb[0].mxu0
    %5266 = vdwg.mxu0
    %v5267 = vpack.c.bf16 %v5208, %v5205
    %v5268 = vpack.c.bf16 %v5216, %v5213
    %v5269 = vpack.c.bf16 %v5224, %v5221
    %v5270 = vpack.c.bf16 %v5232, %v5229
    %v5271 = vpack.c.bf16 %v5240, %v5237
    %v5272 = vpack.c.bf16 %v5248, %v5245
    %v5273 = vpack.c.bf16 %v5256, %v5253
    %v5274 = vpack.c.bf16 %v5264, %v5261
    %v5283 = vunpack.c.l.b16 %v5267
    %v5284 = vunpack.c.h.b16 %v5267
    %v5285 = vunpack.c.l.b16 %v5268
    %v5286 = vunpack.c.h.b16 %v5268
    %v5287 = vunpack.c.l.b16 %v5269
    %v5288 = vunpack.c.h.b16 %v5269
    %v5289 = vunpack.c.l.b16 %v5270
    %v5290 = vunpack.c.h.b16 %v5270
    %v5291 = vunpack.c.l.b16 %v5271
    %v5292 = vunpack.c.h.b16 %v5271
    %v5293 = vunpack.c.l.b16 %v5272
    %v5294 = vunpack.c.h.b16 %v5272
    %v5295 = vunpack.c.l.b16 %v5273
    %v5296 = vunpack.c.h.b16 %v5273
    %v5297 = vunpack.c.l.b16 %v5274
    %v5298 = vunpack.c.h.b16 %v5274
    %v5299 = vpack.c.b16 %v5283, %v5283
    %v5300 = vpack.c.b16 %v5284, %v5284
    %v5301 = vpack.c.b16 %v5285, %v5285
    %v5302 = vpack.c.b16 %v5286, %v5286
    %v5303 = vpack.c.b16 %v5287, %v5287
    %v5304 = vpack.c.b16 %v5288, %v5288
    %v5305 = vpack.c.b16 %v5289, %v5289
    %v5306 = vpack.c.b16 %v5290, %v5290
    %v5307 = vpack.c.b16 %v5291, %v5291
    %v5308 = vpack.c.b16 %v5292, %v5292
    %v5309 = vpack.c.b16 %v5293, %v5293
    %v5310 = vpack.c.b16 %v5294, %v5294
    %v5311 = vpack.c.b16 %v5295, %v5295
    %v5312 = vpack.c.b16 %v5296, %v5296
    %v5313 = vpack.c.b16 %v5297, %v5297
    %v5314 = vpack.c.b16 %v5298, %v5298
    %5331 = vst [vmem:[#allocation16] sm:$0xf] %v5299
    %5332 = vst [vmem:[#allocation16 + $0x4] sm:$0xf] %v5300
    %5333 = vst [vmem:[#allocation16 + $0x8] sm:$0xf] %v5301
    %5334 = vst [vmem:[#allocation16 + $0xc] sm:$0xf] %v5302
    %5335 = vst [vmem:[#allocation16 + $0x10] sm:$0xf] %v5303
    %5336 = vst [vmem:[#allocation16 + $0x14] sm:$0xf] %v5304
    %5337 = vst [vmem:[#allocation16 + $0x18] sm:$0xf] %v5305
    %5338 = vst [vmem:[#allocation16 + $0x1c] sm:$0xf] %v5306
    %5339 = vst [vmem:[#allocation16 + $0x20] sm:$0xf] %v5307
    %5340 = vst [vmem:[#allocation16 + $0x24] sm:$0xf] %v5308
    %5341 = vst [vmem:[#allocation16 + $0x28] sm:$0xf] %v5309
    %5342 = vst [vmem:[#allocation16 + $0x2c] sm:$0xf] %v5310
    %5343 = vst [vmem:[#allocation16 + $0x30] sm:$0xf] %v5311
    %5344 = vst [vmem:[#allocation16 + $0x34] sm:$0xf] %v5312
    %5345 = vst [vmem:[#allocation16 + $0x38] sm:$0xf] %v5313
    %5346 = vst [vmem:[#allocation16 + $0x3c] sm:$0xf] %v5314
    // Predicated region
    $region86: #{tpu_custom_call.1} parent=1 // pred_check
      _
    $region87: #{tpu_custom_call.1} parent=1 // pred_check_branch
      %5348 = sbr.rel (0) target = $region89
    $region88: #{tpu_custom_call.1} parent=1 // pred_region
      %s5350 = ssub.s32 1024, 1024
      %5351 = vsyncadd [#allocation7], %s5350
      %s5352 = sshll.u32 [#allocation16], 4
      %s5353 = int_to_ptr.vmem [resolvable:$true] %s5352
      %5358 = dma.vmem_to_hbm [thread:$0]  %s5353, 1024, %s15, [#allocation7], 64, 64, 4
    $region89: #{tpu_custom_call.1} parent=1 // pred_fallthru
      _
    // Predicated region
    $region90: #{tpu_custom_call.1} parent=1 // pred_check
      _
    $region91: #{tpu_custom_call.1} parent=1 // pred_check_branch
      %5360 = sbr.rel (0) target = $region93
    $region92: #{tpu_custom_call.1} parent=1 // pred_region
      %s5362 = ssub.s32 256, 256
      %5363 = vsyncadd [#allocation18], %s5362
      %s5364 = sshll.u32 [#allocation17], 4
      %s5365 = int_to_ptr.vmem [resolvable:$true] %s5364
      %5370 = dma.vmem_to_hbm [thread:$0]  %s5365, 256, %s16, [#allocation18], 128, 128, 8
    $region93: #{tpu_custom_call.1} parent=1 // pred_fallthru
      _
    // Predicated region
    $region94: #{tpu_custom_call.1} parent=1 // pred_check
      _
    $region95: #{tpu_custom_call.1} parent=1 // pred_check_branch
      %5372 = sbr.rel (0) target = $region97
    $region96: #{tpu_custom_call.1} parent=1 // pred_region
      %s5374 = ssub.s32 256, 256
      %5375 = vsyncadd [#allocation18], %s5374
      %s5376 = sshll.u32 [#allocation19], 4
      %s5377 = int_to_ptr.vmem [resolvable:$true] %s5376
      %5382 = dma.vmem_to_hbm [thread:$0]  %s5377, 256, %s17, [#allocation18], 128, 128, 8
    $region97: #{tpu_custom_call.1} parent=1 // pred_fallthru
      _
    // Predicated region
    $region98: #{tpu_custom_call.1} parent=1 // pred_check
      _
    $region99: #{tpu_custom_call.1} parent=1 // pred_check_branch
      %5384 = sbr.rel (0) target = $region101
    $region100: #{tpu_custom_call.1} parent=1 // pred_region
      %s5386 = ssub.s32 256, 256
      %5387 = vsyncadd [#allocation21], %s5386
      %s5388 = sshll.u32 [#allocation20], 4
      %s5389 = int_to_ptr.vmem [resolvable:$true] %s5388
      %5394 = dma.vmem_to_hbm [thread:$0]  %s5389, 256, %s18, [#allocation21], 128, 128, 8
    $region101: #{tpu_custom_call.1} parent=1 // pred_fallthru
      _
    // Predicated region
    $region102: #{tpu_custom_call.1} parent=1 // pred_check
      _
    $region103: #{tpu_custom_call.1} parent=1 // pred_check_branch
      %5396 = sbr.rel (0) target = $region105
    $region104: #{tpu_custom_call.1} parent=1 // pred_region
      %5397 = dma.done [#allocation7], 1024
    $region105: #{tpu_custom_call.1} parent=1 // pred_fallthru
      _
    // Predicated region
    $region106: #{tpu_custom_call.1} parent=1 // pred_check
      _
    $region107: #{tpu_custom_call.1} parent=1 // pred_check_branch
      %5399 = sbr.rel (0) target = $region109
    $region108: #{tpu_custom_call.1} parent=1 // pred_region
      %5400 = dma.done [#allocation18], 256
    $region109: #{tpu_custom_call.1} parent=1 // pred_fallthru
      _
    // Predicated region
    $region110: #{tpu_custom_call.1} parent=1 // pred_check
      _
    $region111: #{tpu_custom_call.1} parent=1 // pred_check_branch
      %5402 = sbr.rel (0) target = $region113
    $region112: #{tpu_custom_call.1} parent=1 // pred_region
      %5403 = dma.done [#allocation18], 256
    $region113: #{tpu_custom_call.1} parent=1 // pred_fallthru
      _
    // Predicated region
    $region114: #{tpu_custom_call.1} parent=1 // pred_check
      _
    $region115: #{tpu_custom_call.1} parent=1 // pred_check_branch
      %5405 = sbr.rel (0) target = $region117
    $region116: #{tpu_custom_call.1} parent=1 // pred_region
      %5406 = dma.done [#allocation21], 256
    $region117: #{tpu_custom_call.1} parent=1 // pred_fallthru
      _
    %5407 = vsyncpa [#allocation6], 1
    %5408 = vsyncpa [#allocation9], 1
    %5409 = vsyncpa [#allocation12], 1
    %5410 = vsyncpa [#allocation15], 1
    %5411 = vsyncpa [#allocation7], 1
    %5412 = vsyncpa [#allocation18], 1
    %5413 = vsyncpa [#allocation21], 1

</llo_original>
